<compile_context>
chip_gen: v6e
topology: v6e:2x2x1
jax: 0.10.0
libtpu: 0.0.40
codegen_flags: <defaults>
</compile_context>

<pallas_src>
import jax
import jax.numpy as jnp
from jax.experimental import pallas as pl
from jax.experimental.pallas import tpu as pltpu


def _round_up(n, m):
    return (n + m - 1) // m * m


def gated_attn_kernel(x_ref, wab_ref, bab_ref, wct_ref, bct_ref, out_ref):
    # One fused MXU matmul computes both the tanh and the sigmoid branch
    # (output width 2D = 512 fills the 256-wide v6e/v7x MXU), f32 accumulation.
    h = jnp.dot(x_ref[...], wab_ref[...],
                preferred_element_type=jnp.float32) + bab_ref[...]   # (tm, 2D) f32
    D = h.shape[-1] // 2
    a = jnp.tanh(h[:, :D])           # EUP, f32 (safe on v5e: no bf16 VPU/EUP)
    b = jax.nn.sigmoid(h[:, D:])     # EUP
    ab = a * b                       # VPU, f32  (tm, D)

    # Final D -> n_classes projection: n_classes is tiny, so an MXU matmul
    # would use ~1 of 128/256 output lanes.  Do it on VPU + XLU instead and
    # emit it transposed (n_classes, tm) -> lane-dense stores (tm on lanes).
    wct = wct_ref[...]                                           # (nc, D) f32
    nc = wct.shape[0]
    rows = [jnp.sum(ab * wct[c:c + 1, :], axis=-1) for c in range(nc)]  # (tm,)
    A_t = jnp.stack(rows, axis=0)                                # (nc, tm)
    out_ref[...] = (A_t + bct_ref[...]).astype(out_ref.dtype)


def attn_net_gated(x, wa, ba, wb, bb, wc, bc, *, tm=None, use_bf16=True):
    """Pallas forward of Attn_Net_Gated. Returns (A, x), matching PyTorch.

    x: (N, L). wa/wb: (L, D). ba/bb: (1, D). wc: (D, n_classes). bc: (1, n_classes).
    """
    N, L = x.shape
    D = wa.shape[1]
    nc = wc.shape[1]

    if tm is None:
        # Large row tiles: multiple of 128 keeps both the bf16 (16,128) x tile
        # and the lane-dense (nc, tm) output block legal for any grid size.
        tm = min(512, max(128, _round_up(N, 128)))
    assert tm % 128 == 0, "row tile must be a multiple of 128"
    N_pad = _round_up(N, tm)

    # Fuse the two L->D projections and their biases; pre-transpose Wc.
    wab = jnp.concatenate([wa, wb], axis=1)                        # (L, 2D)
    bab = jnp.concatenate([ba, bb], axis=1).astype(jnp.float32)    # (1, 2D)
    wct = wc.T.astype(jnp.float32)                                 # (nc, D)
    bct = jnp.reshape(bc, (nc, 1)).astype(jnp.float32)             # (nc, 1)

    in_dtype = jnp.bfloat16 if use_bf16 else x.dtype
    x_in = x.astype(in_dtype)
    wab = wab.astype(in_dtype)
    if N_pad != N:
        x_in = jnp.pad(x_in, ((0, N_pad - N), (0, 0)))             # pad, don't assert

    grid = (N_pad // tm,)
    full = lambda shape: pl.BlockSpec(shape, lambda i: (0, 0))     # resident blocks

    A_t = pl.pallas_call(
        gated_attn_kernel,
        out_shape=jax.ShapeDtypeStruct((nc, N_pad), x.dtype),      # transposed, lane-dense
        grid_spec=pltpu.PrefetchScalarGridSpec(
            num_scalar_prefetch=0,
            grid=grid,
            in_specs=[
                pl.BlockSpec((tm, L), lambda i: (i, 0)),   # x row tile (streamed)
                full((L, 2 * D)),                          # fused Wa|Wb
                full((1, 2 * D)),                          # fused ba|bb
                full((nc, D)),                             # Wc^T
                full((nc, 1)),                             # bc
            ],
            out_specs=pl.BlockSpec((nc, tm), lambda i: (0, i)),
        ),
        compiler_params=pltpu.CompilerParams(
            dimension_semantics=("parallel",)),
    )(x_in, wab, bab, wct, bct)

    A = A_t[:, :N].T                                               # (N, nc)
    return A, x


def init_params(key, L, D, n_classes, dtype=jnp.float32):
    """Deterministic synthetic parameters with nn.Linear-like scaling."""
    ks = jax.random.split(key, 6)

    def lin(kw, kb, fan_in, fan_out):
        bound = 1.0 / (fan_in ** 0.5)
        w = jax.random.uniform(kw, (fan_in, fan_out), dtype, -bound, bound)
        b = jax.random.uniform(kb, (1, fan_out), dtype, -bound, bound)
        return w, b

    wa, ba = lin(ks[0], ks[1], L, D)
    wb, bb = lin(ks[2], ks[3], L, D)
    wc, bc = lin(ks[4], ks[5], D, n_classes)
    return wa, ba, wb, bb, wc, bc


if __name__ == "__main__":
    # Module defaults L=1024, D=256, n_classes=1; a small bag of N=200
    # instances (not a multiple of the tile -> exercises the padding path).
    N, L, D, n_classes = 200, 1024, 256, 1

    key = jax.random.PRNGKey(0)
    kx, kp = jax.random.split(key)
    x = jax.random.normal(kx, (N, L), jnp.float32)
    wa, ba, wb, bb, wc, bc = init_params(kp, L, D, n_classes)

    A, x_out = attn_net_gated(x, wa, ba, wb, bb, wc, bc)
    jax.block_until_ready((A, x_out))

    # Reference (eval-mode forward) using the same bf16-rounded inputs the
    # kernel consumes, so accumulation order is the only remaining difference.
    f32 = lambda t: t.astype(jnp.bfloat16).astype(jnp.float32)
    dot_hi = lambda a, b: jnp.dot(a, b, precision=jax.lax.Precision.HIGHEST)
    a_ref = jnp.tanh(dot_hi(f32(x), f32(wa)) + ba)
    b_ref = jax.nn.sigmoid(dot_hi(f32(x), f32(wb)) + bb)
    A_ref = dot_hi(a_ref * b_ref, wc) + bc

    assert A.shape == (N, n_classes)
    assert x_out.shape == (N, L)
    err = float(jnp.max(jnp.abs(A - A_ref)))
    assert jnp.allclose(A, A_ref, atol=2e-3, rtol=2e-3), f"max abs err {err}"
    assert jnp.array_equal(x_out, x)

    print("KERNEL_OK")
</pallas_src>

<mosaic_0001>
module attributes {stable_mosaic.version = 11 : i64} {
  func.func @gated_attn_kernel(%arg0: i32, %arg1: memref<256x1024xbf16, #tpu.memory_space<vmem>>, %arg2: memref<1024x512xbf16, #tpu.memory_space<vmem>>, %arg3: memref<1x512xf32, #tpu.memory_space<vmem>>, %arg4: memref<1x256xf32, #tpu.memory_space<vmem>>, %arg5: memref<1x1xf32, #tpu.memory_space<vmem>>, %arg6: memref<1x256xf32, #tpu.memory_space<vmem>>) attributes {dimension_semantics = [#tpu.dimension_semantics<parallel>], iteration_bounds = array<i64: 1>, scalar_prefetch = 0 : i64, scratch_operands = 0 : i64, tpu.core_type = #tpu.core_type<tc>, window_params = [{transform_indices = @transform_0, window_bounds = array<i64: 256, 1024>}, {pipeline_mode = #tpu.pipeline_mode<synchronous>, transform_indices = @transform_1, window_bounds = array<i64: 1024, 512>}, {pipeline_mode = #tpu.pipeline_mode<synchronous>, transform_indices = @transform_2, window_bounds = array<i64: 1, 512>}, {pipeline_mode = #tpu.pipeline_mode<synchronous>, transform_indices = @transform_3, window_bounds = array<i64: 1, 256>}, {pipeline_mode = #tpu.pipeline_mode<synchronous>, transform_indices = @transform_4, window_bounds = array<i64: 1, 1>}, {transform_indices = @transform_5, window_bounds = array<i64: 1, 256>}]} {
    %c0 = arith.constant 0 : index
    %c0_0 = arith.constant 0 : index
    %0 = vector.load %arg1[%c0, %c0_0] : memref<256x1024xbf16, #tpu.memory_space<vmem>>, vector<256x1024xbf16>
    %c0_1 = arith.constant 0 : index
    %c0_2 = arith.constant 0 : index
    %1 = vector.load %arg2[%c0_1, %c0_2] : memref<1024x512xbf16, #tpu.memory_space<vmem>>, vector<1024x512xbf16>
    %cst = arith.constant dense<0.000000e+00> : vector<256x512xf32>
    %2 = tpu.matmul %0, %1, %cst {dimension_numbers = #tpu.dot_dimension_numbers<[1], [0], [0], [1], [0, 0, 1, 1], [], []>} : vector<256x1024xbf16>, vector<1024x512xbf16>, vector<256x512xf32> -> vector<256x512xf32>
    %c0_3 = arith.constant 0 : index
    %c0_4 = arith.constant 0 : index
    %3 = vector.load %arg3[%c0_3, %c0_4] : memref<1x512xf32, #tpu.memory_space<vmem>>, vector<1x512xf32>
    %4 = vector.broadcast %3 : vector<1x512xf32> to vector<256x512xf32>
    %5 = arith.addf %2, %4 : vector<256x512xf32>
    %6 = vector.extract_strided_slice %5 {offsets = [0, 0], sizes = [256, 256], strides = [1, 1]} : vector<256x512xf32> to vector<256x256xf32>
    %7 = math.tanh %6 : vector<256x256xf32>
    %8 = vector.extract_strided_slice %5 {offsets = [0, 256], sizes = [256, 256], strides = [1, 1]} : vector<256x512xf32> to vector<256x256xf32>
    %9 = arith.negf %8 : vector<256x256xf32>
    %10 = math.exp %9 : vector<256x256xf32>
    %cst_5 = arith.constant 1.000000e+00 : f32
    %11 = vector.broadcast %cst_5 : f32 to vector<256x256xf32>
    %12 = arith.addf %11, %10 : vector<256x256xf32>
    %13 = arith.divf %11, %12 : vector<256x256xf32>
    %14 = arith.mulf %7, %13 : vector<256x256xf32>
    %c0_6 = arith.constant 0 : index
    %c0_7 = arith.constant 0 : index
    %15 = vector.load %arg4[%c0_6, %c0_7] : memref<1x256xf32, #tpu.memory_space<vmem>>, vector<1x256xf32>
    %16 = vector.broadcast %15 : vector<1x256xf32> to vector<256x256xf32>
    %17 = arith.mulf %14, %16 : vector<256x256xf32>
    %cst_8 = arith.constant dense<0.000000e+00> : vector<256xf32>
    %18 = vector.multi_reduction <add>, %17, %cst_8 [1] : vector<256x256xf32> to vector<256xf32>
    %19 = vector.shape_cast %18 : vector<256xf32> to vector<1x256xf32>
    %c0_9 = arith.constant 0 : index
    %c0_10 = arith.constant 0 : index
    %20 = vector.load %arg5[%c0_9, %c0_10] : memref<1x1xf32, #tpu.memory_space<vmem>>, vector<1x1xf32>
    %21 = vector.broadcast %20 : vector<1x1xf32> to vector<1x256xf32>
    %22 = arith.addf %19, %21 : vector<1x256xf32>
    %c0_11 = arith.constant 0 : index
    %c0_12 = arith.constant 0 : index
    %23 = vector.load %arg6[%c0_11, %c0_12] : memref<1x256xf32, #tpu.memory_space<vmem>>, vector<1x256xf32>
    tpu.vector_store %arg6[%c0_11, %c0_12], %22 {strides = array<i32>} : memref<1x256xf32, #tpu.memory_space<vmem>>, vector<1x256xf32>,
    return
  }
  func.func @transform_0(%arg0: i32) -> (i32, i32) {
    %c0_i32 = arith.constant 0 : i32
    %c0_i32_0 = arith.constant 0 : i32
    return %arg0, %c0_i32 : i32, i32
  }
  func.func @transform_1(%arg0: i32) -> (i32, i32) {
    %c0_i32 = arith.constant 0 : i32
    %c0_i32_0 = arith.constant 0 : i32
    %c0_i32_1 = arith.constant 0 : i32
    return %c0_i32, %c0_i32_0 : i32, i32
  }
  func.func @transform_2(%arg0: i32) -> (i32, i32) {
    %c0_i32 = arith.constant 0 : i32
    %c0_i32_0 = arith.constant 0 : i32
    %c0_i32_1 = arith.constant 0 : i32
    return %c0_i32, %c0_i32_0 : i32, i32
  }
  func.func @transform_3(%arg0: i32) -> (i32, i32) {
    %c0_i32 = arith.constant 0 : i32
    %c0_i32_0 = arith.constant 0 : i32
    %c0_i32_1 = arith.constant 0 : i32
    return %c0_i32, %c0_i32_0 : i32, i32
  }
  func.func @transform_4(%arg0: i32) -> (i32, i32) {
    %c0_i32 = arith.constant 0 : i32
    %c0_i32_0 = arith.constant 0 : i32
    %c0_i32_1 = arith.constant 0 : i32
    return %c0_i32, %c0_i32_0 : i32, i32
  }
  func.func @transform_5(%arg0: i32) -> (i32, i32) {
    %c0_i32 = arith.constant 0 : i32
    %c0_i32_0 = arith.constant 0 : i32
    return %c0_i32, %arg0 : i32, i32
  }
}

</mosaic_0001>

<llo_original>
// kernel: tpu_custom_call.1
$region0: #{tpu_custom_call.1}
  #allocation0 [shape = 'u32[]', space=smem, size = 0x4, offset = 0x4, fixed_abs, tag = 'smem constant byte address 0x4 - core index']
  #allocation1 [shape = 'u32[144,128]{1,0:T(1,128)}', space=vmem, size = 0x12000, scoped, tag = 'internal scratch']
  #allocation2 [shape = 'f32[1,1]{1,0:T(1,128)S(1)}', space=vmem, size = 0x200, scoped, tag = 'scoped memory for tpu_custom_call.1']
  %s0 = inlined_call_operand.hbm [shape: bf16[256,1024], index: 0, kind: input, shape index: {}]
  %s1 = inlined_call_operand.hbm [shape: bf16[1024,512], index: 1, kind: input, shape index: {}]
  %s2 = inlined_call_operand.vmem [shape: f32[1,512], index: 2, kind: input, shape index: {}]
  %s3 = inlined_call_operand.vmem [shape: f32[1,256], index: 3, kind: input, shape index: {}]
  %s4 = inlined_call_operand.<no memory space> [shape: f32[1,1], index: 4, kind: input, shape index: {}]
  %s5 = inlined_call_operand.hbm [shape: f32[1,256], index: 5, kind: output, shape index: {}]
  %s6 = sld [smem:[#allocation0]]
  $region38: #{tpu_custom_call.1} parent=0
    _
  %s8 = ssub.s32 1, %s6
  %s9 = scalar_select 0, %s8, %s6
  %v10 = vstv %s4
  %11 = vst [vmem:[#allocation2] sm:$0x1] %v10
  $region1: #{tpu_custom_call.1} parent=0
    #allocation3 [shape = 'u8[524288]{0}', space=vmem, size = 0x80000, scoped, tag = 'input window, operand 0, single buffered']
    #allocation4 [shape = 's32[1]{0}', space=sflag, size = 0x4, scoped, tag = 'scoped memory for tpu_custom_call.1']
    #allocation5 [shape = 's32[1]{0}', space=sflag, size = 0x4, scoped, tag = 'scoped memory for tpu_custom_call.1']
    #allocation6 [shape = 'u8[1048576]{0}', space=vmem, size = 0x100000, scoped, tag = 'input window, operand 1, single buffered']
    #allocation7 [shape = 's32[1]{0}', space=sflag, size = 0x4, scoped, tag = 'scoped memory for tpu_custom_call.1']
    #allocation8 [shape = 'u8[1024]{0}', space=vmem, size = 0x400, scoped, tag = 'output window, operand 0, single buffered']
    %12 = vsyncpa [#allocation4], 0
    %13 = vsyncpa [#allocation7], 0
    %14 = vsyncpa [#allocation5], 0
    // Predicated region
    $region2: #{tpu_custom_call.1} parent=1 // pred_check
      _
    $region3: #{tpu_custom_call.1} parent=1 // pred_check_branch
      %16 = sbr.rel (0) target = $region5
    $region4: #{tpu_custom_call.1} parent=1 // pred_region
      %s18 = ssub.s32 16384, 16384
      %19 = vsyncadd [#allocation4], %s18
      %s20 = sshll.u32 [#allocation3], 4
      %s21 = int_to_ptr.vmem [resolvable:$true] %s20
      %26 = dma.hbm_to_vmem [thread:$0]  %s0, 16384, %s21, [#allocation4], 512, 512, 32
    $region5: #{tpu_custom_call.1} parent=1 // pred_fallthru
      _
    // Predicated region
    $region6: #{tpu_custom_call.1} parent=1 // pred_check
      _
    $region7: #{tpu_custom_call.1} parent=1 // pred_check_branch
      %28 = sbr.rel (0) target = $region9
    $region8: #{tpu_custom_call.1} parent=1 // pred_region
      %s30 = ssub.s32 32768, 32768
      %31 = vsyncadd [#allocation7], %s30
      %s32 = sshll.u32 [#allocation6], 4
      %s33 = int_to_ptr.vmem [resolvable:$true] %s32
      %38 = dma.hbm_to_vmem [thread:$0]  %s1, 32768, %s33, [#allocation7], 256, 256, 16
    $region9: #{tpu_custom_call.1} parent=1 // pred_fallthru
      _
    // Predicated region
    $region10: #{tpu_custom_call.1} parent=1 // pred_check
      _
    $region11: #{tpu_custom_call.1} parent=1 // pred_check_branch
      %40 = sbr.rel (0) target = $region13
    $region12: #{tpu_custom_call.1} parent=1 // pred_region
      _
    $region13: #{tpu_custom_call.1} parent=1 // pred_fallthru
      _
    // Predicated region
    $region14: #{tpu_custom_call.1} parent=1 // pred_check
      _
    $region15: #{tpu_custom_call.1} parent=1 // pred_check_branch
      %42 = sbr.rel (0) target = $region17
    $region16: #{tpu_custom_call.1} parent=1 // pred_region
      _
    $region17: #{tpu_custom_call.1} parent=1 // pred_fallthru
      _
    // Predicated region
    $region18: #{tpu_custom_call.1} parent=1 // pred_check
      _
    $region19: #{tpu_custom_call.1} parent=1 // pred_check_branch
      %44 = sbr.rel (0) target = $region21
    $region20: #{tpu_custom_call.1} parent=1 // pred_region
      _
    $region21: #{tpu_custom_call.1} parent=1 // pred_fallthru
      _
    // Predicated region
    $region22: #{tpu_custom_call.1} parent=1 // pred_check
      _
    $region23: #{tpu_custom_call.1} parent=1 // pred_check_branch
      %46 = sbr.rel (0) target = $region25
    $region24: #{tpu_custom_call.1} parent=1 // pred_region
      %47 = dma.done [#allocation4], 16384
    $region25: #{tpu_custom_call.1} parent=1 // pred_fallthru
      _
    // Predicated region
    $region26: #{tpu_custom_call.1} parent=1 // pred_check
      _
    $region27: #{tpu_custom_call.1} parent=1 // pred_check_branch
      %49 = sbr.rel (0) target = $region29
    $region28: #{tpu_custom_call.1} parent=1 // pred_region
      %50 = dma.done [#allocation7], 32768
    $region29: #{tpu_custom_call.1} parent=1 // pred_fallthru
      _
    %v51 = vld [vmem:[#allocation3] sm:$0xff]
    %v52 = vld [vmem:[#allocation3 + $0x8] sm:$0xff]
    %v53 = vld [vmem:[#allocation3 + $0x10] sm:$0xff]
    %v54 = vld [vmem:[#allocation3 + $0x18] sm:$0xff]
    %v55 = vld [vmem:[#allocation3 + $0x20] sm:$0xff]
    %v56 = vld [vmem:[#allocation3 + $0x28] sm:$0xff]
    %v57 = vld [vmem:[#allocation3 + $0x30] sm:$0xff]
    %v58 = vld [vmem:[#allocation3 + $0x38] sm:$0xff]
    %v59 = vld [vmem:[#allocation3 + $0x40] sm:$0xff]
    %v60 = vld [vmem:[#allocation3 + $0x48] sm:$0xff]
    %v61 = vld [vmem:[#allocation3 + $0x50] sm:$0xff]
    %v62 = vld [vmem:[#allocation3 + $0x58] sm:$0xff]
    %v63 = vld [vmem:[#allocation3 + $0x60] sm:$0xff]
    %v64 = vld [vmem:[#allocation3 + $0x68] sm:$0xff]
    %v65 = vld [vmem:[#allocation3 + $0x70] sm:$0xff]
    %v66 = vld [vmem:[#allocation3 + $0x78] sm:$0xff]
    %v67 = vld [vmem:[#allocation3 + $0x80] sm:$0xff]
    %v68 = vld [vmem:[#allocation3 + $0x88] sm:$0xff]
    %v69 = vld [vmem:[#allocation3 + $0x90] sm:$0xff]
    %v70 = vld [vmem:[#allocation3 + $0x98] sm:$0xff]
    %v71 = vld [vmem:[#allocation3 + $0xa0] sm:$0xff]
    %v72 = vld [vmem:[#allocation3 + $0xa8] sm:$0xff]
    %v73 = vld [vmem:[#allocation3 + $0xb0] sm:$0xff]
    %v74 = vld [vmem:[#allocation3 + $0xb8] sm:$0xff]
    %v75 = vld [vmem:[#allocation3 + $0xc0] sm:$0xff]
    %v76 = vld [vmem:[#allocation3 + $0xc8] sm:$0xff]
    %v77 = vld [vmem:[#allocation3 + $0xd0] sm:$0xff]
    %v78 = vld [vmem:[#allocation3 + $0xd8] sm:$0xff]
    %v79 = vld [vmem:[#allocation3 + $0xe0] sm:$0xff]
    %v80 = vld [vmem:[#allocation3 + $0xe8] sm:$0xff]
    %v81 = vld [vmem:[#allocation3 + $0xf0] sm:$0xff]
    %v82 = vld [vmem:[#allocation3 + $0xf8] sm:$0xff]
    %v83 = vld [vmem:[#allocation3 + $0x100] sm:$0xff]
    %v84 = vld [vmem:[#allocation3 + $0x108] sm:$0xff]
    %v85 = vld [vmem:[#allocation3 + $0x110] sm:$0xff]
    %v86 = vld [vmem:[#allocation3 + $0x118] sm:$0xff]
    %v87 = vld [vmem:[#allocation3 + $0x120] sm:$0xff]
    %v88 = vld [vmem:[#allocation3 + $0x128] sm:$0xff]
    %v89 = vld [vmem:[#allocation3 + $0x130] sm:$0xff]
    %v90 = vld [vmem:[#allocation3 + $0x138] sm:$0xff]
    %v91 = vld [vmem:[#allocation3 + $0x140] sm:$0xff]
    %v92 = vld [vmem:[#allocation3 + $0x148] sm:$0xff]
    %v93 = vld [vmem:[#allocation3 + $0x150] sm:$0xff]
    %v94 = vld [vmem:[#allocation3 + $0x158] sm:$0xff]
    %v95 = vld [vmem:[#allocation3 + $0x160] sm:$0xff]
    %v96 = vld [vmem:[#allocation3 + $0x168] sm:$0xff]
    %v97 = vld [vmem:[#allocation3 + $0x170] sm:$0xff]
    %v98 = vld [vmem:[#allocation3 + $0x178] sm:$0xff]
    %v99 = vld [vmem:[#allocation3 + $0x180] sm:$0xff]
    %v100 = vld [vmem:[#allocation3 + $0x188] sm:$0xff]
    %v101 = vld [vmem:[#allocation3 + $0x190] sm:$0xff]
    %v102 = vld [vmem:[#allocation3 + $0x198] sm:$0xff]
    %v103 = vld [vmem:[#allocation3 + $0x1a0] sm:$0xff]
    %v104 = vld [vmem:[#allocation3 + $0x1a8] sm:$0xff]
    %v105 = vld [vmem:[#allocation3 + $0x1b0] sm:$0xff]
    %v106 = vld [vmem:[#allocation3 + $0x1b8] sm:$0xff]
    %v107 = vld [vmem:[#allocation3 + $0x1c0] sm:$0xff]
    %v108 = vld [vmem:[#allocation3 + $0x1c8] sm:$0xff]
    %v109 = vld [vmem:[#allocation3 + $0x1d0] sm:$0xff]
    %v110 = vld [vmem:[#allocation3 + $0x1d8] sm:$0xff]
    %v111 = vld [vmem:[#allocation3 + $0x1e0] sm:$0xff]
    %v112 = vld [vmem:[#allocation3 + $0x1e8] sm:$0xff]
    %v113 = vld [vmem:[#allocation3 + $0x1f0] sm:$0xff]
    %v114 = vld [vmem:[#allocation3 + $0x1f8] sm:$0xff]
    %v115 = vld [vmem:[#allocation3 + $0x200] sm:$0xff]
    %v116 = vld [vmem:[#allocation3 + $0x208] sm:$0xff]
    %v117 = vld [vmem:[#allocation3 + $0x210] sm:$0xff]
    %v118 = vld [vmem:[#allocation3 + $0x218] sm:$0xff]
    %v119 = vld [vmem:[#allocation3 + $0x220] sm:$0xff]
    %v120 = vld [vmem:[#allocation3 + $0x228] sm:$0xff]
    %v121 = vld [vmem:[#allocation3 + $0x230] sm:$0xff]
    %v122 = vld [vmem:[#allocation3 + $0x238] sm:$0xff]
    %v123 = vld [vmem:[#allocation3 + $0x240] sm:$0xff]
    %v124 = vld [vmem:[#allocation3 + $0x248] sm:$0xff]
    %v125 = vld [vmem:[#allocation3 + $0x250] sm:$0xff]
    %v126 = vld [vmem:[#allocation3 + $0x258] sm:$0xff]
    %v127 = vld [vmem:[#allocation3 + $0x260] sm:$0xff]
    %v128 = vld [vmem:[#allocation3 + $0x268] sm:$0xff]
    %v129 = vld [vmem:[#allocation3 + $0x270] sm:$0xff]
    %v130 = vld [vmem:[#allocation3 + $0x278] sm:$0xff]
    %v131 = vld [vmem:[#allocation3 + $0x280] sm:$0xff]
    %v132 = vld [vmem:[#allocation3 + $0x288] sm:$0xff]
    %v133 = vld [vmem:[#allocation3 + $0x290] sm:$0xff]
    %v134 = vld [vmem:[#allocation3 + $0x298] sm:$0xff]
    %v135 = vld [vmem:[#allocation3 + $0x2a0] sm:$0xff]
    %v136 = vld [vmem:[#allocation3 + $0x2a8] sm:$0xff]
    %v137 = vld [vmem:[#allocation3 + $0x2b0] sm:$0xff]
    %v138 = vld [vmem:[#allocation3 + $0x2b8] sm:$0xff]
    %v139 = vld [vmem:[#allocation3 + $0x2c0] sm:$0xff]
    %v140 = vld [vmem:[#allocation3 + $0x2c8] sm:$0xff]
    %v141 = vld [vmem:[#allocation3 + $0x2d0] sm:$0xff]
    %v142 = vld [vmem:[#allocation3 + $0x2d8] sm:$0xff]
    %v143 = vld [vmem:[#allocation3 + $0x2e0] sm:$0xff]
    %v144 = vld [vmem:[#allocation3 + $0x2e8] sm:$0xff]
    %v145 = vld [vmem:[#allocation3 + $0x2f0] sm:$0xff]
    %v146 = vld [vmem:[#allocation3 + $0x2f8] sm:$0xff]
    %v147 = vld [vmem:[#allocation3 + $0x300] sm:$0xff]
    %v148 = vld [vmem:[#allocation3 + $0x308] sm:$0xff]
    %v149 = vld [vmem:[#allocation3 + $0x310] sm:$0xff]
    %v150 = vld [vmem:[#allocation3 + $0x318] sm:$0xff]
    %v151 = vld [vmem:[#allocation3 + $0x320] sm:$0xff]
    %v152 = vld [vmem:[#allocation3 + $0x328] sm:$0xff]
    %v153 = vld [vmem:[#allocation3 + $0x330] sm:$0xff]
    %v154 = vld [vmem:[#allocation3 + $0x338] sm:$0xff]
    %v155 = vld [vmem:[#allocation3 + $0x340] sm:$0xff]
    %v156 = vld [vmem:[#allocation3 + $0x348] sm:$0xff]
    %v157 = vld [vmem:[#allocation3 + $0x350] sm:$0xff]
    %v158 = vld [vmem:[#allocation3 + $0x358] sm:$0xff]
    %v159 = vld [vmem:[#allocation3 + $0x360] sm:$0xff]
    %v160 = vld [vmem:[#allocation3 + $0x368] sm:$0xff]
    %v161 = vld [vmem:[#allocation3 + $0x370] sm:$0xff]
    %v162 = vld [vmem:[#allocation3 + $0x378] sm:$0xff]
    %v163 = vld [vmem:[#allocation3 + $0x380] sm:$0xff]
    %v164 = vld [vmem:[#allocation3 + $0x388] sm:$0xff]
    %v165 = vld [vmem:[#allocation3 + $0x390] sm:$0xff]
    %v166 = vld [vmem:[#allocation3 + $0x398] sm:$0xff]
    %v167 = vld [vmem:[#allocation3 + $0x3a0] sm:$0xff]
    %v168 = vld [vmem:[#allocation3 + $0x3a8] sm:$0xff]
    %v169 = vld [vmem:[#allocation3 + $0x3b0] sm:$0xff]
    %v170 = vld [vmem:[#allocation3 + $0x3b8] sm:$0xff]
    %v171 = vld [vmem:[#allocation3 + $0x3c0] sm:$0xff]
    %v172 = vld [vmem:[#allocation3 + $0x3c8] sm:$0xff]
    %v173 = vld [vmem:[#allocation3 + $0x3d0] sm:$0xff]
    %v174 = vld [vmem:[#allocation3 + $0x3d8] sm:$0xff]
    %v175 = vld [vmem:[#allocation3 + $0x3e0] sm:$0xff]
    %v176 = vld [vmem:[#allocation3 + $0x3e8] sm:$0xff]
    %v177 = vld [vmem:[#allocation3 + $0x3f0] sm:$0xff]
    %v178 = vld [vmem:[#allocation3 + $0x3f8] sm:$0xff]
    %v179 = vld [vmem:[#allocation6] sm:$0xff]
    %v180 = vld [vmem:[#allocation6 + $0x8] sm:$0xff]
    %v181 = vld [vmem:[#allocation6 + $0x10] sm:$0xff]
    %v182 = vld [vmem:[#allocation6 + $0x18] sm:$0xff]
    %v183 = vld [vmem:[#allocation6 + $0x20] sm:$0xff]
    %v184 = vld [vmem:[#allocation6 + $0x28] sm:$0xff]
    %v185 = vld [vmem:[#allocation6 + $0x30] sm:$0xff]
    %v186 = vld [vmem:[#allocation6 + $0x38] sm:$0xff]
    %v187 = vld [vmem:[#allocation6 + $0x40] sm:$0xff]
    %v188 = vld [vmem:[#allocation6 + $0x48] sm:$0xff]
    %v189 = vld [vmem:[#allocation6 + $0x50] sm:$0xff]
    %v190 = vld [vmem:[#allocation6 + $0x58] sm:$0xff]
    %v191 = vld [vmem:[#allocation6 + $0x60] sm:$0xff]
    %v192 = vld [vmem:[#allocation6 + $0x68] sm:$0xff]
    %v193 = vld [vmem:[#allocation6 + $0x70] sm:$0xff]
    %v194 = vld [vmem:[#allocation6 + $0x78] sm:$0xff]
    %v195 = vld [vmem:[#allocation6 + $0x80] sm:$0xff]
    %v196 = vld [vmem:[#allocation6 + $0x88] sm:$0xff]
    %v197 = vld [vmem:[#allocation6 + $0x90] sm:$0xff]
    %v198 = vld [vmem:[#allocation6 + $0x98] sm:$0xff]
    %v199 = vld [vmem:[#allocation6 + $0xa0] sm:$0xff]
    %v200 = vld [vmem:[#allocation6 + $0xa8] sm:$0xff]
    %v201 = vld [vmem:[#allocation6 + $0xb0] sm:$0xff]
    %v202 = vld [vmem:[#allocation6 + $0xb8] sm:$0xff]
    %v203 = vld [vmem:[#allocation6 + $0xc0] sm:$0xff]
    %v204 = vld [vmem:[#allocation6 + $0xc8] sm:$0xff]
    %v205 = vld [vmem:[#allocation6 + $0xd0] sm:$0xff]
    %v206 = vld [vmem:[#allocation6 + $0xd8] sm:$0xff]
    %v207 = vld [vmem:[#allocation6 + $0xe0] sm:$0xff]
    %v208 = vld [vmem:[#allocation6 + $0xe8] sm:$0xff]
    %v209 = vld [vmem:[#allocation6 + $0xf0] sm:$0xff]
    %v210 = vld [vmem:[#allocation6 + $0xf8] sm:$0xff]
    %v211 = vld [vmem:[#allocation6 + $0x100] sm:$0xff]
    %v212 = vld [vmem:[#allocation6 + $0x108] sm:$0xff]
    %v213 = vld [vmem:[#allocation6 + $0x110] sm:$0xff]
    %v214 = vld [vmem:[#allocation6 + $0x118] sm:$0xff]
    %v215 = vld [vmem:[#allocation6 + $0x120] sm:$0xff]
    %v216 = vld [vmem:[#allocation6 + $0x128] sm:$0xff]
    %v217 = vld [vmem:[#allocation6 + $0x130] sm:$0xff]
    %v218 = vld [vmem:[#allocation6 + $0x138] sm:$0xff]
    %v219 = vld [vmem:[#allocation6 + $0x140] sm:$0xff]
    %v220 = vld [vmem:[#allocation6 + $0x148] sm:$0xff]
    %v221 = vld [vmem:[#allocation6 + $0x150] sm:$0xff]
    %v222 = vld [vmem:[#allocation6 + $0x158] sm:$0xff]
    %v223 = vld [vmem:[#allocation6 + $0x160] sm:$0xff]
    %v224 = vld [vmem:[#allocation6 + $0x168] sm:$0xff]
    %v225 = vld [vmem:[#allocation6 + $0x170] sm:$0xff]
    %v226 = vld [vmem:[#allocation6 + $0x178] sm:$0xff]
    %v227 = vld [vmem:[#allocation6 + $0x180] sm:$0xff]
    %v228 = vld [vmem:[#allocation6 + $0x188] sm:$0xff]
    %v229 = vld [vmem:[#allocation6 + $0x190] sm:$0xff]
    %v230 = vld [vmem:[#allocation6 + $0x198] sm:$0xff]
    %v231 = vld [vmem:[#allocation6 + $0x1a0] sm:$0xff]
    %v232 = vld [vmem:[#allocation6 + $0x1a8] sm:$0xff]
    %v233 = vld [vmem:[#allocation6 + $0x1b0] sm:$0xff]
    %v234 = vld [vmem:[#allocation6 + $0x1b8] sm:$0xff]
    %v235 = vld [vmem:[#allocation6 + $0x1c0] sm:$0xff]
    %v236 = vld [vmem:[#allocation6 + $0x1c8] sm:$0xff]
    %v237 = vld [vmem:[#allocation6 + $0x1d0] sm:$0xff]
    %v238 = vld [vmem:[#allocation6 + $0x1d8] sm:$0xff]
    %v239 = vld [vmem:[#allocation6 + $0x1e0] sm:$0xff]
    %v240 = vld [vmem:[#allocation6 + $0x1e8] sm:$0xff]
    %v241 = vld [vmem:[#allocation6 + $0x1f0] sm:$0xff]
    %v242 = vld [vmem:[#allocation6 + $0x1f8] sm:$0xff]
    %v243 = vld [vmem:[#allocation6 + $0x200] sm:$0xff]
    %v244 = vld [vmem:[#allocation6 + $0x208] sm:$0xff]
    %v245 = vld [vmem:[#allocation6 + $0x210] sm:$0xff]
    %v246 = vld [vmem:[#allocation6 + $0x218] sm:$0xff]
    %v247 = vld [vmem:[#allocation6 + $0x220] sm:$0xff]
    %v248 = vld [vmem:[#allocation6 + $0x228] sm:$0xff]
    %v249 = vld [vmem:[#allocation6 + $0x230] sm:$0xff]
    %v250 = vld [vmem:[#allocation6 + $0x238] sm:$0xff]
    %v251 = vld [vmem:[#allocation6 + $0x240] sm:$0xff]
    %v252 = vld [vmem:[#allocation6 + $0x248] sm:$0xff]
    %v253 = vld [vmem:[#allocation6 + $0x250] sm:$0xff]
    %v254 = vld [vmem:[#allocation6 + $0x258] sm:$0xff]
    %v255 = vld [vmem:[#allocation6 + $0x260] sm:$0xff]
    %v256 = vld [vmem:[#allocation6 + $0x268] sm:$0xff]
    %v257 = vld [vmem:[#allocation6 + $0x270] sm:$0xff]
    %v258 = vld [vmem:[#allocation6 + $0x278] sm:$0xff]
    %v259 = vld [vmem:[#allocation6 + $0x280] sm:$0xff]
    %v260 = vld [vmem:[#allocation6 + $0x288] sm:$0xff]
    %v261 = vld [vmem:[#allocation6 + $0x290] sm:$0xff]
    %v262 = vld [vmem:[#allocation6 + $0x298] sm:$0xff]
    %v263 = vld [vmem:[#allocation6 + $0x2a0] sm:$0xff]
    %v264 = vld [vmem:[#allocation6 + $0x2a8] sm:$0xff]
    %v265 = vld [vmem:[#allocation6 + $0x2b0] sm:$0xff]
    %v266 = vld [vmem:[#allocation6 + $0x2b8] sm:$0xff]
    %v267 = vld [vmem:[#allocation6 + $0x2c0] sm:$0xff]
    %v268 = vld [vmem:[#allocation6 + $0x2c8] sm:$0xff]
    %v269 = vld [vmem:[#allocation6 + $0x2d0] sm:$0xff]
    %v270 = vld [vmem:[#allocation6 + $0x2d8] sm:$0xff]
    %v271 = vld [vmem:[#allocation6 + $0x2e0] sm:$0xff]
    %v272 = vld [vmem:[#allocation6 + $0x2e8] sm:$0xff]
    %v273 = vld [vmem:[#allocation6 + $0x2f0] sm:$0xff]
    %v274 = vld [vmem:[#allocation6 + $0x2f8] sm:$0xff]
    %v275 = vld [vmem:[#allocation6 + $0x300] sm:$0xff]
    %v276 = vld [vmem:[#allocation6 + $0x308] sm:$0xff]
    %v277 = vld [vmem:[#allocation6 + $0x310] sm:$0xff]
    %v278 = vld [vmem:[#allocation6 + $0x318] sm:$0xff]
    %v279 = vld [vmem:[#allocation6 + $0x320] sm:$0xff]
    %v280 = vld [vmem:[#allocation6 + $0x328] sm:$0xff]
    %v281 = vld [vmem:[#allocation6 + $0x330] sm:$0xff]
    %v282 = vld [vmem:[#allocation6 + $0x338] sm:$0xff]
    %v283 = vld [vmem:[#allocation6 + $0x340] sm:$0xff]
    %v284 = vld [vmem:[#allocation6 + $0x348] sm:$0xff]
    %v285 = vld [vmem:[#allocation6 + $0x350] sm:$0xff]
    %v286 = vld [vmem:[#allocation6 + $0x358] sm:$0xff]
    %v287 = vld [vmem:[#allocation6 + $0x360] sm:$0xff]
    %v288 = vld [vmem:[#allocation6 + $0x368] sm:$0xff]
    %v289 = vld [vmem:[#allocation6 + $0x370] sm:$0xff]
    %v290 = vld [vmem:[#allocation6 + $0x378] sm:$0xff]
    %v291 = vld [vmem:[#allocation6 + $0x380] sm:$0xff]
    %v292 = vld [vmem:[#allocation6 + $0x388] sm:$0xff]
    %v293 = vld [vmem:[#allocation6 + $0x390] sm:$0xff]
    %v294 = vld [vmem:[#allocation6 + $0x398] sm:$0xff]
    %v295 = vld [vmem:[#allocation6 + $0x3a0] sm:$0xff]
    %v296 = vld [vmem:[#allocation6 + $0x3a8] sm:$0xff]
    %v297 = vld [vmem:[#allocation6 + $0x3b0] sm:$0xff]
    %v298 = vld [vmem:[#allocation6 + $0x3b8] sm:$0xff]
    %v299 = vld [vmem:[#allocation6 + $0x3c0] sm:$0xff]
    %v300 = vld [vmem:[#allocation6 + $0x3c8] sm:$0xff]
    %v301 = vld [vmem:[#allocation6 + $0x3d0] sm:$0xff]
    %v302 = vld [vmem:[#allocation6 + $0x3d8] sm:$0xff]
    %v303 = vld [vmem:[#allocation6 + $0x3e0] sm:$0xff]
    %v304 = vld [vmem:[#allocation6 + $0x3e8] sm:$0xff]
    %v305 = vld [vmem:[#allocation6 + $0x3f0] sm:$0xff]
    %v306 = vld [vmem:[#allocation6 + $0x3f8] sm:$0xff]
    %v307 = vld [vmem:[#allocation6 + $0x400] sm:$0xff]
    %v308 = vld [vmem:[#allocation6 + $0x408] sm:$0xff]
    %v309 = vld [vmem:[#allocation6 + $0x410] sm:$0xff]
    %v310 = vld [vmem:[#allocation6 + $0x418] sm:$0xff]
    %v311 = vld [vmem:[#allocation6 + $0x420] sm:$0xff]
    %v312 = vld [vmem:[#allocation6 + $0x428] sm:$0xff]
    %v313 = vld [vmem:[#allocation6 + $0x430] sm:$0xff]
    %v314 = vld [vmem:[#allocation6 + $0x438] sm:$0xff]
    %v315 = vld [vmem:[#allocation6 + $0x440] sm:$0xff]
    %v316 = vld [vmem:[#allocation6 + $0x448] sm:$0xff]
    %v317 = vld [vmem:[#allocation6 + $0x450] sm:$0xff]
    %v318 = vld [vmem:[#allocation6 + $0x458] sm:$0xff]
    %v319 = vld [vmem:[#allocation6 + $0x460] sm:$0xff]
    %v320 = vld [vmem:[#allocation6 + $0x468] sm:$0xff]
    %v321 = vld [vmem:[#allocation6 + $0x470] sm:$0xff]
    %v322 = vld [vmem:[#allocation6 + $0x478] sm:$0xff]
    %v323 = vld [vmem:[#allocation6 + $0x480] sm:$0xff]
    %v324 = vld [vmem:[#allocation6 + $0x488] sm:$0xff]
    %v325 = vld [vmem:[#allocation6 + $0x490] sm:$0xff]
    %v326 = vld [vmem:[#allocation6 + $0x498] sm:$0xff]
    %v327 = vld [vmem:[#allocation6 + $0x4a0] sm:$0xff]
    %v328 = vld [vmem:[#allocation6 + $0x4a8] sm:$0xff]
    %v329 = vld [vmem:[#allocation6 + $0x4b0] sm:$0xff]
    %v330 = vld [vmem:[#allocation6 + $0x4b8] sm:$0xff]
    %v331 = vld [vmem:[#allocation6 + $0x4c0] sm:$0xff]
    %v332 = vld [vmem:[#allocation6 + $0x4c8] sm:$0xff]
    %v333 = vld [vmem:[#allocation6 + $0x4d0] sm:$0xff]
    %v334 = vld [vmem:[#allocation6 + $0x4d8] sm:$0xff]
    %v335 = vld [vmem:[#allocation6 + $0x4e0] sm:$0xff]
    %v336 = vld [vmem:[#allocation6 + $0x4e8] sm:$0xff]
    %v337 = vld [vmem:[#allocation6 + $0x4f0] sm:$0xff]
    %v338 = vld [vmem:[#allocation6 + $0x4f8] sm:$0xff]
    %v339 = vld [vmem:[#allocation6 + $0x500] sm:$0xff]
    %v340 = vld [vmem:[#allocation6 + $0x508] sm:$0xff]
    %v341 = vld [vmem:[#allocation6 + $0x510] sm:$0xff]
    %v342 = vld [vmem:[#allocation6 + $0x518] sm:$0xff]
    %v343 = vld [vmem:[#allocation6 + $0x520] sm:$0xff]
    %v344 = vld [vmem:[#allocation6 + $0x528] sm:$0xff]
    %v345 = vld [vmem:[#allocation6 + $0x530] sm:$0xff]
    %v346 = vld [vmem:[#allocation6 + $0x538] sm:$0xff]
    %v347 = vld [vmem:[#allocation6 + $0x540] sm:$0xff]
    %v348 = vld [vmem:[#allocation6 + $0x548] sm:$0xff]
    %v349 = vld [vmem:[#allocation6 + $0x550] sm:$0xff]
    %v350 = vld [vmem:[#allocation6 + $0x558] sm:$0xff]
    %v351 = vld [vmem:[#allocation6 + $0x560] sm:$0xff]
    %v352 = vld [vmem:[#allocation6 + $0x568] sm:$0xff]
    %v353 = vld [vmem:[#allocation6 + $0x570] sm:$0xff]
    %v354 = vld [vmem:[#allocation6 + $0x578] sm:$0xff]
    %v355 = vld [vmem:[#allocation6 + $0x580] sm:$0xff]
    %v356 = vld [vmem:[#allocation6 + $0x588] sm:$0xff]
    %v357 = vld [vmem:[#allocation6 + $0x590] sm:$0xff]
    %v358 = vld [vmem:[#allocation6 + $0x598] sm:$0xff]
    %v359 = vld [vmem:[#allocation6 + $0x5a0] sm:$0xff]
    %v360 = vld [vmem:[#allocation6 + $0x5a8] sm:$0xff]
    %v361 = vld [vmem:[#allocation6 + $0x5b0] sm:$0xff]
    %v362 = vld [vmem:[#allocation6 + $0x5b8] sm:$0xff]
    %v363 = vld [vmem:[#allocation6 + $0x5c0] sm:$0xff]
    %v364 = vld [vmem:[#allocation6 + $0x5c8] sm:$0xff]
    %v365 = vld [vmem:[#allocation6 + $0x5d0] sm:$0xff]
    %v366 = vld [vmem:[#allocation6 + $0x5d8] sm:$0xff]
    %v367 = vld [vmem:[#allocation6 + $0x5e0] sm:$0xff]
    %v368 = vld [vmem:[#allocation6 + $0x5e8] sm:$0xff]
    %v369 = vld [vmem:[#allocation6 + $0x5f0] sm:$0xff]
    %v370 = vld [vmem:[#allocation6 + $0x5f8] sm:$0xff]
    %v371 = vld [vmem:[#allocation6 + $0x600] sm:$0xff]
    %v372 = vld [vmem:[#allocation6 + $0x608] sm:$0xff]
    %v373 = vld [vmem:[#allocation6 + $0x610] sm:$0xff]
    %v374 = vld [vmem:[#allocation6 + $0x618] sm:$0xff]
    %v375 = vld [vmem:[#allocation6 + $0x620] sm:$0xff]
    %v376 = vld [vmem:[#allocation6 + $0x628] sm:$0xff]
    %v377 = vld [vmem:[#allocation6 + $0x630] sm:$0xff]
    %v378 = vld [vmem:[#allocation6 + $0x638] sm:$0xff]
    %v379 = vld [vmem:[#allocation6 + $0x640] sm:$0xff]
    %v380 = vld [vmem:[#allocation6 + $0x648] sm:$0xff]
    %v381 = vld [vmem:[#allocation6 + $0x650] sm:$0xff]
    %v382 = vld [vmem:[#allocation6 + $0x658] sm:$0xff]
    %v383 = vld [vmem:[#allocation6 + $0x660] sm:$0xff]
    %v384 = vld [vmem:[#allocation6 + $0x668] sm:$0xff]
    %v385 = vld [vmem:[#allocation6 + $0x670] sm:$0xff]
    %v386 = vld [vmem:[#allocation6 + $0x678] sm:$0xff]
    %v387 = vld [vmem:[#allocation6 + $0x680] sm:$0xff]
    %v388 = vld [vmem:[#allocation6 + $0x688] sm:$0xff]
    %v389 = vld [vmem:[#allocation6 + $0x690] sm:$0xff]
    %v390 = vld [vmem:[#allocation6 + $0x698] sm:$0xff]
    %v391 = vld [vmem:[#allocation6 + $0x6a0] sm:$0xff]
    %v392 = vld [vmem:[#allocation6 + $0x6a8] sm:$0xff]
    %v393 = vld [vmem:[#allocation6 + $0x6b0] sm:$0xff]
    %v394 = vld [vmem:[#allocation6 + $0x6b8] sm:$0xff]
    %v395 = vld [vmem:[#allocation6 + $0x6c0] sm:$0xff]
    %v396 = vld [vmem:[#allocation6 + $0x6c8] sm:$0xff]
    %v397 = vld [vmem:[#allocation6 + $0x6d0] sm:$0xff]
    %v398 = vld [vmem:[#allocation6 + $0x6d8] sm:$0xff]
    %v399 = vld [vmem:[#allocation6 + $0x6e0] sm:$0xff]
    %v400 = vld [vmem:[#allocation6 + $0x6e8] sm:$0xff]
    %v401 = vld [vmem:[#allocation6 + $0x6f0] sm:$0xff]
    %v402 = vld [vmem:[#allocation6 + $0x6f8] sm:$0xff]
    %v403 = vld [vmem:[#allocation6 + $0x700] sm:$0xff]
    %v404 = vld [vmem:[#allocation6 + $0x708] sm:$0xff]
    %v405 = vld [vmem:[#allocation6 + $0x710] sm:$0xff]
    %v406 = vld [vmem:[#allocation6 + $0x718] sm:$0xff]
    %v407 = vld [vmem:[#allocation6 + $0x720] sm:$0xff]
    %v408 = vld [vmem:[#allocation6 + $0x728] sm:$0xff]
    %v409 = vld [vmem:[#allocation6 + $0x730] sm:$0xff]
    %v410 = vld [vmem:[#allocation6 + $0x738] sm:$0xff]
    %v411 = vld [vmem:[#allocation6 + $0x740] sm:$0xff]
    %v412 = vld [vmem:[#allocation6 + $0x748] sm:$0xff]
    %v413 = vld [vmem:[#allocation6 + $0x750] sm:$0xff]
    %v414 = vld [vmem:[#allocation6 + $0x758] sm:$0xff]
    %v415 = vld [vmem:[#allocation6 + $0x760] sm:$0xff]
    %v416 = vld [vmem:[#allocation6 + $0x768] sm:$0xff]
    %v417 = vld [vmem:[#allocation6 + $0x770] sm:$0xff]
    %v418 = vld [vmem:[#allocation6 + $0x778] sm:$0xff]
    %v419 = vld [vmem:[#allocation6 + $0x780] sm:$0xff]
    %v420 = vld [vmem:[#allocation6 + $0x788] sm:$0xff]
    %v421 = vld [vmem:[#allocation6 + $0x790] sm:$0xff]
    %v422 = vld [vmem:[#allocation6 + $0x798] sm:$0xff]
    %v423 = vld [vmem:[#allocation6 + $0x7a0] sm:$0xff]
    %v424 = vld [vmem:[#allocation6 + $0x7a8] sm:$0xff]
    %v425 = vld [vmem:[#allocation6 + $0x7b0] sm:$0xff]
    %v426 = vld [vmem:[#allocation6 + $0x7b8] sm:$0xff]
    %v427 = vld [vmem:[#allocation6 + $0x7c0] sm:$0xff]
    %v428 = vld [vmem:[#allocation6 + $0x7c8] sm:$0xff]
    %v429 = vld [vmem:[#allocation6 + $0x7d0] sm:$0xff]
    %v430 = vld [vmem:[#allocation6 + $0x7d8] sm:$0xff]
    %v431 = vld [vmem:[#allocation6 + $0x7e0] sm:$0xff]
    %v432 = vld [vmem:[#allocation6 + $0x7e8] sm:$0xff]
    %v433 = vld [vmem:[#allocation6 + $0x7f0] sm:$0xff]
    %v434 = vld [vmem:[#allocation6 + $0x7f8] sm:$0xff]
    %v435 = vld [vmem:[%s2] sm:$0xf]
    %v437 = vlaneseq
    %v438 = vshrl.u32 %v437, 7
    %v439 = vsub.s32 0, %v438
    %v440 = vrot.slane %v435, %v439
    %v441 = vlaneseq
    %v442 = vshrl.u32 %v441, 7
    %v443 = vsub.s32 1, %v442
    %v444 = vrot.slane %v435, %v443
    %v445 = vlaneseq
    %v446 = vshrl.u32 %v445, 7
    %v447 = vsub.s32 2, %v446
    %v448 = vrot.slane %v435, %v447
    %v449 = vlaneseq
    %v450 = vshrl.u32 %v449, 7
    %v451 = vsub.s32 3, %v450
    %v452 = vrot.slane %v435, %v451
    %v585 = vunpack.c.l.b16 %v51
    %v586 = vunpack.c.h.b16 %v51
    %v587 = vunpack.c.l.b16 %v52
    %v588 = vunpack.c.h.b16 %v52
    %v589 = vunpack.c.l.b16 %v53
    %v590 = vunpack.c.h.b16 %v53
    %v591 = vunpack.c.l.b16 %v54
    %v592 = vunpack.c.h.b16 %v54
    %v593 = vunpack.c.l.b16 %v55
    %v594 = vunpack.c.h.b16 %v55
    %v595 = vunpack.c.l.b16 %v56
    %v596 = vunpack.c.h.b16 %v56
    %v597 = vunpack.c.l.b16 %v57
    %v598 = vunpack.c.h.b16 %v57
    %v599 = vunpack.c.l.b16 %v58
    %v600 = vunpack.c.h.b16 %v58
    %v601 = vunpack.c.l.b16 %v59
    %v602 = vunpack.c.h.b16 %v59
    %v603 = vunpack.c.l.b16 %v60
    %v604 = vunpack.c.h.b16 %v60
    %v605 = vunpack.c.l.b16 %v61
    %v606 = vunpack.c.h.b16 %v61
    %v607 = vunpack.c.l.b16 %v62
    %v608 = vunpack.c.h.b16 %v62
    %v609 = vunpack.c.l.b16 %v63
    %v610 = vunpack.c.h.b16 %v63
    %v611 = vunpack.c.l.b16 %v64
    %v612 = vunpack.c.h.b16 %v64
    %v613 = vunpack.c.l.b16 %v65
    %v614 = vunpack.c.h.b16 %v65
    %v615 = vunpack.c.l.b16 %v66
    %v616 = vunpack.c.h.b16 %v66
    %v617 = vunpack.c.l.b16 %v67
    %v618 = vunpack.c.h.b16 %v67
    %v619 = vunpack.c.l.b16 %v68
    %v620 = vunpack.c.h.b16 %v68
    %v621 = vunpack.c.l.b16 %v69
    %v622 = vunpack.c.h.b16 %v69
    %v623 = vunpack.c.l.b16 %v70
    %v624 = vunpack.c.h.b16 %v70
    %v625 = vunpack.c.l.b16 %v71
    %v626 = vunpack.c.h.b16 %v71
    %v627 = vunpack.c.l.b16 %v72
    %v628 = vunpack.c.h.b16 %v72
    %v629 = vunpack.c.l.b16 %v73
    %v630 = vunpack.c.h.b16 %v73
    %v631 = vunpack.c.l.b16 %v74
    %v632 = vunpack.c.h.b16 %v74
    %v633 = vunpack.c.l.b16 %v75
    %v634 = vunpack.c.h.b16 %v75
    %v635 = vunpack.c.l.b16 %v76
    %v636 = vunpack.c.h.b16 %v76
    %v637 = vunpack.c.l.b16 %v77
    %v638 = vunpack.c.h.b16 %v77
    %v639 = vunpack.c.l.b16 %v78
    %v640 = vunpack.c.h.b16 %v78
    %v641 = vunpack.c.l.b16 %v79
    %v642 = vunpack.c.h.b16 %v79
    %v643 = vunpack.c.l.b16 %v80
    %v644 = vunpack.c.h.b16 %v80
    %v645 = vunpack.c.l.b16 %v81
    %v646 = vunpack.c.h.b16 %v81
    %v647 = vunpack.c.l.b16 %v82
    %v648 = vunpack.c.h.b16 %v82
    %v649 = vunpack.c.l.b16 %v83
    %v650 = vunpack.c.h.b16 %v83
    %v651 = vunpack.c.l.b16 %v84
    %v652 = vunpack.c.h.b16 %v84
    %v653 = vunpack.c.l.b16 %v85
    %v654 = vunpack.c.h.b16 %v85
    %v655 = vunpack.c.l.b16 %v86
    %v656 = vunpack.c.h.b16 %v86
    %v657 = vunpack.c.l.b16 %v87
    %v658 = vunpack.c.h.b16 %v87
    %v659 = vunpack.c.l.b16 %v88
    %v660 = vunpack.c.h.b16 %v88
    %v661 = vunpack.c.l.b16 %v89
    %v662 = vunpack.c.h.b16 %v89
    %v663 = vunpack.c.l.b16 %v90
    %v664 = vunpack.c.h.b16 %v90
    %v665 = vunpack.c.l.b16 %v91
    %v666 = vunpack.c.h.b16 %v91
    %v667 = vunpack.c.l.b16 %v92
    %v668 = vunpack.c.h.b16 %v92
    %v669 = vunpack.c.l.b16 %v93
    %v670 = vunpack.c.h.b16 %v93
    %v671 = vunpack.c.l.b16 %v94
    %v672 = vunpack.c.h.b16 %v94
    %v673 = vunpack.c.l.b16 %v95
    %v674 = vunpack.c.h.b16 %v95
    %v675 = vunpack.c.l.b16 %v96
    %v676 = vunpack.c.h.b16 %v96
    %v677 = vunpack.c.l.b16 %v97
    %v678 = vunpack.c.h.b16 %v97
    %v679 = vunpack.c.l.b16 %v98
    %v680 = vunpack.c.h.b16 %v98
    %v681 = vunpack.c.l.b16 %v99
    %v682 = vunpack.c.h.b16 %v99
    %v683 = vunpack.c.l.b16 %v100
    %v684 = vunpack.c.h.b16 %v100
    %v685 = vunpack.c.l.b16 %v101
    %v686 = vunpack.c.h.b16 %v101
    %v687 = vunpack.c.l.b16 %v102
    %v688 = vunpack.c.h.b16 %v102
    %v689 = vunpack.c.l.b16 %v103
    %v690 = vunpack.c.h.b16 %v103
    %v691 = vunpack.c.l.b16 %v104
    %v692 = vunpack.c.h.b16 %v104
    %v693 = vunpack.c.l.b16 %v105
    %v694 = vunpack.c.h.b16 %v105
    %v695 = vunpack.c.l.b16 %v106
    %v696 = vunpack.c.h.b16 %v106
    %v697 = vunpack.c.l.b16 %v107
    %v698 = vunpack.c.h.b16 %v107
    %v699 = vunpack.c.l.b16 %v108
    %v700 = vunpack.c.h.b16 %v108
    %v701 = vunpack.c.l.b16 %v109
    %v702 = vunpack.c.h.b16 %v109
    %v703 = vunpack.c.l.b16 %v110
    %v704 = vunpack.c.h.b16 %v110
    %v705 = vunpack.c.l.b16 %v111
    %v706 = vunpack.c.h.b16 %v111
    %v707 = vunpack.c.l.b16 %v112
    %v708 = vunpack.c.h.b16 %v112
    %v709 = vunpack.c.l.b16 %v113
    %v710 = vunpack.c.h.b16 %v113
    %v711 = vunpack.c.l.b16 %v114
    %v712 = vunpack.c.h.b16 %v114
    %v713 = vunpack.c.l.b16 %v115
    %v714 = vunpack.c.h.b16 %v115
    %v715 = vunpack.c.l.b16 %v116
    %v716 = vunpack.c.h.b16 %v116
    %v717 = vunpack.c.l.b16 %v117
    %v718 = vunpack.c.h.b16 %v117
    %v719 = vunpack.c.l.b16 %v118
    %v720 = vunpack.c.h.b16 %v118
    %v721 = vunpack.c.l.b16 %v119
    %v722 = vunpack.c.h.b16 %v119
    %v723 = vunpack.c.l.b16 %v120
    %v724 = vunpack.c.h.b16 %v120
    %v725 = vunpack.c.l.b16 %v121
    %v726 = vunpack.c.h.b16 %v121
    %v727 = vunpack.c.l.b16 %v122
    %v728 = vunpack.c.h.b16 %v122
    %v729 = vunpack.c.l.b16 %v123
    %v730 = vunpack.c.h.b16 %v123
    %v731 = vunpack.c.l.b16 %v124
    %v732 = vunpack.c.h.b16 %v124
    %v733 = vunpack.c.l.b16 %v125
    %v734 = vunpack.c.h.b16 %v125
    %v735 = vunpack.c.l.b16 %v126
    %v736 = vunpack.c.h.b16 %v126
    %v737 = vunpack.c.l.b16 %v127
    %v738 = vunpack.c.h.b16 %v127
    %v739 = vunpack.c.l.b16 %v128
    %v740 = vunpack.c.h.b16 %v128
    %v741 = vunpack.c.l.b16 %v129
    %v742 = vunpack.c.h.b16 %v129
    %v743 = vunpack.c.l.b16 %v130
    %v744 = vunpack.c.h.b16 %v130
    %v745 = vunpack.c.l.b16 %v131
    %v746 = vunpack.c.h.b16 %v131
    %v747 = vunpack.c.l.b16 %v132
    %v748 = vunpack.c.h.b16 %v132
    %v749 = vunpack.c.l.b16 %v133
    %v750 = vunpack.c.h.b16 %v133
    %v751 = vunpack.c.l.b16 %v134
    %v752 = vunpack.c.h.b16 %v134
    %v753 = vunpack.c.l.b16 %v135
    %v754 = vunpack.c.h.b16 %v135
    %v755 = vunpack.c.l.b16 %v136
    %v756 = vunpack.c.h.b16 %v136
    %v757 = vunpack.c.l.b16 %v137
    %v758 = vunpack.c.h.b16 %v137
    %v759 = vunpack.c.l.b16 %v138
    %v760 = vunpack.c.h.b16 %v138
    %v761 = vunpack.c.l.b16 %v139
    %v762 = vunpack.c.h.b16 %v139
    %v763 = vunpack.c.l.b16 %v140
    %v764 = vunpack.c.h.b16 %v140
    %v765 = vunpack.c.l.b16 %v141
    %v766 = vunpack.c.h.b16 %v141
    %v767 = vunpack.c.l.b16 %v142
    %v768 = vunpack.c.h.b16 %v142
    %v769 = vunpack.c.l.b16 %v143
    %v770 = vunpack.c.h.b16 %v143
    %v771 = vunpack.c.l.b16 %v144
    %v772 = vunpack.c.h.b16 %v144
    %v773 = vunpack.c.l.b16 %v145
    %v774 = vunpack.c.h.b16 %v145
    %v775 = vunpack.c.l.b16 %v146
    %v776 = vunpack.c.h.b16 %v146
    %v777 = vunpack.c.l.b16 %v147
    %v778 = vunpack.c.h.b16 %v147
    %v779 = vunpack.c.l.b16 %v148
    %v780 = vunpack.c.h.b16 %v148
    %v781 = vunpack.c.l.b16 %v149
    %v782 = vunpack.c.h.b16 %v149
    %v783 = vunpack.c.l.b16 %v150
    %v784 = vunpack.c.h.b16 %v150
    %v785 = vunpack.c.l.b16 %v151
    %v786 = vunpack.c.h.b16 %v151
    %v787 = vunpack.c.l.b16 %v152
    %v788 = vunpack.c.h.b16 %v152
    %v789 = vunpack.c.l.b16 %v153
    %v790 = vunpack.c.h.b16 %v153
    %v791 = vunpack.c.l.b16 %v154
    %v792 = vunpack.c.h.b16 %v154
    %v793 = vunpack.c.l.b16 %v155
    %v794 = vunpack.c.h.b16 %v155
    %v795 = vunpack.c.l.b16 %v156
    %v796 = vunpack.c.h.b16 %v156
    %v797 = vunpack.c.l.b16 %v157
    %v798 = vunpack.c.h.b16 %v157
    %v799 = vunpack.c.l.b16 %v158
    %v800 = vunpack.c.h.b16 %v158
    %v801 = vunpack.c.l.b16 %v159
    %v802 = vunpack.c.h.b16 %v159
    %v803 = vunpack.c.l.b16 %v160
    %v804 = vunpack.c.h.b16 %v160
    %v805 = vunpack.c.l.b16 %v161
    %v806 = vunpack.c.h.b16 %v161
    %v807 = vunpack.c.l.b16 %v162
    %v808 = vunpack.c.h.b16 %v162
    %v809 = vunpack.c.l.b16 %v163
    %v810 = vunpack.c.h.b16 %v163
    %v811 = vunpack.c.l.b16 %v164
    %v812 = vunpack.c.h.b16 %v164
    %v813 = vunpack.c.l.b16 %v165
    %v814 = vunpack.c.h.b16 %v165
    %v815 = vunpack.c.l.b16 %v166
    %v816 = vunpack.c.h.b16 %v166
    %v817 = vunpack.c.l.b16 %v167
    %v818 = vunpack.c.h.b16 %v167
    %v819 = vunpack.c.l.b16 %v168
    %v820 = vunpack.c.h.b16 %v168
    %v821 = vunpack.c.l.b16 %v169
    %v822 = vunpack.c.h.b16 %v169
    %v823 = vunpack.c.l.b16 %v170
    %v824 = vunpack.c.h.b16 %v170
    %v825 = vunpack.c.l.b16 %v171
    %v826 = vunpack.c.h.b16 %v171
    %v827 = vunpack.c.l.b16 %v172
    %v828 = vunpack.c.h.b16 %v172
    %v829 = vunpack.c.l.b16 %v173
    %v830 = vunpack.c.h.b16 %v173
    %v831 = vunpack.c.l.b16 %v174
    %v832 = vunpack.c.h.b16 %v174
    %v833 = vunpack.c.l.b16 %v175
    %v834 = vunpack.c.h.b16 %v175
    %v835 = vunpack.c.l.b16 %v176
    %v836 = vunpack.c.h.b16 %v176
    %v837 = vunpack.c.l.b16 %v177
    %v838 = vunpack.c.h.b16 %v177
    %v839 = vunpack.c.l.b16 %v178
    %v840 = vunpack.c.h.b16 %v178
    %v841 = vpack.c.b16 %v593, %v585
    %v842 = vpack.c.b16 %v594, %v586
    %v843 = vpack.c.b16 %v595, %v587
    %v844 = vpack.c.b16 %v596, %v588
    %v845 = vpack.c.b16 %v597, %v589
    %v846 = vpack.c.b16 %v598, %v590
    %v847 = vpack.c.b16 %v599, %v591
    %v848 = vpack.c.b16 %v600, %v592
    %v849 = vpack.c.b16 %v609, %v601
    %v850 = vpack.c.b16 %v610, %v602
    %v851 = vpack.c.b16 %v611, %v603
    %v852 = vpack.c.b16 %v612, %v604
    %v853 = vpack.c.b16 %v613, %v605
    %v854 = vpack.c.b16 %v614, %v606
    %v855 = vpack.c.b16 %v615, %v607
    %v856 = vpack.c.b16 %v616, %v608
    %v857 = vpack.c.b16 %v625, %v617
    %v858 = vpack.c.b16 %v626, %v618
    %v859 = vpack.c.b16 %v627, %v619
    %v860 = vpack.c.b16 %v628, %v620
    %v861 = vpack.c.b16 %v629, %v621
    %v862 = vpack.c.b16 %v630, %v622
    %v863 = vpack.c.b16 %v631, %v623
    %v864 = vpack.c.b16 %v632, %v624
    %v865 = vpack.c.b16 %v641, %v633
    %v866 = vpack.c.b16 %v642, %v634
    %v867 = vpack.c.b16 %v643, %v635
    %v868 = vpack.c.b16 %v644, %v636
    %v869 = vpack.c.b16 %v645, %v637
    %v870 = vpack.c.b16 %v646, %v638
    %v871 = vpack.c.b16 %v647, %v639
    %v872 = vpack.c.b16 %v648, %v640
    %v873 = vpack.c.b16 %v657, %v649
    %v874 = vpack.c.b16 %v658, %v650
    %v875 = vpack.c.b16 %v659, %v651
    %v876 = vpack.c.b16 %v660, %v652
    %v877 = vpack.c.b16 %v661, %v653
    %v878 = vpack.c.b16 %v662, %v654
    %v879 = vpack.c.b16 %v663, %v655
    %v880 = vpack.c.b16 %v664, %v656
    %v881 = vpack.c.b16 %v673, %v665
    %v882 = vpack.c.b16 %v674, %v666
    %v883 = vpack.c.b16 %v675, %v667
    %v884 = vpack.c.b16 %v676, %v668
    %v885 = vpack.c.b16 %v677, %v669
    %v886 = vpack.c.b16 %v678, %v670
    %v887 = vpack.c.b16 %v679, %v671
    %v888 = vpack.c.b16 %v680, %v672
    %v889 = vpack.c.b16 %v689, %v681
    %v890 = vpack.c.b16 %v690, %v682
    %v891 = vpack.c.b16 %v691, %v683
    %v892 = vpack.c.b16 %v692, %v684
    %v893 = vpack.c.b16 %v693, %v685
    %v894 = vpack.c.b16 %v694, %v686
    %v895 = vpack.c.b16 %v695, %v687
    %v896 = vpack.c.b16 %v696, %v688
    %v897 = vpack.c.b16 %v705, %v697
    %v898 = vpack.c.b16 %v706, %v698
    %v899 = vpack.c.b16 %v707, %v699
    %v900 = vpack.c.b16 %v708, %v700
    %v901 = vpack.c.b16 %v709, %v701
    %v902 = vpack.c.b16 %v710, %v702
    %v903 = vpack.c.b16 %v711, %v703
    %v904 = vpack.c.b16 %v712, %v704
    %v905 = vpack.c.b16 %v721, %v713
    %v906 = vpack.c.b16 %v722, %v714
    %v907 = vpack.c.b16 %v723, %v715
    %v908 = vpack.c.b16 %v724, %v716
    %v909 = vpack.c.b16 %v725, %v717
    %v910 = vpack.c.b16 %v726, %v718
    %v911 = vpack.c.b16 %v727, %v719
    %v912 = vpack.c.b16 %v728, %v720
    %v913 = vpack.c.b16 %v737, %v729
    %v914 = vpack.c.b16 %v738, %v730
    %v915 = vpack.c.b16 %v739, %v731
    %v916 = vpack.c.b16 %v740, %v732
    %v917 = vpack.c.b16 %v741, %v733
    %v918 = vpack.c.b16 %v742, %v734
    %v919 = vpack.c.b16 %v743, %v735
    %v920 = vpack.c.b16 %v744, %v736
    %v921 = vpack.c.b16 %v753, %v745
    %v922 = vpack.c.b16 %v754, %v746
    %v923 = vpack.c.b16 %v755, %v747
    %v924 = vpack.c.b16 %v756, %v748
    %v925 = vpack.c.b16 %v757, %v749
    %v926 = vpack.c.b16 %v758, %v750
    %v927 = vpack.c.b16 %v759, %v751
    %v928 = vpack.c.b16 %v760, %v752
    %v929 = vpack.c.b16 %v769, %v761
    %v930 = vpack.c.b16 %v770, %v762
    %v931 = vpack.c.b16 %v771, %v763
    %v932 = vpack.c.b16 %v772, %v764
    %v933 = vpack.c.b16 %v773, %v765
    %v934 = vpack.c.b16 %v774, %v766
    %v935 = vpack.c.b16 %v775, %v767
    %v936 = vpack.c.b16 %v776, %v768
    %v937 = vpack.c.b16 %v785, %v777
    %v938 = vpack.c.b16 %v786, %v778
    %v939 = vpack.c.b16 %v787, %v779
    %v940 = vpack.c.b16 %v788, %v780
    %v941 = vpack.c.b16 %v789, %v781
    %v942 = vpack.c.b16 %v790, %v782
    %v943 = vpack.c.b16 %v791, %v783
    %v944 = vpack.c.b16 %v792, %v784
    %v945 = vpack.c.b16 %v801, %v793
    %v946 = vpack.c.b16 %v802, %v794
    %v947 = vpack.c.b16 %v803, %v795
    %v948 = vpack.c.b16 %v804, %v796
    %v949 = vpack.c.b16 %v805, %v797
    %v950 = vpack.c.b16 %v806, %v798
    %v951 = vpack.c.b16 %v807, %v799
    %v952 = vpack.c.b16 %v808, %v800
    %v953 = vpack.c.b16 %v817, %v809
    %v954 = vpack.c.b16 %v818, %v810
    %v955 = vpack.c.b16 %v819, %v811
    %v956 = vpack.c.b16 %v820, %v812
    %v957 = vpack.c.b16 %v821, %v813
    %v958 = vpack.c.b16 %v822, %v814
    %v959 = vpack.c.b16 %v823, %v815
    %v960 = vpack.c.b16 %v824, %v816
    %v961 = vpack.c.b16 %v833, %v825
    %v962 = vpack.c.b16 %v834, %v826
    %v963 = vpack.c.b16 %v835, %v827
    %v964 = vpack.c.b16 %v836, %v828
    %v965 = vpack.c.b16 %v837, %v829
    %v966 = vpack.c.b16 %v838, %v830
    %v967 = vpack.c.b16 %v839, %v831
    %v968 = vpack.c.b16 %v840, %v832
    %v1353 = vunpack.c.l.b16 %v179
    %v1354 = vunpack.c.h.b16 %v179
    %v1355 = vunpack.c.l.b16 %v180
    %v1356 = vunpack.c.h.b16 %v180
    %v1357 = vunpack.c.l.b16 %v181
    %v1358 = vunpack.c.h.b16 %v181
    %v1359 = vunpack.c.l.b16 %v182
    %v1360 = vunpack.c.h.b16 %v182
    %v1361 = vunpack.c.l.b16 %v183
    %v1362 = vunpack.c.h.b16 %v183
    %v1363 = vunpack.c.l.b16 %v184
    %v1364 = vunpack.c.h.b16 %v184
    %v1365 = vunpack.c.l.b16 %v185
    %v1366 = vunpack.c.h.b16 %v185
    %v1367 = vunpack.c.l.b16 %v186
    %v1368 = vunpack.c.h.b16 %v186
    %v1369 = vunpack.c.l.b16 %v187
    %v1370 = vunpack.c.h.b16 %v187
    %v1371 = vunpack.c.l.b16 %v188
    %v1372 = vunpack.c.h.b16 %v188
    %v1373 = vunpack.c.l.b16 %v189
    %v1374 = vunpack.c.h.b16 %v189
    %v1375 = vunpack.c.l.b16 %v190
    %v1376 = vunpack.c.h.b16 %v190
    %v1377 = vunpack.c.l.b16 %v191
    %v1378 = vunpack.c.h.b16 %v191
    %v1379 = vunpack.c.l.b16 %v192
    %v1380 = vunpack.c.h.b16 %v192
    %v1381 = vunpack.c.l.b16 %v193
    %v1382 = vunpack.c.h.b16 %v193
    %v1383 = vunpack.c.l.b16 %v194
    %v1384 = vunpack.c.h.b16 %v194
    %v1385 = vunpack.c.l.b16 %v195
    %v1386 = vunpack.c.h.b16 %v195
    %v1387 = vunpack.c.l.b16 %v196
    %v1388 = vunpack.c.h.b16 %v196
    %v1389 = vunpack.c.l.b16 %v197
    %v1390 = vunpack.c.h.b16 %v197
    %v1391 = vunpack.c.l.b16 %v198
    %v1392 = vunpack.c.h.b16 %v198
    %v1393 = vunpack.c.l.b16 %v199
    %v1394 = vunpack.c.h.b16 %v199
    %v1395 = vunpack.c.l.b16 %v200
    %v1396 = vunpack.c.h.b16 %v200
    %v1397 = vunpack.c.l.b16 %v201
    %v1398 = vunpack.c.h.b16 %v201
    %v1399 = vunpack.c.l.b16 %v202
    %v1400 = vunpack.c.h.b16 %v202
    %v1401 = vunpack.c.l.b16 %v203
    %v1402 = vunpack.c.h.b16 %v203
    %v1403 = vunpack.c.l.b16 %v204
    %v1404 = vunpack.c.h.b16 %v204
    %v1405 = vunpack.c.l.b16 %v205
    %v1406 = vunpack.c.h.b16 %v205
    %v1407 = vunpack.c.l.b16 %v206
    %v1408 = vunpack.c.h.b16 %v206
    %v1409 = vunpack.c.l.b16 %v207
    %v1410 = vunpack.c.h.b16 %v207
    %v1411 = vunpack.c.l.b16 %v208
    %v1412 = vunpack.c.h.b16 %v208
    %v1413 = vunpack.c.l.b16 %v209
    %v1414 = vunpack.c.h.b16 %v209
    %v1415 = vunpack.c.l.b16 %v210
    %v1416 = vunpack.c.h.b16 %v210
    %v1417 = vunpack.c.l.b16 %v211
    %v1418 = vunpack.c.h.b16 %v211
    %v1419 = vunpack.c.l.b16 %v212
    %v1420 = vunpack.c.h.b16 %v212
    %v1421 = vunpack.c.l.b16 %v213
    %v1422 = vunpack.c.h.b16 %v213
    %v1423 = vunpack.c.l.b16 %v214
    %v1424 = vunpack.c.h.b16 %v214
    %v1425 = vunpack.c.l.b16 %v215
    %v1426 = vunpack.c.h.b16 %v215
    %v1427 = vunpack.c.l.b16 %v216
    %v1428 = vunpack.c.h.b16 %v216
    %v1429 = vunpack.c.l.b16 %v217
    %v1430 = vunpack.c.h.b16 %v217
    %v1431 = vunpack.c.l.b16 %v218
    %v1432 = vunpack.c.h.b16 %v218
    %v1433 = vunpack.c.l.b16 %v219
    %v1434 = vunpack.c.h.b16 %v219
    %v1435 = vunpack.c.l.b16 %v220
    %v1436 = vunpack.c.h.b16 %v220
    %v1437 = vunpack.c.l.b16 %v221
    %v1438 = vunpack.c.h.b16 %v221
    %v1439 = vunpack.c.l.b16 %v222
    %v1440 = vunpack.c.h.b16 %v222
    %v1441 = vunpack.c.l.b16 %v223
    %v1442 = vunpack.c.h.b16 %v223
    %v1443 = vunpack.c.l.b16 %v224
    %v1444 = vunpack.c.h.b16 %v224
    %v1445 = vunpack.c.l.b16 %v225
    %v1446 = vunpack.c.h.b16 %v225
    %v1447 = vunpack.c.l.b16 %v226
    %v1448 = vunpack.c.h.b16 %v226
    %v1449 = vunpack.c.l.b16 %v227
    %v1450 = vunpack.c.h.b16 %v227
    %v1451 = vunpack.c.l.b16 %v228
    %v1452 = vunpack.c.h.b16 %v228
    %v1453 = vunpack.c.l.b16 %v229
    %v1454 = vunpack.c.h.b16 %v229
    %v1455 = vunpack.c.l.b16 %v230
    %v1456 = vunpack.c.h.b16 %v230
    %v1457 = vunpack.c.l.b16 %v231
    %v1458 = vunpack.c.h.b16 %v231
    %v1459 = vunpack.c.l.b16 %v232
    %v1460 = vunpack.c.h.b16 %v232
    %v1461 = vunpack.c.l.b16 %v233
    %v1462 = vunpack.c.h.b16 %v233
    %v1463 = vunpack.c.l.b16 %v234
    %v1464 = vunpack.c.h.b16 %v234
    %v1465 = vunpack.c.l.b16 %v235
    %v1466 = vunpack.c.h.b16 %v235
    %v1467 = vunpack.c.l.b16 %v236
    %v1468 = vunpack.c.h.b16 %v236
    %v1469 = vunpack.c.l.b16 %v237
    %v1470 = vunpack.c.h.b16 %v237
    %v1471 = vunpack.c.l.b16 %v238
    %v1472 = vunpack.c.h.b16 %v238
    %v1473 = vunpack.c.l.b16 %v239
    %v1474 = vunpack.c.h.b16 %v239
    %v1475 = vunpack.c.l.b16 %v240
    %v1476 = vunpack.c.h.b16 %v240
    %v1477 = vunpack.c.l.b16 %v241
    %v1478 = vunpack.c.h.b16 %v241
    %v1479 = vunpack.c.l.b16 %v242
    %v1480 = vunpack.c.h.b16 %v242
    %v1481 = vunpack.c.l.b16 %v243
    %v1482 = vunpack.c.h.b16 %v243
    %v1483 = vunpack.c.l.b16 %v244
    %v1484 = vunpack.c.h.b16 %v244
    %v1485 = vunpack.c.l.b16 %v245
    %v1486 = vunpack.c.h.b16 %v245
    %v1487 = vunpack.c.l.b16 %v246
    %v1488 = vunpack.c.h.b16 %v246
    %v1489 = vunpack.c.l.b16 %v247
    %v1490 = vunpack.c.h.b16 %v247
    %v1491 = vunpack.c.l.b16 %v248
    %v1492 = vunpack.c.h.b16 %v248
    %v1493 = vunpack.c.l.b16 %v249
    %v1494 = vunpack.c.h.b16 %v249
    %v1495 = vunpack.c.l.b16 %v250
    %v1496 = vunpack.c.h.b16 %v250
    %v1497 = vunpack.c.l.b16 %v251
    %v1498 = vunpack.c.h.b16 %v251
    %v1499 = vunpack.c.l.b16 %v252
    %v1500 = vunpack.c.h.b16 %v252
    %v1501 = vunpack.c.l.b16 %v253
    %v1502 = vunpack.c.h.b16 %v253
    %v1503 = vunpack.c.l.b16 %v254
    %v1504 = vunpack.c.h.b16 %v254
    %v1505 = vunpack.c.l.b16 %v255
    %v1506 = vunpack.c.h.b16 %v255
    %v1507 = vunpack.c.l.b16 %v256
    %v1508 = vunpack.c.h.b16 %v256
    %v1509 = vunpack.c.l.b16 %v257
    %v1510 = vunpack.c.h.b16 %v257
    %v1511 = vunpack.c.l.b16 %v258
    %v1512 = vunpack.c.h.b16 %v258
    %v1513 = vunpack.c.l.b16 %v259
    %v1514 = vunpack.c.h.b16 %v259
    %v1515 = vunpack.c.l.b16 %v260
    %v1516 = vunpack.c.h.b16 %v260
    %v1517 = vunpack.c.l.b16 %v261
    %v1518 = vunpack.c.h.b16 %v261
    %v1519 = vunpack.c.l.b16 %v262
    %v1520 = vunpack.c.h.b16 %v262
    %v1521 = vunpack.c.l.b16 %v263
    %v1522 = vunpack.c.h.b16 %v263
    %v1523 = vunpack.c.l.b16 %v264
    %v1524 = vunpack.c.h.b16 %v264
    %v1525 = vunpack.c.l.b16 %v265
    %v1526 = vunpack.c.h.b16 %v265
    %v1527 = vunpack.c.l.b16 %v266
    %v1528 = vunpack.c.h.b16 %v266
    %v1529 = vunpack.c.l.b16 %v267
    %v1530 = vunpack.c.h.b16 %v267
    %v1531 = vunpack.c.l.b16 %v268
    %v1532 = vunpack.c.h.b16 %v268
    %v1533 = vunpack.c.l.b16 %v269
    %v1534 = vunpack.c.h.b16 %v269
    %v1535 = vunpack.c.l.b16 %v270
    %v1536 = vunpack.c.h.b16 %v270
    %v1537 = vunpack.c.l.b16 %v271
    %v1538 = vunpack.c.h.b16 %v271
    %v1539 = vunpack.c.l.b16 %v272
    %v1540 = vunpack.c.h.b16 %v272
    %v1541 = vunpack.c.l.b16 %v273
    %v1542 = vunpack.c.h.b16 %v273
    %v1543 = vunpack.c.l.b16 %v274
    %v1544 = vunpack.c.h.b16 %v274
    %v1545 = vunpack.c.l.b16 %v275
    %v1546 = vunpack.c.h.b16 %v275
    %v1547 = vunpack.c.l.b16 %v276
    %v1548 = vunpack.c.h.b16 %v276
    %v1549 = vunpack.c.l.b16 %v277
    %v1550 = vunpack.c.h.b16 %v277
    %v1551 = vunpack.c.l.b16 %v278
    %v1552 = vunpack.c.h.b16 %v278
    %v1553 = vunpack.c.l.b16 %v279
    %v1554 = vunpack.c.h.b16 %v279
    %v1555 = vunpack.c.l.b16 %v280
    %v1556 = vunpack.c.h.b16 %v280
    %v1557 = vunpack.c.l.b16 %v281
    %v1558 = vunpack.c.h.b16 %v281
    %v1559 = vunpack.c.l.b16 %v282
    %v1560 = vunpack.c.h.b16 %v282
    %v1561 = vunpack.c.l.b16 %v283
    %v1562 = vunpack.c.h.b16 %v283
    %v1563 = vunpack.c.l.b16 %v284
    %v1564 = vunpack.c.h.b16 %v284
    %v1565 = vunpack.c.l.b16 %v285
    %v1566 = vunpack.c.h.b16 %v285
    %v1567 = vunpack.c.l.b16 %v286
    %v1568 = vunpack.c.h.b16 %v286
    %v1569 = vunpack.c.l.b16 %v287
    %v1570 = vunpack.c.h.b16 %v287
    %v1571 = vunpack.c.l.b16 %v288
    %v1572 = vunpack.c.h.b16 %v288
    %v1573 = vunpack.c.l.b16 %v289
    %v1574 = vunpack.c.h.b16 %v289
    %v1575 = vunpack.c.l.b16 %v290
    %v1576 = vunpack.c.h.b16 %v290
    %v1577 = vunpack.c.l.b16 %v291
    %v1578 = vunpack.c.h.b16 %v291
    %v1579 = vunpack.c.l.b16 %v292
    %v1580 = vunpack.c.h.b16 %v292
    %v1581 = vunpack.c.l.b16 %v293
    %v1582 = vunpack.c.h.b16 %v293
    %v1583 = vunpack.c.l.b16 %v294
    %v1584 = vunpack.c.h.b16 %v294
    %v1585 = vunpack.c.l.b16 %v295
    %v1586 = vunpack.c.h.b16 %v295
    %v1587 = vunpack.c.l.b16 %v296
    %v1588 = vunpack.c.h.b16 %v296
    %v1589 = vunpack.c.l.b16 %v297
    %v1590 = vunpack.c.h.b16 %v297
    %v1591 = vunpack.c.l.b16 %v298
    %v1592 = vunpack.c.h.b16 %v298
    %v1593 = vunpack.c.l.b16 %v299
    %v1594 = vunpack.c.h.b16 %v299
    %v1595 = vunpack.c.l.b16 %v300
    %v1596 = vunpack.c.h.b16 %v300
    %v1597 = vunpack.c.l.b16 %v301
    %v1598 = vunpack.c.h.b16 %v301
    %v1599 = vunpack.c.l.b16 %v302
    %v1600 = vunpack.c.h.b16 %v302
    %v1601 = vunpack.c.l.b16 %v303
    %v1602 = vunpack.c.h.b16 %v303
    %v1603 = vunpack.c.l.b16 %v304
    %v1604 = vunpack.c.h.b16 %v304
    %v1605 = vunpack.c.l.b16 %v305
    %v1606 = vunpack.c.h.b16 %v305
    %v1607 = vunpack.c.l.b16 %v306
    %v1608 = vunpack.c.h.b16 %v306
    %v1609 = vunpack.c.l.b16 %v307
    %v1610 = vunpack.c.h.b16 %v307
    %v1611 = vunpack.c.l.b16 %v308
    %v1612 = vunpack.c.h.b16 %v308
    %v1613 = vunpack.c.l.b16 %v309
    %v1614 = vunpack.c.h.b16 %v309
    %v1615 = vunpack.c.l.b16 %v310
    %v1616 = vunpack.c.h.b16 %v310
    %v1617 = vunpack.c.l.b16 %v311
    %v1618 = vunpack.c.h.b16 %v311
    %v1619 = vunpack.c.l.b16 %v312
    %v1620 = vunpack.c.h.b16 %v312
    %v1621 = vunpack.c.l.b16 %v313
    %v1622 = vunpack.c.h.b16 %v313
    %v1623 = vunpack.c.l.b16 %v314
    %v1624 = vunpack.c.h.b16 %v314
    %v1625 = vunpack.c.l.b16 %v315
    %v1626 = vunpack.c.h.b16 %v315
    %v1627 = vunpack.c.l.b16 %v316
    %v1628 = vunpack.c.h.b16 %v316
    %v1629 = vunpack.c.l.b16 %v317
    %v1630 = vunpack.c.h.b16 %v317
    %v1631 = vunpack.c.l.b16 %v318
    %v1632 = vunpack.c.h.b16 %v318
    %v1633 = vunpack.c.l.b16 %v319
    %v1634 = vunpack.c.h.b16 %v319
    %v1635 = vunpack.c.l.b16 %v320
    %v1636 = vunpack.c.h.b16 %v320
    %v1637 = vunpack.c.l.b16 %v321
    %v1638 = vunpack.c.h.b16 %v321
    %v1639 = vunpack.c.l.b16 %v322
    %v1640 = vunpack.c.h.b16 %v322
    %v1641 = vunpack.c.l.b16 %v323
    %v1642 = vunpack.c.h.b16 %v323
    %v1643 = vunpack.c.l.b16 %v324
    %v1644 = vunpack.c.h.b16 %v324
    %v1645 = vunpack.c.l.b16 %v325
    %v1646 = vunpack.c.h.b16 %v325
    %v1647 = vunpack.c.l.b16 %v326
    %v1648 = vunpack.c.h.b16 %v326
    %v1649 = vunpack.c.l.b16 %v327
    %v1650 = vunpack.c.h.b16 %v327
    %v1651 = vunpack.c.l.b16 %v328
    %v1652 = vunpack.c.h.b16 %v328
    %v1653 = vunpack.c.l.b16 %v329
    %v1654 = vunpack.c.h.b16 %v329
    %v1655 = vunpack.c.l.b16 %v330
    %v1656 = vunpack.c.h.b16 %v330
    %v1657 = vunpack.c.l.b16 %v331
    %v1658 = vunpack.c.h.b16 %v331
    %v1659 = vunpack.c.l.b16 %v332
    %v1660 = vunpack.c.h.b16 %v332
    %v1661 = vunpack.c.l.b16 %v333
    %v1662 = vunpack.c.h.b16 %v333
    %v1663 = vunpack.c.l.b16 %v334
    %v1664 = vunpack.c.h.b16 %v334
    %v1665 = vunpack.c.l.b16 %v335
    %v1666 = vunpack.c.h.b16 %v335
    %v1667 = vunpack.c.l.b16 %v336
    %v1668 = vunpack.c.h.b16 %v336
    %v1669 = vunpack.c.l.b16 %v337
    %v1670 = vunpack.c.h.b16 %v337
    %v1671 = vunpack.c.l.b16 %v338
    %v1672 = vunpack.c.h.b16 %v338
    %v1673 = vunpack.c.l.b16 %v339
    %v1674 = vunpack.c.h.b16 %v339
    %v1675 = vunpack.c.l.b16 %v340
    %v1676 = vunpack.c.h.b16 %v340
    %v1677 = vunpack.c.l.b16 %v341
    %v1678 = vunpack.c.h.b16 %v341
    %v1679 = vunpack.c.l.b16 %v342
    %v1680 = vunpack.c.h.b16 %v342
    %v1681 = vunpack.c.l.b16 %v343
    %v1682 = vunpack.c.h.b16 %v343
    %v1683 = vunpack.c.l.b16 %v344
    %v1684 = vunpack.c.h.b16 %v344
    %v1685 = vunpack.c.l.b16 %v345
    %v1686 = vunpack.c.h.b16 %v345
    %v1687 = vunpack.c.l.b16 %v346
    %v1688 = vunpack.c.h.b16 %v346
    %v1689 = vunpack.c.l.b16 %v347
    %v1690 = vunpack.c.h.b16 %v347
    %v1691 = vunpack.c.l.b16 %v348
    %v1692 = vunpack.c.h.b16 %v348
    %v1693 = vunpack.c.l.b16 %v349
    %v1694 = vunpack.c.h.b16 %v349
    %v1695 = vunpack.c.l.b16 %v350
    %v1696 = vunpack.c.h.b16 %v350
    %v1697 = vunpack.c.l.b16 %v351
    %v1698 = vunpack.c.h.b16 %v351
    %v1699 = vunpack.c.l.b16 %v352
    %v1700 = vunpack.c.h.b16 %v352
    %v1701 = vunpack.c.l.b16 %v353
    %v1702 = vunpack.c.h.b16 %v353
    %v1703 = vunpack.c.l.b16 %v354
    %v1704 = vunpack.c.h.b16 %v354
    %v1705 = vunpack.c.l.b16 %v355
    %v1706 = vunpack.c.h.b16 %v355
    %v1707 = vunpack.c.l.b16 %v356
    %v1708 = vunpack.c.h.b16 %v356
    %v1709 = vunpack.c.l.b16 %v357
    %v1710 = vunpack.c.h.b16 %v357
    %v1711 = vunpack.c.l.b16 %v358
    %v1712 = vunpack.c.h.b16 %v358
    %v1713 = vunpack.c.l.b16 %v359
    %v1714 = vunpack.c.h.b16 %v359
    %v1715 = vunpack.c.l.b16 %v360
    %v1716 = vunpack.c.h.b16 %v360
    %v1717 = vunpack.c.l.b16 %v361
    %v1718 = vunpack.c.h.b16 %v361
    %v1719 = vunpack.c.l.b16 %v362
    %v1720 = vunpack.c.h.b16 %v362
    %v1721 = vunpack.c.l.b16 %v363
    %v1722 = vunpack.c.h.b16 %v363
    %v1723 = vunpack.c.l.b16 %v364
    %v1724 = vunpack.c.h.b16 %v364
    %v1725 = vunpack.c.l.b16 %v365
    %v1726 = vunpack.c.h.b16 %v365
    %v1727 = vunpack.c.l.b16 %v366
    %v1728 = vunpack.c.h.b16 %v366
    %v1729 = vunpack.c.l.b16 %v367
    %v1730 = vunpack.c.h.b16 %v367
    %v1731 = vunpack.c.l.b16 %v368
    %v1732 = vunpack.c.h.b16 %v368
    %v1733 = vunpack.c.l.b16 %v369
    %v1734 = vunpack.c.h.b16 %v369
    %v1735 = vunpack.c.l.b16 %v370
    %v1736 = vunpack.c.h.b16 %v370
    %v1737 = vunpack.c.l.b16 %v371
    %v1738 = vunpack.c.h.b16 %v371
    %v1739 = vunpack.c.l.b16 %v372
    %v1740 = vunpack.c.h.b16 %v372
    %v1741 = vunpack.c.l.b16 %v373
    %v1742 = vunpack.c.h.b16 %v373
    %v1743 = vunpack.c.l.b16 %v374
    %v1744 = vunpack.c.h.b16 %v374
    %v1745 = vunpack.c.l.b16 %v375
    %v1746 = vunpack.c.h.b16 %v375
    %v1747 = vunpack.c.l.b16 %v376
    %v1748 = vunpack.c.h.b16 %v376
    %v1749 = vunpack.c.l.b16 %v377
    %v1750 = vunpack.c.h.b16 %v377
    %v1751 = vunpack.c.l.b16 %v378
    %v1752 = vunpack.c.h.b16 %v378
    %v1753 = vunpack.c.l.b16 %v379
    %v1754 = vunpack.c.h.b16 %v379
    %v1755 = vunpack.c.l.b16 %v380
    %v1756 = vunpack.c.h.b16 %v380
    %v1757 = vunpack.c.l.b16 %v381
    %v1758 = vunpack.c.h.b16 %v381
    %v1759 = vunpack.c.l.b16 %v382
    %v1760 = vunpack.c.h.b16 %v382
    %v1761 = vunpack.c.l.b16 %v383
    %v1762 = vunpack.c.h.b16 %v383
    %v1763 = vunpack.c.l.b16 %v384
    %v1764 = vunpack.c.h.b16 %v384
    %v1765 = vunpack.c.l.b16 %v385
    %v1766 = vunpack.c.h.b16 %v385
    %v1767 = vunpack.c.l.b16 %v386
    %v1768 = vunpack.c.h.b16 %v386
    %v1769 = vunpack.c.l.b16 %v387
    %v1770 = vunpack.c.h.b16 %v387
    %v1771 = vunpack.c.l.b16 %v388
    %v1772 = vunpack.c.h.b16 %v388
    %v1773 = vunpack.c.l.b16 %v389
    %v1774 = vunpack.c.h.b16 %v389
    %v1775 = vunpack.c.l.b16 %v390
    %v1776 = vunpack.c.h.b16 %v390
    %v1777 = vunpack.c.l.b16 %v391
    %v1778 = vunpack.c.h.b16 %v391
    %v1779 = vunpack.c.l.b16 %v392
    %v1780 = vunpack.c.h.b16 %v392
    %v1781 = vunpack.c.l.b16 %v393
    %v1782 = vunpack.c.h.b16 %v393
    %v1783 = vunpack.c.l.b16 %v394
    %v1784 = vunpack.c.h.b16 %v394
    %v1785 = vunpack.c.l.b16 %v395
    %v1786 = vunpack.c.h.b16 %v395
    %v1787 = vunpack.c.l.b16 %v396
    %v1788 = vunpack.c.h.b16 %v396
    %v1789 = vunpack.c.l.b16 %v397
    %v1790 = vunpack.c.h.b16 %v397
    %v1791 = vunpack.c.l.b16 %v398
    %v1792 = vunpack.c.h.b16 %v398
    %v1793 = vunpack.c.l.b16 %v399
    %v1794 = vunpack.c.h.b16 %v399
    %v1795 = vunpack.c.l.b16 %v400
    %v1796 = vunpack.c.h.b16 %v400
    %v1797 = vunpack.c.l.b16 %v401
    %v1798 = vunpack.c.h.b16 %v401
    %v1799 = vunpack.c.l.b16 %v402
    %v1800 = vunpack.c.h.b16 %v402
    %v1801 = vunpack.c.l.b16 %v403
    %v1802 = vunpack.c.h.b16 %v403
    %v1803 = vunpack.c.l.b16 %v404
    %v1804 = vunpack.c.h.b16 %v404
    %v1805 = vunpack.c.l.b16 %v405
    %v1806 = vunpack.c.h.b16 %v405
    %v1807 = vunpack.c.l.b16 %v406
    %v1808 = vunpack.c.h.b16 %v406
    %v1809 = vunpack.c.l.b16 %v407
    %v1810 = vunpack.c.h.b16 %v407
    %v1811 = vunpack.c.l.b16 %v408
    %v1812 = vunpack.c.h.b16 %v408
    %v1813 = vunpack.c.l.b16 %v409
    %v1814 = vunpack.c.h.b16 %v409
    %v1815 = vunpack.c.l.b16 %v410
    %v1816 = vunpack.c.h.b16 %v410
    %v1817 = vunpack.c.l.b16 %v411
    %v1818 = vunpack.c.h.b16 %v411
    %v1819 = vunpack.c.l.b16 %v412
    %v1820 = vunpack.c.h.b16 %v412
    %v1821 = vunpack.c.l.b16 %v413
    %v1822 = vunpack.c.h.b16 %v413
    %v1823 = vunpack.c.l.b16 %v414
    %v1824 = vunpack.c.h.b16 %v414
    %v1825 = vunpack.c.l.b16 %v415
    %v1826 = vunpack.c.h.b16 %v415
    %v1827 = vunpack.c.l.b16 %v416
    %v1828 = vunpack.c.h.b16 %v416
    %v1829 = vunpack.c.l.b16 %v417
    %v1830 = vunpack.c.h.b16 %v417
    %v1831 = vunpack.c.l.b16 %v418
    %v1832 = vunpack.c.h.b16 %v418
    %v1833 = vunpack.c.l.b16 %v419
    %v1834 = vunpack.c.h.b16 %v419
    %v1835 = vunpack.c.l.b16 %v420
    %v1836 = vunpack.c.h.b16 %v420
    %v1837 = vunpack.c.l.b16 %v421
    %v1838 = vunpack.c.h.b16 %v421
    %v1839 = vunpack.c.l.b16 %v422
    %v1840 = vunpack.c.h.b16 %v422
    %v1841 = vunpack.c.l.b16 %v423
    %v1842 = vunpack.c.h.b16 %v423
    %v1843 = vunpack.c.l.b16 %v424
    %v1844 = vunpack.c.h.b16 %v424
    %v1845 = vunpack.c.l.b16 %v425
    %v1846 = vunpack.c.h.b16 %v425
    %v1847 = vunpack.c.l.b16 %v426
    %v1848 = vunpack.c.h.b16 %v426
    %v1849 = vunpack.c.l.b16 %v427
    %v1850 = vunpack.c.h.b16 %v427
    %v1851 = vunpack.c.l.b16 %v428
    %v1852 = vunpack.c.h.b16 %v428
    %v1853 = vunpack.c.l.b16 %v429
    %v1854 = vunpack.c.h.b16 %v429
    %v1855 = vunpack.c.l.b16 %v430
    %v1856 = vunpack.c.h.b16 %v430
    %v1857 = vunpack.c.l.b16 %v431
    %v1858 = vunpack.c.h.b16 %v431
    %v1859 = vunpack.c.l.b16 %v432
    %v1860 = vunpack.c.h.b16 %v432
    %v1861 = vunpack.c.l.b16 %v433
    %v1862 = vunpack.c.h.b16 %v433
    %v1863 = vunpack.c.l.b16 %v434
    %v1864 = vunpack.c.h.b16 %v434
    %v1865 = vpack.c.b16 %v1357, %v1353
    %v1866 = vpack.c.b16 %v1358, %v1354
    %v1867 = vpack.c.b16 %v1359, %v1355
    %v1868 = vpack.c.b16 %v1360, %v1356
    %v1869 = vpack.c.b16 %v1365, %v1361
    %v1870 = vpack.c.b16 %v1366, %v1362
    %v1871 = vpack.c.b16 %v1367, %v1363
    %v1872 = vpack.c.b16 %v1368, %v1364
    %v1873 = vpack.c.b16 %v1373, %v1369
    %v1874 = vpack.c.b16 %v1374, %v1370
    %v1875 = vpack.c.b16 %v1375, %v1371
    %v1876 = vpack.c.b16 %v1376, %v1372
    %v1877 = vpack.c.b16 %v1381, %v1377
    %v1878 = vpack.c.b16 %v1382, %v1378
    %v1879 = vpack.c.b16 %v1383, %v1379
    %v1880 = vpack.c.b16 %v1384, %v1380
    %v1881 = vpack.c.b16 %v1389, %v1385
    %v1882 = vpack.c.b16 %v1390, %v1386
    %v1883 = vpack.c.b16 %v1391, %v1387
    %v1884 = vpack.c.b16 %v1392, %v1388
    %v1885 = vpack.c.b16 %v1397, %v1393
    %v1886 = vpack.c.b16 %v1398, %v1394
    %v1887 = vpack.c.b16 %v1399, %v1395
    %v1888 = vpack.c.b16 %v1400, %v1396
    %v1889 = vpack.c.b16 %v1405, %v1401
    %v1890 = vpack.c.b16 %v1406, %v1402
    %v1891 = vpack.c.b16 %v1407, %v1403
    %v1892 = vpack.c.b16 %v1408, %v1404
    %v1893 = vpack.c.b16 %v1413, %v1409
    %v1894 = vpack.c.b16 %v1414, %v1410
    %v1895 = vpack.c.b16 %v1415, %v1411
    %v1896 = vpack.c.b16 %v1416, %v1412
    %v1897 = vpack.c.b16 %v1421, %v1417
    %v1898 = vpack.c.b16 %v1422, %v1418
    %v1899 = vpack.c.b16 %v1423, %v1419
    %v1900 = vpack.c.b16 %v1424, %v1420
    %v1901 = vpack.c.b16 %v1429, %v1425
    %v1902 = vpack.c.b16 %v1430, %v1426
    %v1903 = vpack.c.b16 %v1431, %v1427
    %v1904 = vpack.c.b16 %v1432, %v1428
    %v1905 = vpack.c.b16 %v1437, %v1433
    %v1906 = vpack.c.b16 %v1438, %v1434
    %v1907 = vpack.c.b16 %v1439, %v1435
    %v1908 = vpack.c.b16 %v1440, %v1436
    %v1909 = vpack.c.b16 %v1445, %v1441
    %v1910 = vpack.c.b16 %v1446, %v1442
    %v1911 = vpack.c.b16 %v1447, %v1443
    %v1912 = vpack.c.b16 %v1448, %v1444
    %v1913 = vpack.c.b16 %v1453, %v1449
    %v1914 = vpack.c.b16 %v1454, %v1450
    %v1915 = vpack.c.b16 %v1455, %v1451
    %v1916 = vpack.c.b16 %v1456, %v1452
    %v1917 = vpack.c.b16 %v1461, %v1457
    %v1918 = vpack.c.b16 %v1462, %v1458
    %v1919 = vpack.c.b16 %v1463, %v1459
    %v1920 = vpack.c.b16 %v1464, %v1460
    %v1921 = vpack.c.b16 %v1469, %v1465
    %v1922 = vpack.c.b16 %v1470, %v1466
    %v1923 = vpack.c.b16 %v1471, %v1467
    %v1924 = vpack.c.b16 %v1472, %v1468
    %v1925 = vpack.c.b16 %v1477, %v1473
    %v1926 = vpack.c.b16 %v1478, %v1474
    %v1927 = vpack.c.b16 %v1479, %v1475
    %v1928 = vpack.c.b16 %v1480, %v1476
    %v1929 = vpack.c.b16 %v1485, %v1481
    %v1930 = vpack.c.b16 %v1486, %v1482
    %v1931 = vpack.c.b16 %v1487, %v1483
    %v1932 = vpack.c.b16 %v1488, %v1484
    %v1933 = vpack.c.b16 %v1493, %v1489
    %v1934 = vpack.c.b16 %v1494, %v1490
    %v1935 = vpack.c.b16 %v1495, %v1491
    %v1936 = vpack.c.b16 %v1496, %v1492
    %v1937 = vpack.c.b16 %v1501, %v1497
    %v1938 = vpack.c.b16 %v1502, %v1498
    %v1939 = vpack.c.b16 %v1503, %v1499
    %v1940 = vpack.c.b16 %v1504, %v1500
    %v1941 = vpack.c.b16 %v1509, %v1505
    %v1942 = vpack.c.b16 %v1510, %v1506
    %v1943 = vpack.c.b16 %v1511, %v1507
    %v1944 = vpack.c.b16 %v1512, %v1508
    %v1945 = vpack.c.b16 %v1517, %v1513
    %v1946 = vpack.c.b16 %v1518, %v1514
    %v1947 = vpack.c.b16 %v1519, %v1515
    %v1948 = vpack.c.b16 %v1520, %v1516
    %v1949 = vpack.c.b16 %v1525, %v1521
    %v1950 = vpack.c.b16 %v1526, %v1522
    %v1951 = vpack.c.b16 %v1527, %v1523
    %v1952 = vpack.c.b16 %v1528, %v1524
    %v1953 = vpack.c.b16 %v1533, %v1529
    %v1954 = vpack.c.b16 %v1534, %v1530
    %v1955 = vpack.c.b16 %v1535, %v1531
    %v1956 = vpack.c.b16 %v1536, %v1532
    %v1957 = vpack.c.b16 %v1541, %v1537
    %v1958 = vpack.c.b16 %v1542, %v1538
    %v1959 = vpack.c.b16 %v1543, %v1539
    %v1960 = vpack.c.b16 %v1544, %v1540
    %v1961 = vpack.c.b16 %v1549, %v1545
    %v1962 = vpack.c.b16 %v1550, %v1546
    %v1963 = vpack.c.b16 %v1551, %v1547
    %v1964 = vpack.c.b16 %v1552, %v1548
    %v1965 = vpack.c.b16 %v1557, %v1553
    %v1966 = vpack.c.b16 %v1558, %v1554
    %v1967 = vpack.c.b16 %v1559, %v1555
    %v1968 = vpack.c.b16 %v1560, %v1556
    %v1969 = vpack.c.b16 %v1565, %v1561
    %v1970 = vpack.c.b16 %v1566, %v1562
    %v1971 = vpack.c.b16 %v1567, %v1563
    %v1972 = vpack.c.b16 %v1568, %v1564
    %v1973 = vpack.c.b16 %v1573, %v1569
    %v1974 = vpack.c.b16 %v1574, %v1570
    %v1975 = vpack.c.b16 %v1575, %v1571
    %v1976 = vpack.c.b16 %v1576, %v1572
    %v1977 = vpack.c.b16 %v1581, %v1577
    %v1978 = vpack.c.b16 %v1582, %v1578
    %v1979 = vpack.c.b16 %v1583, %v1579
    %v1980 = vpack.c.b16 %v1584, %v1580
    %v1981 = vpack.c.b16 %v1589, %v1585
    %v1982 = vpack.c.b16 %v1590, %v1586
    %v1983 = vpack.c.b16 %v1591, %v1587
    %v1984 = vpack.c.b16 %v1592, %v1588
    %v1985 = vpack.c.b16 %v1597, %v1593
    %v1986 = vpack.c.b16 %v1598, %v1594
    %v1987 = vpack.c.b16 %v1599, %v1595
    %v1988 = vpack.c.b16 %v1600, %v1596
    %v1989 = vpack.c.b16 %v1605, %v1601
    %v1990 = vpack.c.b16 %v1606, %v1602
    %v1991 = vpack.c.b16 %v1607, %v1603
    %v1992 = vpack.c.b16 %v1608, %v1604
    %v1993 = vpack.c.b16 %v1613, %v1609
    %v1994 = vpack.c.b16 %v1614, %v1610
    %v1995 = vpack.c.b16 %v1615, %v1611
    %v1996 = vpack.c.b16 %v1616, %v1612
    %v1997 = vpack.c.b16 %v1621, %v1617
    %v1998 = vpack.c.b16 %v1622, %v1618
    %v1999 = vpack.c.b16 %v1623, %v1619
    %v2000 = vpack.c.b16 %v1624, %v1620
    %v2001 = vpack.c.b16 %v1629, %v1625
    %v2002 = vpack.c.b16 %v1630, %v1626
    %v2003 = vpack.c.b16 %v1631, %v1627
    %v2004 = vpack.c.b16 %v1632, %v1628
    %v2005 = vpack.c.b16 %v1637, %v1633
    %v2006 = vpack.c.b16 %v1638, %v1634
    %v2007 = vpack.c.b16 %v1639, %v1635
    %v2008 = vpack.c.b16 %v1640, %v1636
    %v2009 = vpack.c.b16 %v1645, %v1641
    %v2010 = vpack.c.b16 %v1646, %v1642
    %v2011 = vpack.c.b16 %v1647, %v1643
    %v2012 = vpack.c.b16 %v1648, %v1644
    %v2013 = vpack.c.b16 %v1653, %v1649
    %v2014 = vpack.c.b16 %v1654, %v1650
    %v2015 = vpack.c.b16 %v1655, %v1651
    %v2016 = vpack.c.b16 %v1656, %v1652
    %v2017 = vpack.c.b16 %v1661, %v1657
    %v2018 = vpack.c.b16 %v1662, %v1658
    %v2019 = vpack.c.b16 %v1663, %v1659
    %v2020 = vpack.c.b16 %v1664, %v1660
    %v2021 = vpack.c.b16 %v1669, %v1665
    %v2022 = vpack.c.b16 %v1670, %v1666
    %v2023 = vpack.c.b16 %v1671, %v1667
    %v2024 = vpack.c.b16 %v1672, %v1668
    %v2025 = vpack.c.b16 %v1677, %v1673
    %v2026 = vpack.c.b16 %v1678, %v1674
    %v2027 = vpack.c.b16 %v1679, %v1675
    %v2028 = vpack.c.b16 %v1680, %v1676
    %v2029 = vpack.c.b16 %v1685, %v1681
    %v2030 = vpack.c.b16 %v1686, %v1682
    %v2031 = vpack.c.b16 %v1687, %v1683
    %v2032 = vpack.c.b16 %v1688, %v1684
    %v2033 = vpack.c.b16 %v1693, %v1689
    %v2034 = vpack.c.b16 %v1694, %v1690
    %v2035 = vpack.c.b16 %v1695, %v1691
    %v2036 = vpack.c.b16 %v1696, %v1692
    %v2037 = vpack.c.b16 %v1701, %v1697
    %v2038 = vpack.c.b16 %v1702, %v1698
    %v2039 = vpack.c.b16 %v1703, %v1699
    %v2040 = vpack.c.b16 %v1704, %v1700
    %v2041 = vpack.c.b16 %v1709, %v1705
    %v2042 = vpack.c.b16 %v1710, %v1706
    %v2043 = vpack.c.b16 %v1711, %v1707
    %v2044 = vpack.c.b16 %v1712, %v1708
    %v2045 = vpack.c.b16 %v1717, %v1713
    %v2046 = vpack.c.b16 %v1718, %v1714
    %v2047 = vpack.c.b16 %v1719, %v1715
    %v2048 = vpack.c.b16 %v1720, %v1716
    %v2049 = vpack.c.b16 %v1725, %v1721
    %v2050 = vpack.c.b16 %v1726, %v1722
    %v2051 = vpack.c.b16 %v1727, %v1723
    %v2052 = vpack.c.b16 %v1728, %v1724
    %v2053 = vpack.c.b16 %v1733, %v1729
    %v2054 = vpack.c.b16 %v1734, %v1730
    %v2055 = vpack.c.b16 %v1735, %v1731
    %v2056 = vpack.c.b16 %v1736, %v1732
    %v2057 = vpack.c.b16 %v1741, %v1737
    %v2058 = vpack.c.b16 %v1742, %v1738
    %v2059 = vpack.c.b16 %v1743, %v1739
    %v2060 = vpack.c.b16 %v1744, %v1740
    %v2061 = vpack.c.b16 %v1749, %v1745
    %v2062 = vpack.c.b16 %v1750, %v1746
    %v2063 = vpack.c.b16 %v1751, %v1747
    %v2064 = vpack.c.b16 %v1752, %v1748
    %v2065 = vpack.c.b16 %v1757, %v1753
    %v2066 = vpack.c.b16 %v1758, %v1754
    %v2067 = vpack.c.b16 %v1759, %v1755
    %v2068 = vpack.c.b16 %v1760, %v1756
    %v2069 = vpack.c.b16 %v1765, %v1761
    %v2070 = vpack.c.b16 %v1766, %v1762
    %v2071 = vpack.c.b16 %v1767, %v1763
    %v2072 = vpack.c.b16 %v1768, %v1764
    %v2073 = vpack.c.b16 %v1773, %v1769
    %v2074 = vpack.c.b16 %v1774, %v1770
    %v2075 = vpack.c.b16 %v1775, %v1771
    %v2076 = vpack.c.b16 %v1776, %v1772
    %v2077 = vpack.c.b16 %v1781, %v1777
    %v2078 = vpack.c.b16 %v1782, %v1778
    %v2079 = vpack.c.b16 %v1783, %v1779
    %v2080 = vpack.c.b16 %v1784, %v1780
    %v2081 = vpack.c.b16 %v1789, %v1785
    %v2082 = vpack.c.b16 %v1790, %v1786
    %v2083 = vpack.c.b16 %v1791, %v1787
    %v2084 = vpack.c.b16 %v1792, %v1788
    %v2085 = vpack.c.b16 %v1797, %v1793
    %v2086 = vpack.c.b16 %v1798, %v1794
    %v2087 = vpack.c.b16 %v1799, %v1795
    %v2088 = vpack.c.b16 %v1800, %v1796
    %v2089 = vpack.c.b16 %v1805, %v1801
    %v2090 = vpack.c.b16 %v1806, %v1802
    %v2091 = vpack.c.b16 %v1807, %v1803
    %v2092 = vpack.c.b16 %v1808, %v1804
    %v2093 = vpack.c.b16 %v1813, %v1809
    %v2094 = vpack.c.b16 %v1814, %v1810
    %v2095 = vpack.c.b16 %v1815, %v1811
    %v2096 = vpack.c.b16 %v1816, %v1812
    %v2097 = vpack.c.b16 %v1821, %v1817
    %v2098 = vpack.c.b16 %v1822, %v1818
    %v2099 = vpack.c.b16 %v1823, %v1819
    %v2100 = vpack.c.b16 %v1824, %v1820
    %v2101 = vpack.c.b16 %v1829, %v1825
    %v2102 = vpack.c.b16 %v1830, %v1826
    %v2103 = vpack.c.b16 %v1831, %v1827
    %v2104 = vpack.c.b16 %v1832, %v1828
    %v2105 = vpack.c.b16 %v1837, %v1833
    %v2106 = vpack.c.b16 %v1838, %v1834
    %v2107 = vpack.c.b16 %v1839, %v1835
    %v2108 = vpack.c.b16 %v1840, %v1836
    %v2109 = vpack.c.b16 %v1845, %v1841
    %v2110 = vpack.c.b16 %v1846, %v1842
    %v2111 = vpack.c.b16 %v1847, %v1843
    %v2112 = vpack.c.b16 %v1848, %v1844
    %v2113 = vpack.c.b16 %v1853, %v1849
    %v2114 = vpack.c.b16 %v1854, %v1850
    %v2115 = vpack.c.b16 %v1855, %v1851
    %v2116 = vpack.c.b16 %v1856, %v1852
    %v2117 = vpack.c.b16 %v1861, %v1857
    %v2118 = vpack.c.b16 %v1862, %v1858
    %v2119 = vpack.c.b16 %v1863, %v1859
    %v2120 = vpack.c.b16 %v1864, %v1860
    %2377 = vmatprep.subr.bf16.mxu0 %v1894
    %2378 = vmatpush1.bf16.msra.mxu0 %v1893
    %2379 = vmatprep.subr.bf16.mxu0 %v1890
    %2380 = vmatpush1.bf16.msra.mxu0 %v1889
    %2381 = vmatprep.subr.bf16.mxu0 %v1886
    %2382 = vmatpush1.bf16.msra.mxu0 %v1885
    %2383 = vmatprep.subr.bf16.mxu0 %v1882
    %2384 = vmatpush1.bf16.msra.mxu0 %v1881
    %2385 = vmatprep.subr.bf16.mxu0 %v1878
    %2386 = vmatpush1.bf16.msra.mxu0 %v1877
    %2387 = vmatprep.subr.bf16.mxu0 %v1874
    %2388 = vmatpush1.bf16.msra.mxu0 %v1873
    %2389 = vmatprep.subr.bf16.mxu0 %v1870
    %2390 = vmatpush1.bf16.msra.mxu0 %v1869
    %2391 = vmatprep.subr.bf16.mxu0 %v1866
    %2392 = vmatpush1.bf16.msra.mxu0 %v1865
    %2393 = vmatprep.subr.bf16.mxu0 %v1926
    %2394 = vmatpush2.bf16.msra.mxu0 %v1925
    %2395 = vmatprep.subr.bf16.mxu0 %v1922
    %2396 = vmatpush2.bf16.msra.mxu0 %v1921
    %2397 = vmatprep.subr.bf16.mxu0 %v1918
    %2398 = vmatpush2.bf16.msra.mxu0 %v1917
    %2399 = vmatprep.subr.bf16.mxu0 %v1914
    %2400 = vmatpush2.bf16.msra.mxu0 %v1913
    %2401 = vmatprep.subr.bf16.mxu0 %v1910
    %2402 = vmatpush2.bf16.msra.mxu0 %v1909
    %2403 = vmatprep.subr.bf16.mxu0 %v1906
    %2404 = vmatpush2.bf16.msra.mxu0 %v1905
    %2405 = vmatprep.subr.bf16.mxu0 %v1902
    %2406 = vmatpush2.bf16.msra.mxu0 %v1901
    %2407 = vmatprep.subr.bf16.mxu0 %v1898
    %2408 = vmatpush2.bf16.msra.mxu0 %v1897
    %2409 = vmatprep.mubr.bf16.mxu0 %v842
    %2410 = vmatmul.mubr.bf16.gmra.mxu0 %v841
    %v2411 = vpop.f32.mrf.mxu0
    %v2412 = vadd.f32 %v440, %v2411
    %v2413 = vpop.f32.mrf.mxu0
    %v2414 = vadd.f32 %v444, %v2413
    %v2415 = vpop.f32.mrf.mxu0
    %v2416 = vadd.f32 %v440, %v2415
    %v2417 = vpop.f32.mrf.mxu0
    %v2418 = vadd.f32 %v444, %v2417
    %2419 = vmatprep.mubr.bf16.mxu0 %v850
    %2420 = vmatmul.mubr.bf16.gmra.mxu0 %v849
    %v2421 = vpop.f32.mrf.mxu0
    %v2422 = vadd.f32 %v440, %v2421
    %v2423 = vpop.f32.mrf.mxu0
    %v2424 = vadd.f32 %v444, %v2423
    %v2425 = vpop.f32.mrf.mxu0
    %v2426 = vadd.f32 %v440, %v2425
    %v2427 = vpop.f32.mrf.mxu0
    %v2428 = vadd.f32 %v444, %v2427
    %2429 = vmatprep.mubr.bf16.mxu0 %v858
    %2430 = vmatmul.mubr.bf16.gmra.mxu0 %v857
    %v2431 = vpop.f32.mrf.mxu0
    %v2432 = vadd.f32 %v440, %v2431
    %v2433 = vpop.f32.mrf.mxu0
    %v2434 = vadd.f32 %v444, %v2433
    %v2435 = vpop.f32.mrf.mxu0
    %v2436 = vadd.f32 %v440, %v2435
    %v2437 = vpop.f32.mrf.mxu0
    %v2438 = vadd.f32 %v444, %v2437
    %2439 = vmatprep.mubr.bf16.mxu0 %v866
    %2440 = vmatmul.mubr.bf16.gmra.mxu0 %v865
    %v2441 = vpop.f32.mrf.mxu0
    %v2442 = vadd.f32 %v440, %v2441
    %v2443 = vpop.f32.mrf.mxu0
    %v2444 = vadd.f32 %v444, %v2443
    %v2445 = vpop.f32.mrf.mxu0
    %v2446 = vadd.f32 %v440, %v2445
    %v2447 = vpop.f32.mrf.mxu0
    %v2448 = vadd.f32 %v444, %v2447
    %2449 = vmatprep.mubr.bf16.mxu0 %v874
    %2450 = vmatmul.mubr.bf16.gmra.mxu0 %v873
    %v2451 = vpop.f32.mrf.mxu0
    %v2452 = vadd.f32 %v440, %v2451
    %v2453 = vpop.f32.mrf.mxu0
    %v2454 = vadd.f32 %v444, %v2453
    %v2455 = vpop.f32.mrf.mxu0
    %v2456 = vadd.f32 %v440, %v2455
    %v2457 = vpop.f32.mrf.mxu0
    %v2458 = vadd.f32 %v444, %v2457
    %2459 = vmatprep.mubr.bf16.mxu0 %v882
    %2460 = vmatmul.mubr.bf16.gmra.mxu0 %v881
    %v2461 = vpop.f32.mrf.mxu0
    %v2462 = vadd.f32 %v440, %v2461
    %v2463 = vpop.f32.mrf.mxu0
    %v2464 = vadd.f32 %v444, %v2463
    %v2465 = vpop.f32.mrf.mxu0
    %v2466 = vadd.f32 %v440, %v2465
    %v2467 = vpop.f32.mrf.mxu0
    %v2468 = vadd.f32 %v444, %v2467
    %2469 = vmatprep.mubr.bf16.mxu0 %v890
    %2470 = vmatmul.mubr.bf16.gmra.mxu0 %v889
    %v2471 = vpop.f32.mrf.mxu0
    %v2472 = vadd.f32 %v440, %v2471
    %v2473 = vpop.f32.mrf.mxu0
    %v2474 = vadd.f32 %v444, %v2473
    %v2475 = vpop.f32.mrf.mxu0
    %v2476 = vadd.f32 %v440, %v2475
    %v2477 = vpop.f32.mrf.mxu0
    %v2478 = vadd.f32 %v444, %v2477
    %2479 = vmatprep.mubr.bf16.mxu0 %v898
    %2480 = vmatmul.mubr.bf16.gmra.mxu0 %v897
    %v2481 = vpop.f32.mrf.mxu0
    %v2482 = vadd.f32 %v440, %v2481
    %v2483 = vpop.f32.mrf.mxu0
    %v2484 = vadd.f32 %v444, %v2483
    %v2485 = vpop.f32.mrf.mxu0
    %v2486 = vadd.f32 %v440, %v2485
    %v2487 = vpop.f32.mrf.mxu0
    %v2488 = vadd.f32 %v444, %v2487
    %2489 = vmatprep.mubr.bf16.mxu0 %v906
    %2490 = vmatmul.mubr.bf16.gmra.mxu0 %v905
    %v2491 = vpop.f32.mrf.mxu0
    %v2492 = vadd.f32 %v440, %v2491
    %v2493 = vpop.f32.mrf.mxu0
    %v2494 = vadd.f32 %v444, %v2493
    %v2495 = vpop.f32.mrf.mxu0
    %v2496 = vadd.f32 %v440, %v2495
    %v2497 = vpop.f32.mrf.mxu0
    %v2498 = vadd.f32 %v444, %v2497
    %2499 = vmatprep.mubr.bf16.mxu0 %v914
    %2500 = vmatmul.mubr.bf16.gmra.mxu0 %v913
    %v2501 = vpop.f32.mrf.mxu0
    %v2502 = vadd.f32 %v440, %v2501
    %v2503 = vpop.f32.mrf.mxu0
    %v2504 = vadd.f32 %v444, %v2503
    %v2505 = vpop.f32.mrf.mxu0
    %v2506 = vadd.f32 %v440, %v2505
    %v2507 = vpop.f32.mrf.mxu0
    %v2508 = vadd.f32 %v444, %v2507
    %2509 = vmatprep.mubr.bf16.mxu0 %v922
    %2510 = vmatmul.mubr.bf16.gmra.mxu0 %v921
    %v2511 = vpop.f32.mrf.mxu0
    %v2512 = vadd.f32 %v440, %v2511
    %v2513 = vpop.f32.mrf.mxu0
    %v2514 = vadd.f32 %v444, %v2513
    %v2515 = vpop.f32.mrf.mxu0
    %v2516 = vadd.f32 %v440, %v2515
    %v2517 = vpop.f32.mrf.mxu0
    %v2518 = vadd.f32 %v444, %v2517
    %2519 = vmatprep.mubr.bf16.mxu0 %v930
    %2520 = vmatmul.mubr.bf16.gmra.mxu0 %v929
    %v2521 = vpop.f32.mrf.mxu0
    %v2522 = vadd.f32 %v440, %v2521
    %v2523 = vpop.f32.mrf.mxu0
    %v2524 = vadd.f32 %v444, %v2523
    %v2525 = vpop.f32.mrf.mxu0
    %v2526 = vadd.f32 %v440, %v2525
    %v2527 = vpop.f32.mrf.mxu0
    %v2528 = vadd.f32 %v444, %v2527
    %2529 = vmatprep.mubr.bf16.mxu0 %v938
    %2530 = vmatmul.mubr.bf16.gmra.mxu0 %v937
    %v2531 = vpop.f32.mrf.mxu0
    %v2532 = vadd.f32 %v440, %v2531
    %v2533 = vpop.f32.mrf.mxu0
    %v2534 = vadd.f32 %v444, %v2533
    %v2535 = vpop.f32.mrf.mxu0
    %v2536 = vadd.f32 %v440, %v2535
    %v2537 = vpop.f32.mrf.mxu0
    %v2538 = vadd.f32 %v444, %v2537
    %2539 = vmatprep.mubr.bf16.mxu0 %v946
    %2540 = vmatmul.mubr.bf16.gmra.mxu0 %v945
    %v2541 = vpop.f32.mrf.mxu0
    %v2542 = vadd.f32 %v440, %v2541
    %v2543 = vpop.f32.mrf.mxu0
    %v2544 = vadd.f32 %v444, %v2543
    %v2545 = vpop.f32.mrf.mxu0
    %v2546 = vadd.f32 %v440, %v2545
    %v2547 = vpop.f32.mrf.mxu0
    %v2548 = vadd.f32 %v444, %v2547
    %2549 = vmatprep.mubr.bf16.mxu0 %v954
    %2550 = vmatmul.mubr.bf16.gmra.mxu0 %v953
    %v2551 = vpop.f32.mrf.mxu0
    %v2552 = vadd.f32 %v440, %v2551
    %v2553 = vpop.f32.mrf.mxu0
    %v2554 = vadd.f32 %v444, %v2553
    %v2555 = vpop.f32.mrf.mxu0
    %v2556 = vadd.f32 %v440, %v2555
    %v2557 = vpop.f32.mrf.mxu0
    %v2558 = vadd.f32 %v444, %v2557
    %2559 = vmatprep.mubr.bf16.mxu0 %v962
    %2560 = vmatmul.mubr.bf16.gmra.mxu0 %v961
    %v2561 = vpop.f32.mrf.mxu0
    %v2562 = vadd.f32 %v440, %v2561
    %v2563 = vpop.f32.mrf.mxu0
    %v2564 = vadd.f32 %v444, %v2563
    %v2565 = vpop.f32.mrf.mxu0
    %v2566 = vadd.f32 %v440, %v2565
    %v2567 = vpop.f32.mrf.mxu0
    %v2568 = vadd.f32 %v444, %v2567
    %2569 = vdwg.mxu0
    %2570 = vmatprep.subr.bf16.mxu0 %v1958
    %2571 = vmatpush1.bf16.msra.mxu0 %v1957
    %2572 = vmatprep.subr.bf16.mxu0 %v1954
    %2573 = vmatpush1.bf16.msra.mxu0 %v1953
    %2574 = vmatprep.subr.bf16.mxu0 %v1950
    %2575 = vmatpush1.bf16.msra.mxu0 %v1949
    %2576 = vmatprep.subr.bf16.mxu0 %v1946
    %2577 = vmatpush1.bf16.msra.mxu0 %v1945
    %2578 = vmatprep.subr.bf16.mxu0 %v1942
    %2579 = vmatpush1.bf16.msra.mxu0 %v1941
    %2580 = vmatprep.subr.bf16.mxu0 %v1938
    %2581 = vmatpush1.bf16.msra.mxu0 %v1937
    %2582 = vmatprep.subr.bf16.mxu0 %v1934
    %2583 = vmatpush1.bf16.msra.mxu0 %v1933
    %2584 = vmatprep.subr.bf16.mxu0 %v1930
    %2585 = vmatpush1.bf16.msra.mxu0 %v1929
    %2586 = vmatprep.subr.bf16.mxu0 %v1990
    %2587 = vmatpush2.bf16.msra.mxu0 %v1989
    %2588 = vmatprep.subr.bf16.mxu0 %v1986
    %2589 = vmatpush2.bf16.msra.mxu0 %v1985
    %2590 = vmatprep.subr.bf16.mxu0 %v1982
    %2591 = vmatpush2.bf16.msra.mxu0 %v1981
    %2592 = vmatprep.subr.bf16.mxu0 %v1978
    %2593 = vmatpush2.bf16.msra.mxu0 %v1977
    %2594 = vmatprep.subr.bf16.mxu0 %v1974
    %2595 = vmatpush2.bf16.msra.mxu0 %v1973
    %2596 = vmatprep.subr.bf16.mxu0 %v1970
    %2597 = vmatpush2.bf16.msra.mxu0 %v1969
    %2598 = vmatprep.subr.bf16.mxu0 %v1966
    %2599 = vmatpush2.bf16.msra.mxu0 %v1965
    %2600 = vmatprep.subr.bf16.mxu0 %v1962
    %2601 = vmatpush2.bf16.msra.mxu0 %v1961
    %2602 = vmatprep.mubr.bf16.mxu0 %v844
    %2603 = vmatmul.mubr.bf16.gmra.mxu0 %v843
    %v2604 = vpop.f32.mrf.mxu0
    %v2605 = vadd.f32 %v2412, %v2604
    %v2606 = vpop.f32.mrf.mxu0
    %v2607 = vadd.f32 %v2414, %v2606
    %v2608 = vpop.f32.mrf.mxu0
    %v2609 = vadd.f32 %v2416, %v2608
    %v2610 = vpop.f32.mrf.mxu0
    %v2611 = vadd.f32 %v2418, %v2610
    %2612 = vmatprep.mubr.bf16.mxu0 %v852
    %2613 = vmatmul.mubr.bf16.gmra.mxu0 %v851
    %v2614 = vpop.f32.mrf.mxu0
    %v2615 = vadd.f32 %v2422, %v2614
    %v2616 = vpop.f32.mrf.mxu0
    %v2617 = vadd.f32 %v2424, %v2616
    %v2618 = vpop.f32.mrf.mxu0
    %v2619 = vadd.f32 %v2426, %v2618
    %v2620 = vpop.f32.mrf.mxu0
    %v2621 = vadd.f32 %v2428, %v2620
    %2622 = vmatprep.mubr.bf16.mxu0 %v860
    %2623 = vmatmul.mubr.bf16.gmra.mxu0 %v859
    %v2624 = vpop.f32.mrf.mxu0
    %v2625 = vadd.f32 %v2432, %v2624
    %v2626 = vpop.f32.mrf.mxu0
    %v2627 = vadd.f32 %v2434, %v2626
    %v2628 = vpop.f32.mrf.mxu0
    %v2629 = vadd.f32 %v2436, %v2628
    %v2630 = vpop.f32.mrf.mxu0
    %v2631 = vadd.f32 %v2438, %v2630
    %2632 = vmatprep.mubr.bf16.mxu0 %v868
    %2633 = vmatmul.mubr.bf16.gmra.mxu0 %v867
    %v2634 = vpop.f32.mrf.mxu0
    %v2635 = vadd.f32 %v2442, %v2634
    %v2636 = vpop.f32.mrf.mxu0
    %v2637 = vadd.f32 %v2444, %v2636
    %v2638 = vpop.f32.mrf.mxu0
    %v2639 = vadd.f32 %v2446, %v2638
    %v2640 = vpop.f32.mrf.mxu0
    %v2641 = vadd.f32 %v2448, %v2640
    %2642 = vmatprep.mubr.bf16.mxu0 %v876
    %2643 = vmatmul.mubr.bf16.gmra.mxu0 %v875
    %v2644 = vpop.f32.mrf.mxu0
    %v2645 = vadd.f32 %v2452, %v2644
    %v2646 = vpop.f32.mrf.mxu0
    %v2647 = vadd.f32 %v2454, %v2646
    %v2648 = vpop.f32.mrf.mxu0
    %v2649 = vadd.f32 %v2456, %v2648
    %v2650 = vpop.f32.mrf.mxu0
    %v2651 = vadd.f32 %v2458, %v2650
    %2652 = vmatprep.mubr.bf16.mxu0 %v884
    %2653 = vmatmul.mubr.bf16.gmra.mxu0 %v883
    %v2654 = vpop.f32.mrf.mxu0
    %v2655 = vadd.f32 %v2462, %v2654
    %v2656 = vpop.f32.mrf.mxu0
    %v2657 = vadd.f32 %v2464, %v2656
    %v2658 = vpop.f32.mrf.mxu0
    %v2659 = vadd.f32 %v2466, %v2658
    %v2660 = vpop.f32.mrf.mxu0
    %v2661 = vadd.f32 %v2468, %v2660
    %2662 = vmatprep.mubr.bf16.mxu0 %v892
    %2663 = vmatmul.mubr.bf16.gmra.mxu0 %v891
    %v2664 = vpop.f32.mrf.mxu0
    %v2665 = vadd.f32 %v2472, %v2664
    %v2666 = vpop.f32.mrf.mxu0
    %v2667 = vadd.f32 %v2474, %v2666
    %v2668 = vpop.f32.mrf.mxu0
    %v2669 = vadd.f32 %v2476, %v2668
    %v2670 = vpop.f32.mrf.mxu0
    %v2671 = vadd.f32 %v2478, %v2670
    %2672 = vmatprep.mubr.bf16.mxu0 %v900
    %2673 = vmatmul.mubr.bf16.gmra.mxu0 %v899
    %v2674 = vpop.f32.mrf.mxu0
    %v2675 = vadd.f32 %v2482, %v2674
    %v2676 = vpop.f32.mrf.mxu0
    %v2677 = vadd.f32 %v2484, %v2676
    %v2678 = vpop.f32.mrf.mxu0
    %v2679 = vadd.f32 %v2486, %v2678
    %v2680 = vpop.f32.mrf.mxu0
    %v2681 = vadd.f32 %v2488, %v2680
    %2682 = vmatprep.mubr.bf16.mxu0 %v908
    %2683 = vmatmul.mubr.bf16.gmra.mxu0 %v907
    %v2684 = vpop.f32.mrf.mxu0
    %v2685 = vadd.f32 %v2492, %v2684
    %v2686 = vpop.f32.mrf.mxu0
    %v2687 = vadd.f32 %v2494, %v2686
    %v2688 = vpop.f32.mrf.mxu0
    %v2689 = vadd.f32 %v2496, %v2688
    %v2690 = vpop.f32.mrf.mxu0
    %v2691 = vadd.f32 %v2498, %v2690
    %2692 = vmatprep.mubr.bf16.mxu0 %v916
    %2693 = vmatmul.mubr.bf16.gmra.mxu0 %v915
    %v2694 = vpop.f32.mrf.mxu0
    %v2695 = vadd.f32 %v2502, %v2694
    %v2696 = vpop.f32.mrf.mxu0
    %v2697 = vadd.f32 %v2504, %v2696
    %v2698 = vpop.f32.mrf.mxu0
    %v2699 = vadd.f32 %v2506, %v2698
    %v2700 = vpop.f32.mrf.mxu0
    %v2701 = vadd.f32 %v2508, %v2700
    %2702 = vmatprep.mubr.bf16.mxu0 %v924
    %2703 = vmatmul.mubr.bf16.gmra.mxu0 %v923
    %v2704 = vpop.f32.mrf.mxu0
    %v2705 = vadd.f32 %v2512, %v2704
    %v2706 = vpop.f32.mrf.mxu0
    %v2707 = vadd.f32 %v2514, %v2706
    %v2708 = vpop.f32.mrf.mxu0
    %v2709 = vadd.f32 %v2516, %v2708
    %v2710 = vpop.f32.mrf.mxu0
    %v2711 = vadd.f32 %v2518, %v2710
    %2712 = vmatprep.mubr.bf16.mxu0 %v932
    %2713 = vmatmul.mubr.bf16.gmra.mxu0 %v931
    %v2714 = vpop.f32.mrf.mxu0
    %v2715 = vadd.f32 %v2522, %v2714
    %v2716 = vpop.f32.mrf.mxu0
    %v2717 = vadd.f32 %v2524, %v2716
    %v2718 = vpop.f32.mrf.mxu0
    %v2719 = vadd.f32 %v2526, %v2718
    %v2720 = vpop.f32.mrf.mxu0
    %v2721 = vadd.f32 %v2528, %v2720
    %2722 = vmatprep.mubr.bf16.mxu0 %v940
    %2723 = vmatmul.mubr.bf16.gmra.mxu0 %v939
    %v2724 = vpop.f32.mrf.mxu0
    %v2725 = vadd.f32 %v2532, %v2724
    %v2726 = vpop.f32.mrf.mxu0
    %v2727 = vadd.f32 %v2534, %v2726
    %v2728 = vpop.f32.mrf.mxu0
    %v2729 = vadd.f32 %v2536, %v2728
    %v2730 = vpop.f32.mrf.mxu0
    %v2731 = vadd.f32 %v2538, %v2730
    %2732 = vmatprep.mubr.bf16.mxu0 %v948
    %2733 = vmatmul.mubr.bf16.gmra.mxu0 %v947
    %v2734 = vpop.f32.mrf.mxu0
    %v2735 = vadd.f32 %v2542, %v2734
    %v2736 = vpop.f32.mrf.mxu0
    %v2737 = vadd.f32 %v2544, %v2736
    %v2738 = vpop.f32.mrf.mxu0
    %v2739 = vadd.f32 %v2546, %v2738
    %v2740 = vpop.f32.mrf.mxu0
    %v2741 = vadd.f32 %v2548, %v2740
    %2742 = vmatprep.mubr.bf16.mxu0 %v956
    %2743 = vmatmul.mubr.bf16.gmra.mxu0 %v955
    %v2744 = vpop.f32.mrf.mxu0
    %v2745 = vadd.f32 %v2552, %v2744
    %v2746 = vpop.f32.mrf.mxu0
    %v2747 = vadd.f32 %v2554, %v2746
    %v2748 = vpop.f32.mrf.mxu0
    %v2749 = vadd.f32 %v2556, %v2748
    %v2750 = vpop.f32.mrf.mxu0
    %v2751 = vadd.f32 %v2558, %v2750
    %2752 = vmatprep.mubr.bf16.mxu0 %v964
    %2753 = vmatmul.mubr.bf16.gmra.mxu0 %v963
    %v2754 = vpop.f32.mrf.mxu0
    %v2755 = vadd.f32 %v2562, %v2754
    %v2756 = vpop.f32.mrf.mxu0
    %v2757 = vadd.f32 %v2564, %v2756
    %v2758 = vpop.f32.mrf.mxu0
    %v2759 = vadd.f32 %v2566, %v2758
    %v2760 = vpop.f32.mrf.mxu0
    %v2761 = vadd.f32 %v2568, %v2760
    %2762 = vdwg.mxu0
    %2763 = vmatprep.subr.bf16.mxu0 %v2022
    %2764 = vmatpush1.bf16.msra.mxu0 %v2021
    %2765 = vmatprep.subr.bf16.mxu0 %v2018
    %2766 = vmatpush1.bf16.msra.mxu0 %v2017
    %2767 = vmatprep.subr.bf16.mxu0 %v2014
    %2768 = vmatpush1.bf16.msra.mxu0 %v2013
    %2769 = vmatprep.subr.bf16.mxu0 %v2010
    %2770 = vmatpush1.bf16.msra.mxu0 %v2009
    %2771 = vmatprep.subr.bf16.mxu0 %v2006
    %2772 = vmatpush1.bf16.msra.mxu0 %v2005
    %2773 = vmatprep.subr.bf16.mxu0 %v2002
    %2774 = vmatpush1.bf16.msra.mxu0 %v2001
    %2775 = vmatprep.subr.bf16.mxu0 %v1998
    %2776 = vmatpush1.bf16.msra.mxu0 %v1997
    %2777 = vmatprep.subr.bf16.mxu0 %v1994
    %2778 = vmatpush1.bf16.msra.mxu0 %v1993
    %2779 = vmatprep.subr.bf16.mxu0 %v2054
    %2780 = vmatpush2.bf16.msra.mxu0 %v2053
    %2781 = vmatprep.subr.bf16.mxu0 %v2050
    %2782 = vmatpush2.bf16.msra.mxu0 %v2049
    %2783 = vmatprep.subr.bf16.mxu0 %v2046
    %2784 = vmatpush2.bf16.msra.mxu0 %v2045
    %2785 = vmatprep.subr.bf16.mxu0 %v2042
    %2786 = vmatpush2.bf16.msra.mxu0 %v2041
    %2787 = vmatprep.subr.bf16.mxu0 %v2038
    %2788 = vmatpush2.bf16.msra.mxu0 %v2037
    %2789 = vmatprep.subr.bf16.mxu0 %v2034
    %2790 = vmatpush2.bf16.msra.mxu0 %v2033
    %2791 = vmatprep.subr.bf16.mxu0 %v2030
    %2792 = vmatpush2.bf16.msra.mxu0 %v2029
    %2793 = vmatprep.subr.bf16.mxu0 %v2026
    %2794 = vmatpush2.bf16.msra.mxu0 %v2025
    %2795 = vmatprep.mubr.bf16.mxu0 %v846
    %2796 = vmatmul.mubr.bf16.gmra.mxu0 %v845
    %v2797 = vpop.f32.mrf.mxu0
    %v2798 = vadd.f32 %v2605, %v2797
    %v2799 = vpop.f32.mrf.mxu0
    %v2800 = vadd.f32 %v2607, %v2799
    %v2801 = vpop.f32.mrf.mxu0
    %v2802 = vadd.f32 %v2609, %v2801
    %v2803 = vpop.f32.mrf.mxu0
    %v2804 = vadd.f32 %v2611, %v2803
    %2805 = vmatprep.mubr.bf16.mxu0 %v854
    %2806 = vmatmul.mubr.bf16.gmra.mxu0 %v853
    %v2807 = vpop.f32.mrf.mxu0
    %v2808 = vadd.f32 %v2615, %v2807
    %v2809 = vpop.f32.mrf.mxu0
    %v2810 = vadd.f32 %v2617, %v2809
    %v2811 = vpop.f32.mrf.mxu0
    %v2812 = vadd.f32 %v2619, %v2811
    %v2813 = vpop.f32.mrf.mxu0
    %v2814 = vadd.f32 %v2621, %v2813
    %2815 = vmatprep.mubr.bf16.mxu0 %v862
    %2816 = vmatmul.mubr.bf16.gmra.mxu0 %v861
    %v2817 = vpop.f32.mrf.mxu0
    %v2818 = vadd.f32 %v2625, %v2817
    %v2819 = vpop.f32.mrf.mxu0
    %v2820 = vadd.f32 %v2627, %v2819
    %v2821 = vpop.f32.mrf.mxu0
    %v2822 = vadd.f32 %v2629, %v2821
    %v2823 = vpop.f32.mrf.mxu0
    %v2824 = vadd.f32 %v2631, %v2823
    %2825 = vmatprep.mubr.bf16.mxu0 %v870
    %2826 = vmatmul.mubr.bf16.gmra.mxu0 %v869
    %v2827 = vpop.f32.mrf.mxu0
    %v2828 = vadd.f32 %v2635, %v2827
    %v2829 = vpop.f32.mrf.mxu0
    %v2830 = vadd.f32 %v2637, %v2829
    %v2831 = vpop.f32.mrf.mxu0
    %v2832 = vadd.f32 %v2639, %v2831
    %v2833 = vpop.f32.mrf.mxu0
    %v2834 = vadd.f32 %v2641, %v2833
    %2835 = vmatprep.mubr.bf16.mxu0 %v878
    %2836 = vmatmul.mubr.bf16.gmra.mxu0 %v877
    %v2837 = vpop.f32.mrf.mxu0
    %v2838 = vadd.f32 %v2645, %v2837
    %v2839 = vpop.f32.mrf.mxu0
    %v2840 = vadd.f32 %v2647, %v2839
    %v2841 = vpop.f32.mrf.mxu0
    %v2842 = vadd.f32 %v2649, %v2841
    %v2843 = vpop.f32.mrf.mxu0
    %v2844 = vadd.f32 %v2651, %v2843
    %2845 = vmatprep.mubr.bf16.mxu0 %v886
    %2846 = vmatmul.mubr.bf16.gmra.mxu0 %v885
    %v2847 = vpop.f32.mrf.mxu0
    %v2848 = vadd.f32 %v2655, %v2847
    %v2849 = vpop.f32.mrf.mxu0
    %v2850 = vadd.f32 %v2657, %v2849
    %v2851 = vpop.f32.mrf.mxu0
    %v2852 = vadd.f32 %v2659, %v2851
    %v2853 = vpop.f32.mrf.mxu0
    %v2854 = vadd.f32 %v2661, %v2853
    %2855 = vmatprep.mubr.bf16.mxu0 %v894
    %2856 = vmatmul.mubr.bf16.gmra.mxu0 %v893
    %v2857 = vpop.f32.mrf.mxu0
    %v2858 = vadd.f32 %v2665, %v2857
    %v2859 = vpop.f32.mrf.mxu0
    %v2860 = vadd.f32 %v2667, %v2859
    %v2861 = vpop.f32.mrf.mxu0
    %v2862 = vadd.f32 %v2669, %v2861
    %v2863 = vpop.f32.mrf.mxu0
    %v2864 = vadd.f32 %v2671, %v2863
    %2865 = vmatprep.mubr.bf16.mxu0 %v902
    %2866 = vmatmul.mubr.bf16.gmra.mxu0 %v901
    %v2867 = vpop.f32.mrf.mxu0
    %v2868 = vadd.f32 %v2675, %v2867
    %v2869 = vpop.f32.mrf.mxu0
    %v2870 = vadd.f32 %v2677, %v2869
    %v2871 = vpop.f32.mrf.mxu0
    %v2872 = vadd.f32 %v2679, %v2871
    %v2873 = vpop.f32.mrf.mxu0
    %v2874 = vadd.f32 %v2681, %v2873
    %2875 = vmatprep.mubr.bf16.mxu0 %v910
    %2876 = vmatmul.mubr.bf16.gmra.mxu0 %v909
    %v2877 = vpop.f32.mrf.mxu0
    %v2878 = vadd.f32 %v2685, %v2877
    %v2879 = vpop.f32.mrf.mxu0
    %v2880 = vadd.f32 %v2687, %v2879
    %v2881 = vpop.f32.mrf.mxu0
    %v2882 = vadd.f32 %v2689, %v2881
    %v2883 = vpop.f32.mrf.mxu0
    %v2884 = vadd.f32 %v2691, %v2883
    %2885 = vmatprep.mubr.bf16.mxu0 %v918
    %2886 = vmatmul.mubr.bf16.gmra.mxu0 %v917
    %v2887 = vpop.f32.mrf.mxu0
    %v2888 = vadd.f32 %v2695, %v2887
    %v2889 = vpop.f32.mrf.mxu0
    %v2890 = vadd.f32 %v2697, %v2889
    %v2891 = vpop.f32.mrf.mxu0
    %v2892 = vadd.f32 %v2699, %v2891
    %v2893 = vpop.f32.mrf.mxu0
    %v2894 = vadd.f32 %v2701, %v2893
    %2895 = vmatprep.mubr.bf16.mxu0 %v926
    %2896 = vmatmul.mubr.bf16.gmra.mxu0 %v925
    %v2897 = vpop.f32.mrf.mxu0
    %v2898 = vadd.f32 %v2705, %v2897
    %v2899 = vpop.f32.mrf.mxu0
    %v2900 = vadd.f32 %v2707, %v2899
    %v2901 = vpop.f32.mrf.mxu0
    %v2902 = vadd.f32 %v2709, %v2901
    %v2903 = vpop.f32.mrf.mxu0
    %v2904 = vadd.f32 %v2711, %v2903
    %2905 = vmatprep.mubr.bf16.mxu0 %v934
    %2906 = vmatmul.mubr.bf16.gmra.mxu0 %v933
    %v2907 = vpop.f32.mrf.mxu0
    %v2908 = vadd.f32 %v2715, %v2907
    %v2909 = vpop.f32.mrf.mxu0
    %v2910 = vadd.f32 %v2717, %v2909
    %v2911 = vpop.f32.mrf.mxu0
    %v2912 = vadd.f32 %v2719, %v2911
    %v2913 = vpop.f32.mrf.mxu0
    %v2914 = vadd.f32 %v2721, %v2913
    %2915 = vmatprep.mubr.bf16.mxu0 %v942
    %2916 = vmatmul.mubr.bf16.gmra.mxu0 %v941
    %v2917 = vpop.f32.mrf.mxu0
    %v2918 = vadd.f32 %v2725, %v2917
    %v2919 = vpop.f32.mrf.mxu0
    %v2920 = vadd.f32 %v2727, %v2919
    %v2921 = vpop.f32.mrf.mxu0
    %v2922 = vadd.f32 %v2729, %v2921
    %v2923 = vpop.f32.mrf.mxu0
    %v2924 = vadd.f32 %v2731, %v2923
    %2925 = vmatprep.mubr.bf16.mxu0 %v950
    %2926 = vmatmul.mubr.bf16.gmra.mxu0 %v949
    %v2927 = vpop.f32.mrf.mxu0
    %v2928 = vadd.f32 %v2735, %v2927
    %v2929 = vpop.f32.mrf.mxu0
    %v2930 = vadd.f32 %v2737, %v2929
    %v2931 = vpop.f32.mrf.mxu0
    %v2932 = vadd.f32 %v2739, %v2931
    %v2933 = vpop.f32.mrf.mxu0
    %v2934 = vadd.f32 %v2741, %v2933
    %2935 = vmatprep.mubr.bf16.mxu0 %v958
    %2936 = vmatmul.mubr.bf16.gmra.mxu0 %v957
    %v2937 = vpop.f32.mrf.mxu0
    %v2938 = vadd.f32 %v2745, %v2937
    %v2939 = vpop.f32.mrf.mxu0
    %v2940 = vadd.f32 %v2747, %v2939
    %v2941 = vpop.f32.mrf.mxu0
    %v2942 = vadd.f32 %v2749, %v2941
    %v2943 = vpop.f32.mrf.mxu0
    %v2944 = vadd.f32 %v2751, %v2943
    %2945 = vmatprep.mubr.bf16.mxu0 %v966
    %2946 = vmatmul.mubr.bf16.gmra.mxu0 %v965
    %v2947 = vpop.f32.mrf.mxu0
    %v2948 = vadd.f32 %v2755, %v2947
    %v2949 = vpop.f32.mrf.mxu0
    %v2950 = vadd.f32 %v2757, %v2949
    %v2951 = vpop.f32.mrf.mxu0
    %v2952 = vadd.f32 %v2759, %v2951
    %v2953 = vpop.f32.mrf.mxu0
    %v2954 = vadd.f32 %v2761, %v2953
    %2955 = vdwg.mxu0
    %2956 = vmatprep.subr.bf16.mxu0 %v2086
    %2957 = vmatpush1.bf16.msra.mxu0 %v2085
    %2958 = vmatprep.subr.bf16.mxu0 %v2082
    %2959 = vmatpush1.bf16.msra.mxu0 %v2081
    %2960 = vmatprep.subr.bf16.mxu0 %v2078
    %2961 = vmatpush1.bf16.msra.mxu0 %v2077
    %2962 = vmatprep.subr.bf16.mxu0 %v2074
    %2963 = vmatpush1.bf16.msra.mxu0 %v2073
    %2964 = vmatprep.subr.bf16.mxu0 %v2070
    %2965 = vmatpush1.bf16.msra.mxu0 %v2069
    %2966 = vmatprep.subr.bf16.mxu0 %v2066
    %2967 = vmatpush1.bf16.msra.mxu0 %v2065
    %2968 = vmatprep.subr.bf16.mxu0 %v2062
    %2969 = vmatpush1.bf16.msra.mxu0 %v2061
    %2970 = vmatprep.subr.bf16.mxu0 %v2058
    %2971 = vmatpush1.bf16.msra.mxu0 %v2057
    %2972 = vmatprep.subr.bf16.mxu0 %v2118
    %2973 = vmatpush2.bf16.msra.mxu0 %v2117
    %2974 = vmatprep.subr.bf16.mxu0 %v2114
    %2975 = vmatpush2.bf16.msra.mxu0 %v2113
    %2976 = vmatprep.subr.bf16.mxu0 %v2110
    %2977 = vmatpush2.bf16.msra.mxu0 %v2109
    %2978 = vmatprep.subr.bf16.mxu0 %v2106
    %2979 = vmatpush2.bf16.msra.mxu0 %v2105
    %2980 = vmatprep.subr.bf16.mxu0 %v2102
    %2981 = vmatpush2.bf16.msra.mxu0 %v2101
    %2982 = vmatprep.subr.bf16.mxu0 %v2098
    %2983 = vmatpush2.bf16.msra.mxu0 %v2097
    %2984 = vmatprep.subr.bf16.mxu0 %v2094
    %2985 = vmatpush2.bf16.msra.mxu0 %v2093
    %2986 = vmatprep.subr.bf16.mxu0 %v2090
    %2987 = vmatpush2.bf16.msra.mxu0 %v2089
    %2988 = vmatprep.mubr.bf16.mxu0 %v848
    %2989 = vmatmul.mubr.bf16.gmra.mxu0 %v847
    %v2990 = vpop.f32.mrf.mxu0
    %v2991 = vadd.f32 %v2798, %v2990
    %v2992 = vpop.f32.mrf.mxu0
    %v2993 = vadd.f32 %v2800, %v2992
    %v2994 = vpop.f32.mrf.mxu0
    %v2995 = vadd.f32 %v2802, %v2994
    %v2996 = vpop.f32.mrf.mxu0
    %v2997 = vadd.f32 %v2804, %v2996
    %2998 = vmatprep.mubr.bf16.mxu0 %v856
    %2999 = vmatmul.mubr.bf16.gmra.mxu0 %v855
    %v3000 = vpop.f32.mrf.mxu0
    %v3001 = vadd.f32 %v2808, %v3000
    %v3002 = vpop.f32.mrf.mxu0
    %v3003 = vadd.f32 %v2810, %v3002
    %v3004 = vpop.f32.mrf.mxu0
    %v3005 = vadd.f32 %v2812, %v3004
    %v3006 = vpop.f32.mrf.mxu0
    %v3007 = vadd.f32 %v2814, %v3006
    %3008 = vmatprep.mubr.bf16.mxu0 %v864
    %3009 = vmatmul.mubr.bf16.gmra.mxu0 %v863
    %v3010 = vpop.f32.mrf.mxu0
    %v3011 = vadd.f32 %v2818, %v3010
    %v3012 = vpop.f32.mrf.mxu0
    %v3013 = vadd.f32 %v2820, %v3012
    %v3014 = vpop.f32.mrf.mxu0
    %v3015 = vadd.f32 %v2822, %v3014
    %v3016 = vpop.f32.mrf.mxu0
    %v3017 = vadd.f32 %v2824, %v3016
    %3018 = vmatprep.mubr.bf16.mxu0 %v872
    %3019 = vmatmul.mubr.bf16.gmra.mxu0 %v871
    %v3020 = vpop.f32.mrf.mxu0
    %v3021 = vadd.f32 %v2828, %v3020
    %v3022 = vpop.f32.mrf.mxu0
    %v3023 = vadd.f32 %v2830, %v3022
    %v3024 = vpop.f32.mrf.mxu0
    %v3025 = vadd.f32 %v2832, %v3024
    %v3026 = vpop.f32.mrf.mxu0
    %v3027 = vadd.f32 %v2834, %v3026
    %3028 = vmatprep.mubr.bf16.mxu0 %v880
    %3029 = vmatmul.mubr.bf16.gmra.mxu0 %v879
    %v3030 = vpop.f32.mrf.mxu0
    %v3031 = vadd.f32 %v2838, %v3030
    %v3032 = vpop.f32.mrf.mxu0
    %v3033 = vadd.f32 %v2840, %v3032
    %v3034 = vpop.f32.mrf.mxu0
    %v3035 = vadd.f32 %v2842, %v3034
    %v3036 = vpop.f32.mrf.mxu0
    %v3037 = vadd.f32 %v2844, %v3036
    %3038 = vmatprep.mubr.bf16.mxu0 %v888
    %3039 = vmatmul.mubr.bf16.gmra.mxu0 %v887
    %v3040 = vpop.f32.mrf.mxu0
    %v3041 = vadd.f32 %v2848, %v3040
    %v3042 = vpop.f32.mrf.mxu0
    %v3043 = vadd.f32 %v2850, %v3042
    %v3044 = vpop.f32.mrf.mxu0
    %v3045 = vadd.f32 %v2852, %v3044
    %v3046 = vpop.f32.mrf.mxu0
    %v3047 = vadd.f32 %v2854, %v3046
    %3048 = vmatprep.mubr.bf16.mxu0 %v896
    %3049 = vmatmul.mubr.bf16.gmra.mxu0 %v895
    %v3050 = vpop.f32.mrf.mxu0
    %v3051 = vadd.f32 %v2858, %v3050
    %v3052 = vpop.f32.mrf.mxu0
    %v3053 = vadd.f32 %v2860, %v3052
    %v3054 = vpop.f32.mrf.mxu0
    %v3055 = vadd.f32 %v2862, %v3054
    %v3056 = vpop.f32.mrf.mxu0
    %v3057 = vadd.f32 %v2864, %v3056
    %3058 = vmatprep.mubr.bf16.mxu0 %v904
    %3059 = vmatmul.mubr.bf16.gmra.mxu0 %v903
    %v3060 = vpop.f32.mrf.mxu0
    %v3061 = vadd.f32 %v2868, %v3060
    %v3062 = vpop.f32.mrf.mxu0
    %v3063 = vadd.f32 %v2870, %v3062
    %v3064 = vpop.f32.mrf.mxu0
    %v3065 = vadd.f32 %v2872, %v3064
    %v3066 = vpop.f32.mrf.mxu0
    %v3067 = vadd.f32 %v2874, %v3066
    %3068 = vmatprep.mubr.bf16.mxu0 %v912
    %3069 = vmatmul.mubr.bf16.gmra.mxu0 %v911
    %v3070 = vpop.f32.mrf.mxu0
    %v3071 = vadd.f32 %v2878, %v3070
    %v3072 = vpop.f32.mrf.mxu0
    %v3073 = vadd.f32 %v2880, %v3072
    %v3074 = vpop.f32.mrf.mxu0
    %v3075 = vadd.f32 %v2882, %v3074
    %v3076 = vpop.f32.mrf.mxu0
    %v3077 = vadd.f32 %v2884, %v3076
    %3078 = vmatprep.mubr.bf16.mxu0 %v920
    %3079 = vmatmul.mubr.bf16.gmra.mxu0 %v919
    %v3080 = vpop.f32.mrf.mxu0
    %v3081 = vadd.f32 %v2888, %v3080
    %v3082 = vpop.f32.mrf.mxu0
    %v3083 = vadd.f32 %v2890, %v3082
    %v3084 = vpop.f32.mrf.mxu0
    %v3085 = vadd.f32 %v2892, %v3084
    %v3086 = vpop.f32.mrf.mxu0
    %v3087 = vadd.f32 %v2894, %v3086
    %3088 = vmatprep.mubr.bf16.mxu0 %v928
    %3089 = vmatmul.mubr.bf16.gmra.mxu0 %v927
    %v3090 = vpop.f32.mrf.mxu0
    %v3091 = vadd.f32 %v2898, %v3090
    %v3092 = vpop.f32.mrf.mxu0
    %v3093 = vadd.f32 %v2900, %v3092
    %v3094 = vpop.f32.mrf.mxu0
    %v3095 = vadd.f32 %v2902, %v3094
    %v3096 = vpop.f32.mrf.mxu0
    %v3097 = vadd.f32 %v2904, %v3096
    %3098 = vmatprep.mubr.bf16.mxu0 %v936
    %3099 = vmatmul.mubr.bf16.gmra.mxu0 %v935
    %v3100 = vpop.f32.mrf.mxu0
    %v3101 = vadd.f32 %v2908, %v3100
    %v3102 = vpop.f32.mrf.mxu0
    %v3103 = vadd.f32 %v2910, %v3102
    %v3104 = vpop.f32.mrf.mxu0
    %v3105 = vadd.f32 %v2912, %v3104
    %v3106 = vpop.f32.mrf.mxu0
    %v3107 = vadd.f32 %v2914, %v3106
    %3108 = vmatprep.mubr.bf16.mxu0 %v944
    %3109 = vmatmul.mubr.bf16.gmra.mxu0 %v943
    %v3110 = vpop.f32.mrf.mxu0
    %v3111 = vadd.f32 %v2918, %v3110
    %v3112 = vpop.f32.mrf.mxu0
    %v3113 = vadd.f32 %v2920, %v3112
    %v3114 = vpop.f32.mrf.mxu0
    %v3115 = vadd.f32 %v2922, %v3114
    %v3116 = vpop.f32.mrf.mxu0
    %v3117 = vadd.f32 %v2924, %v3116
    %3118 = vmatprep.mubr.bf16.mxu0 %v952
    %3119 = vmatmul.mubr.bf16.gmra.mxu0 %v951
    %v3120 = vpop.f32.mrf.mxu0
    %v3121 = vadd.f32 %v2928, %v3120
    %v3122 = vpop.f32.mrf.mxu0
    %v3123 = vadd.f32 %v2930, %v3122
    %v3124 = vpop.f32.mrf.mxu0
    %v3125 = vadd.f32 %v2932, %v3124
    %v3126 = vpop.f32.mrf.mxu0
    %v3127 = vadd.f32 %v2934, %v3126
    %3128 = vmatprep.mubr.bf16.mxu0 %v960
    %3129 = vmatmul.mubr.bf16.gmra.mxu0 %v959
    %v3130 = vpop.f32.mrf.mxu0
    %v3131 = vadd.f32 %v2938, %v3130
    %v3132 = vpop.f32.mrf.mxu0
    %v3133 = vadd.f32 %v2940, %v3132
    %v3134 = vpop.f32.mrf.mxu0
    %v3135 = vadd.f32 %v2942, %v3134
    %v3136 = vpop.f32.mrf.mxu0
    %v3137 = vadd.f32 %v2944, %v3136
    %3138 = vmatprep.mubr.bf16.mxu0 %v968
    %3139 = vmatmul.mubr.bf16.gmra.mxu0 %v967
    %v3140 = vpop.f32.mrf.mxu0
    %v3141 = vadd.f32 %v2948, %v3140
    %v3142 = vpop.f32.mrf.mxu0
    %v3143 = vadd.f32 %v2950, %v3142
    %v3144 = vpop.f32.mrf.mxu0
    %v3145 = vadd.f32 %v2952, %v3144
    %v3146 = vpop.f32.mrf.mxu0
    %v3147 = vadd.f32 %v2954, %v3146
    %3148 = vdwg.mxu0
    %3149 = vmatprep.subr.bf16.mxu0 %v1896
    %3150 = vmatpush1.bf16.msra.mxu0 %v1895
    %3151 = vmatprep.subr.bf16.mxu0 %v1892
    %3152 = vmatpush1.bf16.msra.mxu0 %v1891
    %3153 = vmatprep.subr.bf16.mxu0 %v1888
    %3154 = vmatpush1.bf16.msra.mxu0 %v1887
    %3155 = vmatprep.subr.bf16.mxu0 %v1884
    %3156 = vmatpush1.bf16.msra.mxu0 %v1883
    %3157 = vmatprep.subr.bf16.mxu0 %v1880
    %3158 = vmatpush1.bf16.msra.mxu0 %v1879
    %3159 = vmatprep.subr.bf16.mxu0 %v1876
    %3160 = vmatpush1.bf16.msra.mxu0 %v1875
    %3161 = vmatprep.subr.bf16.mxu0 %v1872
    %3162 = vmatpush1.bf16.msra.mxu0 %v1871
    %3163 = vmatprep.subr.bf16.mxu0 %v1868
    %3164 = vmatpush1.bf16.msra.mxu0 %v1867
    %3165 = vmatprep.subr.bf16.mxu0 %v1928
    %3166 = vmatpush2.bf16.msra.mxu0 %v1927
    %3167 = vmatprep.subr.bf16.mxu0 %v1924
    %3168 = vmatpush2.bf16.msra.mxu0 %v1923
    %3169 = vmatprep.subr.bf16.mxu0 %v1920
    %3170 = vmatpush2.bf16.msra.mxu0 %v1919
    %3171 = vmatprep.subr.bf16.mxu0 %v1916
    %3172 = vmatpush2.bf16.msra.mxu0 %v1915
    %3173 = vmatprep.subr.bf16.mxu0 %v1912
    %3174 = vmatpush2.bf16.msra.mxu0 %v1911
    %3175 = vmatprep.subr.bf16.mxu0 %v1908
    %3176 = vmatpush2.bf16.msra.mxu0 %v1907
    %3177 = vmatprep.subr.bf16.mxu0 %v1904
    %3178 = vmatpush2.bf16.msra.mxu0 %v1903
    %3179 = vmatprep.subr.bf16.mxu0 %v1900
    %3180 = vmatpush2.bf16.msra.mxu0 %v1899
    %3181 = vmatprep.mubr.bf16.mxu0 %v842
    %3182 = vmatmul.mubr.bf16.gmra.mxu0 %v841
    %v3183 = vpop.f32.mrf.mxu0
    %v3184 = vadd.f32 %v448, %v3183
    %v3185 = vpop.f32.mrf.mxu0
    %v3186 = vadd.f32 %v452, %v3185
    %v3187 = vpop.f32.mrf.mxu0
    %v3188 = vadd.f32 %v448, %v3187
    %v3189 = vpop.f32.mrf.mxu0
    %v3190 = vadd.f32 %v452, %v3189
    %3191 = vmatprep.mubr.bf16.mxu0 %v850
    %3192 = vmatmul.mubr.bf16.gmra.mxu0 %v849
    %v3193 = vpop.f32.mrf.mxu0
    %v3194 = vadd.f32 %v448, %v3193
    %v3195 = vpop.f32.mrf.mxu0
    %v3196 = vadd.f32 %v452, %v3195
    %v3197 = vpop.f32.mrf.mxu0
    %v3198 = vadd.f32 %v448, %v3197
    %v3199 = vpop.f32.mrf.mxu0
    %v3200 = vadd.f32 %v452, %v3199
    %3201 = vmatprep.mubr.bf16.mxu0 %v858
    %3202 = vmatmul.mubr.bf16.gmra.mxu0 %v857
    %v3203 = vpop.f32.mrf.mxu0
    %v3204 = vadd.f32 %v448, %v3203
    %v3205 = vpop.f32.mrf.mxu0
    %v3206 = vadd.f32 %v452, %v3205
    %v3207 = vpop.f32.mrf.mxu0
    %v3208 = vadd.f32 %v448, %v3207
    %v3209 = vpop.f32.mrf.mxu0
    %v3210 = vadd.f32 %v452, %v3209
    %3211 = vmatprep.mubr.bf16.mxu0 %v866
    %3212 = vmatmul.mubr.bf16.gmra.mxu0 %v865
    %v3213 = vpop.f32.mrf.mxu0
    %v3214 = vadd.f32 %v448, %v3213
    %v3215 = vpop.f32.mrf.mxu0
    %v3216 = vadd.f32 %v452, %v3215
    %v3217 = vpop.f32.mrf.mxu0
    %v3218 = vadd.f32 %v448, %v3217
    %v3219 = vpop.f32.mrf.mxu0
    %v3220 = vadd.f32 %v452, %v3219
    %3221 = vmatprep.mubr.bf16.mxu0 %v874
    %3222 = vmatmul.mubr.bf16.gmra.mxu0 %v873
    %v3223 = vpop.f32.mrf.mxu0
    %v3224 = vadd.f32 %v448, %v3223
    %v3225 = vpop.f32.mrf.mxu0
    %v3226 = vadd.f32 %v452, %v3225
    %v3227 = vpop.f32.mrf.mxu0
    %v3228 = vadd.f32 %v448, %v3227
    %v3229 = vpop.f32.mrf.mxu0
    %v3230 = vadd.f32 %v452, %v3229
    %3231 = vmatprep.mubr.bf16.mxu0 %v882
    %3232 = vmatmul.mubr.bf16.gmra.mxu0 %v881
    %v3233 = vpop.f32.mrf.mxu0
    %v3234 = vadd.f32 %v448, %v3233
    %v3235 = vpop.f32.mrf.mxu0
    %v3236 = vadd.f32 %v452, %v3235
    %v3237 = vpop.f32.mrf.mxu0
    %v3238 = vadd.f32 %v448, %v3237
    %v3239 = vpop.f32.mrf.mxu0
    %v3240 = vadd.f32 %v452, %v3239
    %3241 = vmatprep.mubr.bf16.mxu0 %v890
    %3242 = vmatmul.mubr.bf16.gmra.mxu0 %v889
    %v3243 = vpop.f32.mrf.mxu0
    %v3244 = vadd.f32 %v448, %v3243
    %v3245 = vpop.f32.mrf.mxu0
    %v3246 = vadd.f32 %v452, %v3245
    %v3247 = vpop.f32.mrf.mxu0
    %v3248 = vadd.f32 %v448, %v3247
    %v3249 = vpop.f32.mrf.mxu0
    %v3250 = vadd.f32 %v452, %v3249
    %3251 = vmatprep.mubr.bf16.mxu0 %v898
    %3252 = vmatmul.mubr.bf16.gmra.mxu0 %v897
    %v3253 = vpop.f32.mrf.mxu0
    %v3254 = vadd.f32 %v448, %v3253
    %v3255 = vpop.f32.mrf.mxu0
    %v3256 = vadd.f32 %v452, %v3255
    %v3257 = vpop.f32.mrf.mxu0
    %v3258 = vadd.f32 %v448, %v3257
    %v3259 = vpop.f32.mrf.mxu0
    %v3260 = vadd.f32 %v452, %v3259
    %3261 = vmatprep.mubr.bf16.mxu0 %v906
    %3262 = vmatmul.mubr.bf16.gmra.mxu0 %v905
    %v3263 = vpop.f32.mrf.mxu0
    %v3264 = vadd.f32 %v448, %v3263
    %v3265 = vpop.f32.mrf.mxu0
    %v3266 = vadd.f32 %v452, %v3265
    %v3267 = vpop.f32.mrf.mxu0
    %v3268 = vadd.f32 %v448, %v3267
    %v3269 = vpop.f32.mrf.mxu0
    %v3270 = vadd.f32 %v452, %v3269
    %3271 = vmatprep.mubr.bf16.mxu0 %v914
    %3272 = vmatmul.mubr.bf16.gmra.mxu0 %v913
    %v3273 = vpop.f32.mrf.mxu0
    %v3274 = vadd.f32 %v448, %v3273
    %v3275 = vpop.f32.mrf.mxu0
    %v3276 = vadd.f32 %v452, %v3275
    %v3277 = vpop.f32.mrf.mxu0
    %v3278 = vadd.f32 %v448, %v3277
    %v3279 = vpop.f32.mrf.mxu0
    %v3280 = vadd.f32 %v452, %v3279
    %3281 = vmatprep.mubr.bf16.mxu0 %v922
    %3282 = vmatmul.mubr.bf16.gmra.mxu0 %v921
    %v3283 = vpop.f32.mrf.mxu0
    %v3284 = vadd.f32 %v448, %v3283
    %v3285 = vpop.f32.mrf.mxu0
    %v3286 = vadd.f32 %v452, %v3285
    %v3287 = vpop.f32.mrf.mxu0
    %v3288 = vadd.f32 %v448, %v3287
    %v3289 = vpop.f32.mrf.mxu0
    %v3290 = vadd.f32 %v452, %v3289
    %3291 = vmatprep.mubr.bf16.mxu0 %v930
    %3292 = vmatmul.mubr.bf16.gmra.mxu0 %v929
    %v3293 = vpop.f32.mrf.mxu0
    %v3294 = vadd.f32 %v448, %v3293
    %v3295 = vpop.f32.mrf.mxu0
    %v3296 = vadd.f32 %v452, %v3295
    %v3297 = vpop.f32.mrf.mxu0
    %v3298 = vadd.f32 %v448, %v3297
    %v3299 = vpop.f32.mrf.mxu0
    %v3300 = vadd.f32 %v452, %v3299
    %3301 = vmatprep.mubr.bf16.mxu0 %v938
    %3302 = vmatmul.mubr.bf16.gmra.mxu0 %v937
    %v3303 = vpop.f32.mrf.mxu0
    %v3304 = vadd.f32 %v448, %v3303
    %v3305 = vpop.f32.mrf.mxu0
    %v3306 = vadd.f32 %v452, %v3305
    %v3307 = vpop.f32.mrf.mxu0
    %v3308 = vadd.f32 %v448, %v3307
    %v3309 = vpop.f32.mrf.mxu0
    %v3310 = vadd.f32 %v452, %v3309
    %3311 = vmatprep.mubr.bf16.mxu0 %v946
    %3312 = vmatmul.mubr.bf16.gmra.mxu0 %v945
    %v3313 = vpop.f32.mrf.mxu0
    %v3314 = vadd.f32 %v448, %v3313
    %v3315 = vpop.f32.mrf.mxu0
    %v3316 = vadd.f32 %v452, %v3315
    %v3317 = vpop.f32.mrf.mxu0
    %v3318 = vadd.f32 %v448, %v3317
    %v3319 = vpop.f32.mrf.mxu0
    %v3320 = vadd.f32 %v452, %v3319
    %3321 = vmatprep.mubr.bf16.mxu0 %v954
    %3322 = vmatmul.mubr.bf16.gmra.mxu0 %v953
    %v3323 = vpop.f32.mrf.mxu0
    %v3324 = vadd.f32 %v448, %v3323
    %v3325 = vpop.f32.mrf.mxu0
    %v3326 = vadd.f32 %v452, %v3325
    %v3327 = vpop.f32.mrf.mxu0
    %v3328 = vadd.f32 %v448, %v3327
    %v3329 = vpop.f32.mrf.mxu0
    %v3330 = vadd.f32 %v452, %v3329
    %3331 = vmatprep.mubr.bf16.mxu0 %v962
    %3332 = vmatmul.mubr.bf16.gmra.mxu0 %v961
    %v3333 = vpop.f32.mrf.mxu0
    %v3334 = vadd.f32 %v448, %v3333
    %v3335 = vpop.f32.mrf.mxu0
    %v3336 = vadd.f32 %v452, %v3335
    %v3337 = vpop.f32.mrf.mxu0
    %v3338 = vadd.f32 %v448, %v3337
    %v3339 = vpop.f32.mrf.mxu0
    %v3340 = vadd.f32 %v452, %v3339
    %3341 = vdwg.mxu0
    %3342 = vmatprep.subr.bf16.mxu0 %v1960
    %3343 = vmatpush1.bf16.msra.mxu0 %v1959
    %3344 = vmatprep.subr.bf16.mxu0 %v1956
    %3345 = vmatpush1.bf16.msra.mxu0 %v1955
    %3346 = vmatprep.subr.bf16.mxu0 %v1952
    %3347 = vmatpush1.bf16.msra.mxu0 %v1951
    %3348 = vmatprep.subr.bf16.mxu0 %v1948
    %3349 = vmatpush1.bf16.msra.mxu0 %v1947
    %3350 = vmatprep.subr.bf16.mxu0 %v1944
    %3351 = vmatpush1.bf16.msra.mxu0 %v1943
    %3352 = vmatprep.subr.bf16.mxu0 %v1940
    %3353 = vmatpush1.bf16.msra.mxu0 %v1939
    %3354 = vmatprep.subr.bf16.mxu0 %v1936
    %3355 = vmatpush1.bf16.msra.mxu0 %v1935
    %3356 = vmatprep.subr.bf16.mxu0 %v1932
    %3357 = vmatpush1.bf16.msra.mxu0 %v1931
    %3358 = vmatprep.subr.bf16.mxu0 %v1992
    %3359 = vmatpush2.bf16.msra.mxu0 %v1991
    %3360 = vmatprep.subr.bf16.mxu0 %v1988
    %3361 = vmatpush2.bf16.msra.mxu0 %v1987
    %3362 = vmatprep.subr.bf16.mxu0 %v1984
    %3363 = vmatpush2.bf16.msra.mxu0 %v1983
    %3364 = vmatprep.subr.bf16.mxu0 %v1980
    %3365 = vmatpush2.bf16.msra.mxu0 %v1979
    %3366 = vmatprep.subr.bf16.mxu0 %v1976
    %3367 = vmatpush2.bf16.msra.mxu0 %v1975
    %3368 = vmatprep.subr.bf16.mxu0 %v1972
    %3369 = vmatpush2.bf16.msra.mxu0 %v1971
    %3370 = vmatprep.subr.bf16.mxu0 %v1968
    %3371 = vmatpush2.bf16.msra.mxu0 %v1967
    %3372 = vmatprep.subr.bf16.mxu0 %v1964
    %3373 = vmatpush2.bf16.msra.mxu0 %v1963
    %3374 = vmatprep.mubr.bf16.mxu0 %v844
    %3375 = vmatmul.mubr.bf16.gmra.mxu0 %v843
    %v3376 = vpop.f32.mrf.mxu0
    %v3377 = vadd.f32 %v3184, %v3376
    %v3378 = vpop.f32.mrf.mxu0
    %v3379 = vadd.f32 %v3186, %v3378
    %v3380 = vpop.f32.mrf.mxu0
    %v3381 = vadd.f32 %v3188, %v3380
    %v3382 = vpop.f32.mrf.mxu0
    %v3383 = vadd.f32 %v3190, %v3382
    %3384 = vmatprep.mubr.bf16.mxu0 %v852
    %3385 = vmatmul.mubr.bf16.gmra.mxu0 %v851
    %v3386 = vpop.f32.mrf.mxu0
    %v3387 = vadd.f32 %v3194, %v3386
    %v3388 = vpop.f32.mrf.mxu0
    %v3389 = vadd.f32 %v3196, %v3388
    %v3390 = vpop.f32.mrf.mxu0
    %v3391 = vadd.f32 %v3198, %v3390
    %v3392 = vpop.f32.mrf.mxu0
    %v3393 = vadd.f32 %v3200, %v3392
    %3394 = vmatprep.mubr.bf16.mxu0 %v860
    %3395 = vmatmul.mubr.bf16.gmra.mxu0 %v859
    %v3396 = vpop.f32.mrf.mxu0
    %v3397 = vadd.f32 %v3204, %v3396
    %v3398 = vpop.f32.mrf.mxu0
    %v3399 = vadd.f32 %v3206, %v3398
    %v3400 = vpop.f32.mrf.mxu0
    %v3401 = vadd.f32 %v3208, %v3400
    %v3402 = vpop.f32.mrf.mxu0
    %v3403 = vadd.f32 %v3210, %v3402
    %3404 = vmatprep.mubr.bf16.mxu0 %v868
    %3405 = vmatmul.mubr.bf16.gmra.mxu0 %v867
    %v3406 = vpop.f32.mrf.mxu0
    %v3407 = vadd.f32 %v3214, %v3406
    %v3408 = vpop.f32.mrf.mxu0
    %v3409 = vadd.f32 %v3216, %v3408
    %v3410 = vpop.f32.mrf.mxu0
    %v3411 = vadd.f32 %v3218, %v3410
    %v3412 = vpop.f32.mrf.mxu0
    %v3413 = vadd.f32 %v3220, %v3412
    %3414 = vmatprep.mubr.bf16.mxu0 %v876
    %3415 = vmatmul.mubr.bf16.gmra.mxu0 %v875
    %v3416 = vpop.f32.mrf.mxu0
    %v3417 = vadd.f32 %v3224, %v3416
    %v3418 = vpop.f32.mrf.mxu0
    %v3419 = vadd.f32 %v3226, %v3418
    %v3420 = vpop.f32.mrf.mxu0
    %v3421 = vadd.f32 %v3228, %v3420
    %v3422 = vpop.f32.mrf.mxu0
    %v3423 = vadd.f32 %v3230, %v3422
    %3424 = vmatprep.mubr.bf16.mxu0 %v884
    %3425 = vmatmul.mubr.bf16.gmra.mxu0 %v883
    %v3426 = vpop.f32.mrf.mxu0
    %v3427 = vadd.f32 %v3234, %v3426
    %v3428 = vpop.f32.mrf.mxu0
    %v3429 = vadd.f32 %v3236, %v3428
    %v3430 = vpop.f32.mrf.mxu0
    %v3431 = vadd.f32 %v3238, %v3430
    %v3432 = vpop.f32.mrf.mxu0
    %v3433 = vadd.f32 %v3240, %v3432
    %3434 = vmatprep.mubr.bf16.mxu0 %v892
    %3435 = vmatmul.mubr.bf16.gmra.mxu0 %v891
    %v3436 = vpop.f32.mrf.mxu0
    %v3437 = vadd.f32 %v3244, %v3436
    %v3438 = vpop.f32.mrf.mxu0
    %v3439 = vadd.f32 %v3246, %v3438
    %v3440 = vpop.f32.mrf.mxu0
    %v3441 = vadd.f32 %v3248, %v3440
    %v3442 = vpop.f32.mrf.mxu0
    %v3443 = vadd.f32 %v3250, %v3442
    %3444 = vmatprep.mubr.bf16.mxu0 %v900
    %3445 = vmatmul.mubr.bf16.gmra.mxu0 %v899
    %v3446 = vpop.f32.mrf.mxu0
    %v3447 = vadd.f32 %v3254, %v3446
    %v3448 = vpop.f32.mrf.mxu0
    %v3449 = vadd.f32 %v3256, %v3448
    %v3450 = vpop.f32.mrf.mxu0
    %v3451 = vadd.f32 %v3258, %v3450
    %v3452 = vpop.f32.mrf.mxu0
    %v3453 = vadd.f32 %v3260, %v3452
    %3454 = vmatprep.mubr.bf16.mxu0 %v908
    %3455 = vmatmul.mubr.bf16.gmra.mxu0 %v907
    %v3456 = vpop.f32.mrf.mxu0
    %v3457 = vadd.f32 %v3264, %v3456
    %v3458 = vpop.f32.mrf.mxu0
    %v3459 = vadd.f32 %v3266, %v3458
    %v3460 = vpop.f32.mrf.mxu0
    %v3461 = vadd.f32 %v3268, %v3460
    %v3462 = vpop.f32.mrf.mxu0
    %v3463 = vadd.f32 %v3270, %v3462
    %3464 = vmatprep.mubr.bf16.mxu0 %v916
    %3465 = vmatmul.mubr.bf16.gmra.mxu0 %v915
    %v3466 = vpop.f32.mrf.mxu0
    %v3467 = vadd.f32 %v3274, %v3466
    %v3468 = vpop.f32.mrf.mxu0
    %v3469 = vadd.f32 %v3276, %v3468
    %v3470 = vpop.f32.mrf.mxu0
    %v3471 = vadd.f32 %v3278, %v3470
    %v3472 = vpop.f32.mrf.mxu0
    %v3473 = vadd.f32 %v3280, %v3472
    %3474 = vmatprep.mubr.bf16.mxu0 %v924
    %3475 = vmatmul.mubr.bf16.gmra.mxu0 %v923
    %v3476 = vpop.f32.mrf.mxu0
    %v3477 = vadd.f32 %v3284, %v3476
    %v3478 = vpop.f32.mrf.mxu0
    %v3479 = vadd.f32 %v3286, %v3478
    %v3480 = vpop.f32.mrf.mxu0
    %v3481 = vadd.f32 %v3288, %v3480
    %v3482 = vpop.f32.mrf.mxu0
    %v3483 = vadd.f32 %v3290, %v3482
    %3484 = vmatprep.mubr.bf16.mxu0 %v932
    %3485 = vmatmul.mubr.bf16.gmra.mxu0 %v931
    %v3486 = vpop.f32.mrf.mxu0
    %v3487 = vadd.f32 %v3294, %v3486
    %v3488 = vpop.f32.mrf.mxu0
    %v3489 = vadd.f32 %v3296, %v3488
    %v3490 = vpop.f32.mrf.mxu0
    %v3491 = vadd.f32 %v3298, %v3490
    %v3492 = vpop.f32.mrf.mxu0
    %v3493 = vadd.f32 %v3300, %v3492
    %3494 = vmatprep.mubr.bf16.mxu0 %v940
    %3495 = vmatmul.mubr.bf16.gmra.mxu0 %v939
    %v3496 = vpop.f32.mrf.mxu0
    %v3497 = vadd.f32 %v3304, %v3496
    %v3498 = vpop.f32.mrf.mxu0
    %v3499 = vadd.f32 %v3306, %v3498
    %v3500 = vpop.f32.mrf.mxu0
    %v3501 = vadd.f32 %v3308, %v3500
    %v3502 = vpop.f32.mrf.mxu0
    %v3503 = vadd.f32 %v3310, %v3502
    %3504 = vmatprep.mubr.bf16.mxu0 %v948
    %3505 = vmatmul.mubr.bf16.gmra.mxu0 %v947
    %v3506 = vpop.f32.mrf.mxu0
    %v3507 = vadd.f32 %v3314, %v3506
    %v3508 = vpop.f32.mrf.mxu0
    %v3509 = vadd.f32 %v3316, %v3508
    %v3510 = vpop.f32.mrf.mxu0
    %v3511 = vadd.f32 %v3318, %v3510
    %v3512 = vpop.f32.mrf.mxu0
    %v3513 = vadd.f32 %v3320, %v3512
    %3514 = vmatprep.mubr.bf16.mxu0 %v956
    %3515 = vmatmul.mubr.bf16.gmra.mxu0 %v955
    %v3516 = vpop.f32.mrf.mxu0
    %v3517 = vadd.f32 %v3324, %v3516
    %v3518 = vpop.f32.mrf.mxu0
    %v3519 = vadd.f32 %v3326, %v3518
    %v3520 = vpop.f32.mrf.mxu0
    %v3521 = vadd.f32 %v3328, %v3520
    %v3522 = vpop.f32.mrf.mxu0
    %v3523 = vadd.f32 %v3330, %v3522
    %3524 = vmatprep.mubr.bf16.mxu0 %v964
    %3525 = vmatmul.mubr.bf16.gmra.mxu0 %v963
    %v3526 = vpop.f32.mrf.mxu0
    %v3527 = vadd.f32 %v3334, %v3526
    %v3528 = vpop.f32.mrf.mxu0
    %v3529 = vadd.f32 %v3336, %v3528
    %v3530 = vpop.f32.mrf.mxu0
    %v3531 = vadd.f32 %v3338, %v3530
    %v3532 = vpop.f32.mrf.mxu0
    %v3533 = vadd.f32 %v3340, %v3532
    %3534 = vdwg.mxu0
    %3535 = vmatprep.subr.bf16.mxu0 %v2024
    %3536 = vmatpush1.bf16.msra.mxu0 %v2023
    %3537 = vmatprep.subr.bf16.mxu0 %v2020
    %3538 = vmatpush1.bf16.msra.mxu0 %v2019
    %3539 = vmatprep.subr.bf16.mxu0 %v2016
    %3540 = vmatpush1.bf16.msra.mxu0 %v2015
    %3541 = vmatprep.subr.bf16.mxu0 %v2012
    %3542 = vmatpush1.bf16.msra.mxu0 %v2011
    %3543 = vmatprep.subr.bf16.mxu0 %v2008
    %3544 = vmatpush1.bf16.msra.mxu0 %v2007
    %3545 = vmatprep.subr.bf16.mxu0 %v2004
    %3546 = vmatpush1.bf16.msra.mxu0 %v2003
    %3547 = vmatprep.subr.bf16.mxu0 %v2000
    %3548 = vmatpush1.bf16.msra.mxu0 %v1999
    %3549 = vmatprep.subr.bf16.mxu0 %v1996
    %3550 = vmatpush1.bf16.msra.mxu0 %v1995
    %3551 = vmatprep.subr.bf16.mxu0 %v2056
    %3552 = vmatpush2.bf16.msra.mxu0 %v2055
    %3553 = vmatprep.subr.bf16.mxu0 %v2052
    %3554 = vmatpush2.bf16.msra.mxu0 %v2051
    %3555 = vmatprep.subr.bf16.mxu0 %v2048
    %3556 = vmatpush2.bf16.msra.mxu0 %v2047
    %3557 = vmatprep.subr.bf16.mxu0 %v2044
    %3558 = vmatpush2.bf16.msra.mxu0 %v2043
    %3559 = vmatprep.subr.bf16.mxu0 %v2040
    %3560 = vmatpush2.bf16.msra.mxu0 %v2039
    %3561 = vmatprep.subr.bf16.mxu0 %v2036
    %3562 = vmatpush2.bf16.msra.mxu0 %v2035
    %3563 = vmatprep.subr.bf16.mxu0 %v2032
    %3564 = vmatpush2.bf16.msra.mxu0 %v2031
    %3565 = vmatprep.subr.bf16.mxu0 %v2028
    %3566 = vmatpush2.bf16.msra.mxu0 %v2027
    %3567 = vmatprep.mubr.bf16.mxu0 %v846
    %3568 = vmatmul.mubr.bf16.gmra.mxu0 %v845
    %v3569 = vpop.f32.mrf.mxu0
    %v3570 = vadd.f32 %v3377, %v3569
    %v3571 = vpop.f32.mrf.mxu0
    %v3572 = vadd.f32 %v3379, %v3571
    %v3573 = vpop.f32.mrf.mxu0
    %v3574 = vadd.f32 %v3381, %v3573
    %v3575 = vpop.f32.mrf.mxu0
    %v3576 = vadd.f32 %v3383, %v3575
    %3577 = vmatprep.mubr.bf16.mxu0 %v854
    %3578 = vmatmul.mubr.bf16.gmra.mxu0 %v853
    %v3579 = vpop.f32.mrf.mxu0
    %v3580 = vadd.f32 %v3387, %v3579
    %v3581 = vpop.f32.mrf.mxu0
    %v3582 = vadd.f32 %v3389, %v3581
    %v3583 = vpop.f32.mrf.mxu0
    %v3584 = vadd.f32 %v3391, %v3583
    %v3585 = vpop.f32.mrf.mxu0
    %v3586 = vadd.f32 %v3393, %v3585
    %3587 = vmatprep.mubr.bf16.mxu0 %v862
    %3588 = vmatmul.mubr.bf16.gmra.mxu0 %v861
    %v3589 = vpop.f32.mrf.mxu0
    %v3590 = vadd.f32 %v3397, %v3589
    %v3591 = vpop.f32.mrf.mxu0
    %v3592 = vadd.f32 %v3399, %v3591
    %v3593 = vpop.f32.mrf.mxu0
    %v3594 = vadd.f32 %v3401, %v3593
    %v3595 = vpop.f32.mrf.mxu0
    %v3596 = vadd.f32 %v3403, %v3595
    %3597 = vmatprep.mubr.bf16.mxu0 %v870
    %3598 = vmatmul.mubr.bf16.gmra.mxu0 %v869
    %v3599 = vpop.f32.mrf.mxu0
    %v3600 = vadd.f32 %v3407, %v3599
    %v3601 = vpop.f32.mrf.mxu0
    %v3602 = vadd.f32 %v3409, %v3601
    %v3603 = vpop.f32.mrf.mxu0
    %v3604 = vadd.f32 %v3411, %v3603
    %v3605 = vpop.f32.mrf.mxu0
    %v3606 = vadd.f32 %v3413, %v3605
    %3607 = vmatprep.mubr.bf16.mxu0 %v878
    %3608 = vmatmul.mubr.bf16.gmra.mxu0 %v877
    %v3609 = vpop.f32.mrf.mxu0
    %v3610 = vadd.f32 %v3417, %v3609
    %v3611 = vpop.f32.mrf.mxu0
    %v3612 = vadd.f32 %v3419, %v3611
    %v3613 = vpop.f32.mrf.mxu0
    %v3614 = vadd.f32 %v3421, %v3613
    %v3615 = vpop.f32.mrf.mxu0
    %v3616 = vadd.f32 %v3423, %v3615
    %3617 = vmatprep.mubr.bf16.mxu0 %v886
    %3618 = vmatmul.mubr.bf16.gmra.mxu0 %v885
    %v3619 = vpop.f32.mrf.mxu0
    %v3620 = vadd.f32 %v3427, %v3619
    %v3621 = vpop.f32.mrf.mxu0
    %v3622 = vadd.f32 %v3429, %v3621
    %v3623 = vpop.f32.mrf.mxu0
    %v3624 = vadd.f32 %v3431, %v3623
    %v3625 = vpop.f32.mrf.mxu0
    %v3626 = vadd.f32 %v3433, %v3625
    %3627 = vmatprep.mubr.bf16.mxu0 %v894
    %3628 = vmatmul.mubr.bf16.gmra.mxu0 %v893
    %v3629 = vpop.f32.mrf.mxu0
    %v3630 = vadd.f32 %v3437, %v3629
    %v3631 = vpop.f32.mrf.mxu0
    %v3632 = vadd.f32 %v3439, %v3631
    %v3633 = vpop.f32.mrf.mxu0
    %v3634 = vadd.f32 %v3441, %v3633
    %v3635 = vpop.f32.mrf.mxu0
    %v3636 = vadd.f32 %v3443, %v3635
    %3637 = vmatprep.mubr.bf16.mxu0 %v902
    %3638 = vmatmul.mubr.bf16.gmra.mxu0 %v901
    %v3639 = vpop.f32.mrf.mxu0
    %v3640 = vadd.f32 %v3447, %v3639
    %v3641 = vpop.f32.mrf.mxu0
    %v3642 = vadd.f32 %v3449, %v3641
    %v3643 = vpop.f32.mrf.mxu0
    %v3644 = vadd.f32 %v3451, %v3643
    %v3645 = vpop.f32.mrf.mxu0
    %v3646 = vadd.f32 %v3453, %v3645
    %3647 = vmatprep.mubr.bf16.mxu0 %v910
    %3648 = vmatmul.mubr.bf16.gmra.mxu0 %v909
    %v3649 = vpop.f32.mrf.mxu0
    %v3650 = vadd.f32 %v3457, %v3649
    %v3651 = vpop.f32.mrf.mxu0
    %v3652 = vadd.f32 %v3459, %v3651
    %v3653 = vpop.f32.mrf.mxu0
    %v3654 = vadd.f32 %v3461, %v3653
    %v3655 = vpop.f32.mrf.mxu0
    %v3656 = vadd.f32 %v3463, %v3655
    %3657 = vmatprep.mubr.bf16.mxu0 %v918
    %3658 = vmatmul.mubr.bf16.gmra.mxu0 %v917
    %v3659 = vpop.f32.mrf.mxu0
    %v3660 = vadd.f32 %v3467, %v3659
    %v3661 = vpop.f32.mrf.mxu0
    %v3662 = vadd.f32 %v3469, %v3661
    %v3663 = vpop.f32.mrf.mxu0
    %v3664 = vadd.f32 %v3471, %v3663
    %v3665 = vpop.f32.mrf.mxu0
    %v3666 = vadd.f32 %v3473, %v3665
    %3667 = vmatprep.mubr.bf16.mxu0 %v926
    %3668 = vmatmul.mubr.bf16.gmra.mxu0 %v925
    %v3669 = vpop.f32.mrf.mxu0
    %v3670 = vadd.f32 %v3477, %v3669
    %v3671 = vpop.f32.mrf.mxu0
    %v3672 = vadd.f32 %v3479, %v3671
    %v3673 = vpop.f32.mrf.mxu0
    %v3674 = vadd.f32 %v3481, %v3673
    %v3675 = vpop.f32.mrf.mxu0
    %v3676 = vadd.f32 %v3483, %v3675
    %3677 = vmatprep.mubr.bf16.mxu0 %v934
    %3678 = vmatmul.mubr.bf16.gmra.mxu0 %v933
    %v3679 = vpop.f32.mrf.mxu0
    %v3680 = vadd.f32 %v3487, %v3679
    %v3681 = vpop.f32.mrf.mxu0
    %v3682 = vadd.f32 %v3489, %v3681
    %v3683 = vpop.f32.mrf.mxu0
    %v3684 = vadd.f32 %v3491, %v3683
    %v3685 = vpop.f32.mrf.mxu0
    %v3686 = vadd.f32 %v3493, %v3685
    %3687 = vmatprep.mubr.bf16.mxu0 %v942
    %3688 = vmatmul.mubr.bf16.gmra.mxu0 %v941
    %v3689 = vpop.f32.mrf.mxu0
    %v3690 = vadd.f32 %v3497, %v3689
    %v3691 = vpop.f32.mrf.mxu0
    %v3692 = vadd.f32 %v3499, %v3691
    %v3693 = vpop.f32.mrf.mxu0
    %v3694 = vadd.f32 %v3501, %v3693
    %v3695 = vpop.f32.mrf.mxu0
    %v3696 = vadd.f32 %v3503, %v3695
    %3697 = vmatprep.mubr.bf16.mxu0 %v950
    %3698 = vmatmul.mubr.bf16.gmra.mxu0 %v949
    %v3699 = vpop.f32.mrf.mxu0
    %v3700 = vadd.f32 %v3507, %v3699
    %v3701 = vpop.f32.mrf.mxu0
    %v3702 = vadd.f32 %v3509, %v3701
    %v3703 = vpop.f32.mrf.mxu0
    %v3704 = vadd.f32 %v3511, %v3703
    %v3705 = vpop.f32.mrf.mxu0
    %v3706 = vadd.f32 %v3513, %v3705
    %3707 = vmatprep.mubr.bf16.mxu0 %v958
    %3708 = vmatmul.mubr.bf16.gmra.mxu0 %v957
    %v3709 = vpop.f32.mrf.mxu0
    %v3710 = vadd.f32 %v3517, %v3709
    %v3711 = vpop.f32.mrf.mxu0
    %v3712 = vadd.f32 %v3519, %v3711
    %v3713 = vpop.f32.mrf.mxu0
    %v3714 = vadd.f32 %v3521, %v3713
    %v3715 = vpop.f32.mrf.mxu0
    %v3716 = vadd.f32 %v3523, %v3715
    %3717 = vmatprep.mubr.bf16.mxu0 %v966
    %3718 = vmatmul.mubr.bf16.gmra.mxu0 %v965
    %v3719 = vpop.f32.mrf.mxu0
    %v3720 = vadd.f32 %v3527, %v3719
    %v3721 = vpop.f32.mrf.mxu0
    %v3722 = vadd.f32 %v3529, %v3721
    %v3723 = vpop.f32.mrf.mxu0
    %v3724 = vadd.f32 %v3531, %v3723
    %v3725 = vpop.f32.mrf.mxu0
    %v3726 = vadd.f32 %v3533, %v3725
    %3727 = vdwg.mxu0
    %3728 = vmatprep.subr.bf16.mxu0 %v2088
    %3729 = vmatpush1.bf16.msra.mxu0 %v2087
    %3730 = vmatprep.subr.bf16.mxu0 %v2084
    %3731 = vmatpush1.bf16.msra.mxu0 %v2083
    %3732 = vmatprep.subr.bf16.mxu0 %v2080
    %3733 = vmatpush1.bf16.msra.mxu0 %v2079
    %3734 = vmatprep.subr.bf16.mxu0 %v2076
    %3735 = vmatpush1.bf16.msra.mxu0 %v2075
    %3736 = vmatprep.subr.bf16.mxu0 %v2072
    %3737 = vmatpush1.bf16.msra.mxu0 %v2071
    %3738 = vmatprep.subr.bf16.mxu0 %v2068
    %3739 = vmatpush1.bf16.msra.mxu0 %v2067
    %3740 = vmatprep.subr.bf16.mxu0 %v2064
    %3741 = vmatpush1.bf16.msra.mxu0 %v2063
    %3742 = vmatprep.subr.bf16.mxu0 %v2060
    %3743 = vmatpush1.bf16.msra.mxu0 %v2059
    %3744 = vmatprep.subr.bf16.mxu0 %v2120
    %3745 = vmatpush2.bf16.msra.mxu0 %v2119
    %3746 = vmatprep.subr.bf16.mxu0 %v2116
    %3747 = vmatpush2.bf16.msra.mxu0 %v2115
    %3748 = vmatprep.subr.bf16.mxu0 %v2112
    %3749 = vmatpush2.bf16.msra.mxu0 %v2111
    %3750 = vmatprep.subr.bf16.mxu0 %v2108
    %3751 = vmatpush2.bf16.msra.mxu0 %v2107
    %3752 = vmatprep.subr.bf16.mxu0 %v2104
    %3753 = vmatpush2.bf16.msra.mxu0 %v2103
    %3754 = vmatprep.subr.bf16.mxu0 %v2100
    %3755 = vmatpush2.bf16.msra.mxu0 %v2099
    %3756 = vmatprep.subr.bf16.mxu0 %v2096
    %3757 = vmatpush2.bf16.msra.mxu0 %v2095
    %3758 = vmatprep.subr.bf16.mxu0 %v2092
    %3759 = vmatpush2.bf16.msra.mxu0 %v2091
    %3760 = vmatprep.mubr.bf16.mxu0 %v848
    %3761 = vmatmul.mubr.bf16.gmra.mxu0 %v847
    %v3762 = vpop.f32.mrf.mxu0
    %v3763 = vadd.f32 %v3570, %v3762
    %v3764 = vpop.f32.mrf.mxu0
    %v3765 = vadd.f32 %v3572, %v3764
    %v3766 = vpop.f32.mrf.mxu0
    %v3767 = vadd.f32 %v3574, %v3766
    %v3768 = vpop.f32.mrf.mxu0
    %v3769 = vadd.f32 %v3576, %v3768
    %3770 = vmatprep.mubr.bf16.mxu0 %v856
    %3771 = vmatmul.mubr.bf16.gmra.mxu0 %v855
    %v3772 = vpop.f32.mrf.mxu0
    %v3773 = vadd.f32 %v3580, %v3772
    %v3774 = vpop.f32.mrf.mxu0
    %v3775 = vadd.f32 %v3582, %v3774
    %v3776 = vpop.f32.mrf.mxu0
    %v3777 = vadd.f32 %v3584, %v3776
    %v3778 = vpop.f32.mrf.mxu0
    %v3779 = vadd.f32 %v3586, %v3778
    %3780 = vmatprep.mubr.bf16.mxu0 %v864
    %3781 = vmatmul.mubr.bf16.gmra.mxu0 %v863
    %v3782 = vpop.f32.mrf.mxu0
    %v3783 = vadd.f32 %v3590, %v3782
    %v3784 = vpop.f32.mrf.mxu0
    %v3785 = vadd.f32 %v3592, %v3784
    %v3786 = vpop.f32.mrf.mxu0
    %v3787 = vadd.f32 %v3594, %v3786
    %v3788 = vpop.f32.mrf.mxu0
    %v3789 = vadd.f32 %v3596, %v3788
    %3790 = vmatprep.mubr.bf16.mxu0 %v872
    %3791 = vmatmul.mubr.bf16.gmra.mxu0 %v871
    %v3792 = vpop.f32.mrf.mxu0
    %v3793 = vadd.f32 %v3600, %v3792
    %v3794 = vpop.f32.mrf.mxu0
    %v3795 = vadd.f32 %v3602, %v3794
    %v3796 = vpop.f32.mrf.mxu0
    %v3797 = vadd.f32 %v3604, %v3796
    %v3798 = vpop.f32.mrf.mxu0
    %v3799 = vadd.f32 %v3606, %v3798
    %3800 = vmatprep.mubr.bf16.mxu0 %v880
    %3801 = vmatmul.mubr.bf16.gmra.mxu0 %v879
    %v3802 = vpop.f32.mrf.mxu0
    %v3803 = vadd.f32 %v3610, %v3802
    %v3804 = vpop.f32.mrf.mxu0
    %v3805 = vadd.f32 %v3612, %v3804
    %v3806 = vpop.f32.mrf.mxu0
    %v3807 = vadd.f32 %v3614, %v3806
    %v3808 = vpop.f32.mrf.mxu0
    %v3809 = vadd.f32 %v3616, %v3808
    %3810 = vmatprep.mubr.bf16.mxu0 %v888
    %3811 = vmatmul.mubr.bf16.gmra.mxu0 %v887
    %v3812 = vpop.f32.mrf.mxu0
    %v3813 = vadd.f32 %v3620, %v3812
    %v3814 = vpop.f32.mrf.mxu0
    %v3815 = vadd.f32 %v3622, %v3814
    %v3816 = vpop.f32.mrf.mxu0
    %v3817 = vadd.f32 %v3624, %v3816
    %v3818 = vpop.f32.mrf.mxu0
    %v3819 = vadd.f32 %v3626, %v3818
    %3820 = vmatprep.mubr.bf16.mxu0 %v896
    %3821 = vmatmul.mubr.bf16.gmra.mxu0 %v895
    %v3822 = vpop.f32.mrf.mxu0
    %v3823 = vadd.f32 %v3630, %v3822
    %v3824 = vpop.f32.mrf.mxu0
    %v3825 = vadd.f32 %v3632, %v3824
    %v3826 = vpop.f32.mrf.mxu0
    %v3827 = vadd.f32 %v3634, %v3826
    %v3828 = vpop.f32.mrf.mxu0
    %v3829 = vadd.f32 %v3636, %v3828
    %3830 = vmatprep.mubr.bf16.mxu0 %v904
    %3831 = vmatmul.mubr.bf16.gmra.mxu0 %v903
    %v3832 = vpop.f32.mrf.mxu0
    %v3833 = vadd.f32 %v3640, %v3832
    %v3834 = vpop.f32.mrf.mxu0
    %v3835 = vadd.f32 %v3642, %v3834
    %v3836 = vpop.f32.mrf.mxu0
    %v3837 = vadd.f32 %v3644, %v3836
    %v3838 = vpop.f32.mrf.mxu0
    %v3839 = vadd.f32 %v3646, %v3838
    %3840 = vmatprep.mubr.bf16.mxu0 %v912
    %3841 = vmatmul.mubr.bf16.gmra.mxu0 %v911
    %v3842 = vpop.f32.mrf.mxu0
    %v3843 = vadd.f32 %v3650, %v3842
    %v3844 = vpop.f32.mrf.mxu0
    %v3845 = vadd.f32 %v3652, %v3844
    %v3846 = vpop.f32.mrf.mxu0
    %v3847 = vadd.f32 %v3654, %v3846
    %v3848 = vpop.f32.mrf.mxu0
    %v3849 = vadd.f32 %v3656, %v3848
    %3850 = vmatprep.mubr.bf16.mxu0 %v920
    %3851 = vmatmul.mubr.bf16.gmra.mxu0 %v919
    %v3852 = vpop.f32.mrf.mxu0
    %v3853 = vadd.f32 %v3660, %v3852
    %v3854 = vpop.f32.mrf.mxu0
    %v3855 = vadd.f32 %v3662, %v3854
    %v3856 = vpop.f32.mrf.mxu0
    %v3857 = vadd.f32 %v3664, %v3856
    %v3858 = vpop.f32.mrf.mxu0
    %v3859 = vadd.f32 %v3666, %v3858
    %3860 = vmatprep.mubr.bf16.mxu0 %v928
    %3861 = vmatmul.mubr.bf16.gmra.mxu0 %v927
    %v3862 = vpop.f32.mrf.mxu0
    %v3863 = vadd.f32 %v3670, %v3862
    %v3864 = vpop.f32.mrf.mxu0
    %v3865 = vadd.f32 %v3672, %v3864
    %v3866 = vpop.f32.mrf.mxu0
    %v3867 = vadd.f32 %v3674, %v3866
    %v3868 = vpop.f32.mrf.mxu0
    %v3869 = vadd.f32 %v3676, %v3868
    %3870 = vmatprep.mubr.bf16.mxu0 %v936
    %3871 = vmatmul.mubr.bf16.gmra.mxu0 %v935
    %v3872 = vpop.f32.mrf.mxu0
    %v3873 = vadd.f32 %v3680, %v3872
    %v3874 = vpop.f32.mrf.mxu0
    %v3875 = vadd.f32 %v3682, %v3874
    %v3876 = vpop.f32.mrf.mxu0
    %v3877 = vadd.f32 %v3684, %v3876
    %v3878 = vpop.f32.mrf.mxu0
    %v3879 = vadd.f32 %v3686, %v3878
    %3880 = vmatprep.mubr.bf16.mxu0 %v944
    %3881 = vmatmul.mubr.bf16.gmra.mxu0 %v943
    %v3882 = vpop.f32.mrf.mxu0
    %v3883 = vadd.f32 %v3690, %v3882
    %v3884 = vpop.f32.mrf.mxu0
    %v3885 = vadd.f32 %v3692, %v3884
    %v3886 = vpop.f32.mrf.mxu0
    %v3887 = vadd.f32 %v3694, %v3886
    %v3888 = vpop.f32.mrf.mxu0
    %v3889 = vadd.f32 %v3696, %v3888
    %3890 = vmatprep.mubr.bf16.mxu0 %v952
    %3891 = vmatmul.mubr.bf16.gmra.mxu0 %v951
    %v3892 = vpop.f32.mrf.mxu0
    %v3893 = vadd.f32 %v3700, %v3892
    %v3894 = vpop.f32.mrf.mxu0
    %v3895 = vadd.f32 %v3702, %v3894
    %v3896 = vpop.f32.mrf.mxu0
    %v3897 = vadd.f32 %v3704, %v3896
    %v3898 = vpop.f32.mrf.mxu0
    %v3899 = vadd.f32 %v3706, %v3898
    %3900 = vmatprep.mubr.bf16.mxu0 %v960
    %3901 = vmatmul.mubr.bf16.gmra.mxu0 %v959
    %v3902 = vpop.f32.mrf.mxu0
    %v3903 = vadd.f32 %v3710, %v3902
    %v3904 = vpop.f32.mrf.mxu0
    %v3905 = vadd.f32 %v3712, %v3904
    %v3906 = vpop.f32.mrf.mxu0
    %v3907 = vadd.f32 %v3714, %v3906
    %v3908 = vpop.f32.mrf.mxu0
    %v3909 = vadd.f32 %v3716, %v3908
    %3910 = vmatprep.mubr.bf16.mxu0 %v968
    %3911 = vmatmul.mubr.bf16.gmra.mxu0 %v967
    %v3912 = vpop.f32.mrf.mxu0
    %v3913 = vadd.f32 %v3720, %v3912
    %v3914 = vpop.f32.mrf.mxu0
    %v3915 = vadd.f32 %v3722, %v3914
    %v3916 = vpop.f32.mrf.mxu0
    %v3917 = vadd.f32 %v3724, %v3916
    %v3918 = vpop.f32.mrf.mxu0
    %v3919 = vadd.f32 %v3726, %v3918
    %3920 = vdwg.mxu0
    %v3921 = vtanh.pop %v2991
    %v3922 = vtanh.pop %v2993
    %v3923 = vtanh.pop %v2995
    %v3924 = vtanh.pop %v2997
    %v3925 = vtanh.pop %v3001
    %v3926 = vtanh.pop %v3003
    %v3927 = vtanh.pop %v3005
    %v3928 = vtanh.pop %v3007
    %v3929 = vtanh.pop %v3011
    %v3930 = vtanh.pop %v3013
    %v3931 = vtanh.pop %v3015
    %v3932 = vtanh.pop %v3017
    %v3933 = vtanh.pop %v3021
    %v3934 = vtanh.pop %v3023
    %v3935 = vtanh.pop %v3025
    %v3936 = vtanh.pop %v3027
    %v3937 = vtanh.pop %v3031
    %v3938 = vtanh.pop %v3033
    %v3939 = vtanh.pop %v3035
    %v3940 = vtanh.pop %v3037
    %v3941 = vtanh.pop %v3041
    %v3942 = vtanh.pop %v3043
    %v3943 = vtanh.pop %v3045
    %v3944 = vtanh.pop %v3047
    %v3945 = vtanh.pop %v3051
    %v3946 = vtanh.pop %v3053
    %v3947 = vtanh.pop %v3055
    %v3948 = vtanh.pop %v3057
    %v3949 = vtanh.pop %v3061
    %v3950 = vtanh.pop %v3063
    %v3951 = vtanh.pop %v3065
    %v3952 = vtanh.pop %v3067
    %v3953 = vtanh.pop %v3071
    %v3954 = vtanh.pop %v3073
    %v3955 = vtanh.pop %v3075
    %v3956 = vtanh.pop %v3077
    %v3957 = vtanh.pop %v3081
    %v3958 = vtanh.pop %v3083
    %v3959 = vtanh.pop %v3085
    %v3960 = vtanh.pop %v3087
    %v3961 = vtanh.pop %v3091
    %v3962 = vtanh.pop %v3093
    %v3963 = vtanh.pop %v3095
    %v3964 = vtanh.pop %v3097
    %v3965 = vtanh.pop %v3101
    %v3966 = vtanh.pop %v3103
    %v3967 = vtanh.pop %v3105
    %v3968 = vtanh.pop %v3107
    %v3969 = vtanh.pop %v3111
    %v3970 = vtanh.pop %v3113
    %v3971 = vtanh.pop %v3115
    %v3972 = vtanh.pop %v3117
    %v3973 = vtanh.pop %v3121
    %v3974 = vtanh.pop %v3123
    %v3975 = vtanh.pop %v3125
    %v3976 = vtanh.pop %v3127
    %v3977 = vtanh.pop %v3131
    %v3978 = vtanh.pop %v3133
    %v3979 = vtanh.pop %v3135
    %v3980 = vtanh.pop %v3137
    %v3981 = vtanh.pop %v3141
    %v3982 = vtanh.pop %v3143
    %v3983 = vtanh.pop %v3145
    %v3984 = vtanh.pop %v3147
    %v3985 = vxor.u32 %v3763, 2147483648
    %v3986 = vxor.u32 %v3765, 2147483648
    %v3987 = vxor.u32 %v3767, 2147483648
    %v3988 = vxor.u32 %v3769, 2147483648
    %v3989 = vxor.u32 %v3773, 2147483648
    %v3990 = vxor.u32 %v3775, 2147483648
    %v3991 = vxor.u32 %v3777, 2147483648
    %v3992 = vxor.u32 %v3779, 2147483648
    %v3993 = vxor.u32 %v3783, 2147483648
    %v3994 = vxor.u32 %v3785, 2147483648
    %v3995 = vxor.u32 %v3787, 2147483648
    %v3996 = vxor.u32 %v3789, 2147483648
    %v3997 = vxor.u32 %v3793, 2147483648
    %v3998 = vxor.u32 %v3795, 2147483648
    %v3999 = vxor.u32 %v3797, 2147483648
    %v4000 = vxor.u32 %v3799, 2147483648
    %v4001 = vxor.u32 %v3803, 2147483648
    %v4002 = vxor.u32 %v3805, 2147483648
    %v4003 = vxor.u32 %v3807, 2147483648
    %v4004 = vxor.u32 %v3809, 2147483648
    %v4005 = vxor.u32 %v3813, 2147483648
    %v4006 = vxor.u32 %v3815, 2147483648
    %v4007 = vxor.u32 %v3817, 2147483648
    %v4008 = vxor.u32 %v3819, 2147483648
    %v4009 = vxor.u32 %v3823, 2147483648
    %v4010 = vxor.u32 %v3825, 2147483648
    %v4011 = vxor.u32 %v3827, 2147483648
    %v4012 = vxor.u32 %v3829, 2147483648
    %v4013 = vxor.u32 %v3833, 2147483648
    %v4014 = vxor.u32 %v3835, 2147483648
    %v4015 = vxor.u32 %v3837, 2147483648
    %v4016 = vxor.u32 %v3839, 2147483648
    %v4017 = vxor.u32 %v3843, 2147483648
    %v4018 = vxor.u32 %v3845, 2147483648
    %v4019 = vxor.u32 %v3847, 2147483648
    %v4020 = vxor.u32 %v3849, 2147483648
    %v4021 = vxor.u32 %v3853, 2147483648
    %v4022 = vxor.u32 %v3855, 2147483648
    %v4023 = vxor.u32 %v3857, 2147483648
    %v4024 = vxor.u32 %v3859, 2147483648
    %v4025 = vxor.u32 %v3863, 2147483648
    %v4026 = vxor.u32 %v3865, 2147483648
    %v4027 = vxor.u32 %v3867, 2147483648
    %v4028 = vxor.u32 %v3869, 2147483648
    %v4029 = vxor.u32 %v3873, 2147483648
    %v4030 = vxor.u32 %v3875, 2147483648
    %v4031 = vxor.u32 %v3877, 2147483648
    %v4032 = vxor.u32 %v3879, 2147483648
    %v4033 = vxor.u32 %v3883, 2147483648
    %v4034 = vxor.u32 %v3885, 2147483648
    %v4035 = vxor.u32 %v3887, 2147483648
    %v4036 = vxor.u32 %v3889, 2147483648
    %v4037 = vxor.u32 %v3893, 2147483648
    %v4038 = vxor.u32 %v3895, 2147483648
    %v4039 = vxor.u32 %v3897, 2147483648
    %v4040 = vxor.u32 %v3899, 2147483648
    %v4041 = vxor.u32 %v3903, 2147483648
    %v4042 = vxor.u32 %v3905, 2147483648
    %v4043 = vxor.u32 %v3907, 2147483648
    %v4044 = vxor.u32 %v3909, 2147483648
    %v4045 = vxor.u32 %v3913, 2147483648
    %v4046 = vxor.u32 %v3915, 2147483648
    %v4047 = vxor.u32 %v3917, 2147483648
    %v4048 = vxor.u32 %v3919, 2147483648
    %v4049 = vmul.f32 %v3985, 1.442695
    %v4050 = vpow.pop %v4049
    %v4051 = vmul.f32 %v3986, 1.442695
    %v4052 = vpow.pop %v4051
    %v4053 = vmul.f32 %v3987, 1.442695
    %v4054 = vpow.pop %v4053
    %v4055 = vmul.f32 %v3988, 1.442695
    %v4056 = vpow.pop %v4055
    %v4057 = vmul.f32 %v3989, 1.442695
    %v4058 = vpow.pop %v4057
    %v4059 = vmul.f32 %v3990, 1.442695
    %v4060 = vpow.pop %v4059
    %v4061 = vmul.f32 %v3991, 1.442695
    %v4062 = vpow.pop %v4061
    %v4063 = vmul.f32 %v3992, 1.442695
    %v4064 = vpow.pop %v4063
    %v4065 = vmul.f32 %v3993, 1.442695
    %v4066 = vpow.pop %v4065
    %v4067 = vmul.f32 %v3994, 1.442695
    %v4068 = vpow.pop %v4067
    %v4069 = vmul.f32 %v3995, 1.442695
    %v4070 = vpow.pop %v4069
    %v4071 = vmul.f32 %v3996, 1.442695
    %v4072 = vpow.pop %v4071
    %v4073 = vmul.f32 %v3997, 1.442695
    %v4074 = vpow.pop %v4073
    %v4075 = vmul.f32 %v3998, 1.442695
    %v4076 = vpow.pop %v4075
    %v4077 = vmul.f32 %v3999, 1.442695
    %v4078 = vpow.pop %v4077
    %v4079 = vmul.f32 %v4000, 1.442695
    %v4080 = vpow.pop %v4079
    %v4081 = vmul.f32 %v4001, 1.442695
    %v4082 = vpow.pop %v4081
    %v4083 = vmul.f32 %v4002, 1.442695
    %v4084 = vpow.pop %v4083
    %v4085 = vmul.f32 %v4003, 1.442695
    %v4086 = vpow.pop %v4085
    %v4087 = vmul.f32 %v4004, 1.442695
    %v4088 = vpow.pop %v4087
    %v4089 = vmul.f32 %v4005, 1.442695
    %v4090 = vpow.pop %v4089
    %v4091 = vmul.f32 %v4006, 1.442695
    %v4092 = vpow.pop %v4091
    %v4093 = vmul.f32 %v4007, 1.442695
    %v4094 = vpow.pop %v4093
    %v4095 = vmul.f32 %v4008, 1.442695
    %v4096 = vpow.pop %v4095
    %v4097 = vmul.f32 %v4009, 1.442695
    %v4098 = vpow.pop %v4097
    %v4099 = vmul.f32 %v4010, 1.442695
    %v4100 = vpow.pop %v4099
    %v4101 = vmul.f32 %v4011, 1.442695
    %v4102 = vpow.pop %v4101
    %v4103 = vmul.f32 %v4012, 1.442695
    %v4104 = vpow.pop %v4103
    %v4105 = vmul.f32 %v4013, 1.442695
    %v4106 = vpow.pop %v4105
    %v4107 = vmul.f32 %v4014, 1.442695
    %v4108 = vpow.pop %v4107
    %v4109 = vmul.f32 %v4015, 1.442695
    %v4110 = vpow.pop %v4109
    %v4111 = vmul.f32 %v4016, 1.442695
    %v4112 = vpow.pop %v4111
    %v4113 = vmul.f32 %v4017, 1.442695
    %v4114 = vpow.pop %v4113
    %v4115 = vmul.f32 %v4018, 1.442695
    %v4116 = vpow.pop %v4115
    %v4117 = vmul.f32 %v4019, 1.442695
    %v4118 = vpow.pop %v4117
    %v4119 = vmul.f32 %v4020, 1.442695
    %v4120 = vpow.pop %v4119
    %v4121 = vmul.f32 %v4021, 1.442695
    %v4122 = vpow.pop %v4121
    %v4123 = vmul.f32 %v4022, 1.442695
    %v4124 = vpow.pop %v4123
    %v4125 = vmul.f32 %v4023, 1.442695
    %v4126 = vpow.pop %v4125
    %v4127 = vmul.f32 %v4024, 1.442695
    %v4128 = vpow.pop %v4127
    %v4129 = vmul.f32 %v4025, 1.442695
    %v4130 = vpow.pop %v4129
    %v4131 = vmul.f32 %v4026, 1.442695
    %v4132 = vpow.pop %v4131
    %v4133 = vmul.f32 %v4027, 1.442695
    %v4134 = vpow.pop %v4133
    %v4135 = vmul.f32 %v4028, 1.442695
    %v4136 = vpow.pop %v4135
    %v4137 = vmul.f32 %v4029, 1.442695
    %v4138 = vpow.pop %v4137
    %v4139 = vmul.f32 %v4030, 1.442695
    %v4140 = vpow.pop %v4139
    %v4141 = vmul.f32 %v4031, 1.442695
    %v4142 = vpow.pop %v4141
    %v4143 = vmul.f32 %v4032, 1.442695
    %v4144 = vpow.pop %v4143
    %v4145 = vmul.f32 %v4033, 1.442695
    %v4146 = vpow.pop %v4145
    %v4147 = vmul.f32 %v4034, 1.442695
    %v4148 = vpow.pop %v4147
    %v4149 = vmul.f32 %v4035, 1.442695
    %v4150 = vpow.pop %v4149
    %v4151 = vmul.f32 %v4036, 1.442695
    %v4152 = vpow.pop %v4151
    %v4153 = vmul.f32 %v4037, 1.442695
    %v4154 = vpow.pop %v4153
    %v4155 = vmul.f32 %v4038, 1.442695
    %v4156 = vpow.pop %v4155
    %v4157 = vmul.f32 %v4039, 1.442695
    %v4158 = vpow.pop %v4157
    %v4159 = vmul.f32 %v4040, 1.442695
    %v4160 = vpow.pop %v4159
    %v4161 = vmul.f32 %v4041, 1.442695
    %v4162 = vpow.pop %v4161
    %v4163 = vmul.f32 %v4042, 1.442695
    %v4164 = vpow.pop %v4163
    %v4165 = vmul.f32 %v4043, 1.442695
    %v4166 = vpow.pop %v4165
    %v4167 = vmul.f32 %v4044, 1.442695
    %v4168 = vpow.pop %v4167
    %v4169 = vmul.f32 %v4045, 1.442695
    %v4170 = vpow.pop %v4169
    %v4171 = vmul.f32 %v4046, 1.442695
    %v4172 = vpow.pop %v4171
    %v4173 = vmul.f32 %v4047, 1.442695
    %v4174 = vpow.pop %v4173
    %v4175 = vmul.f32 %v4048, 1.442695
    %v4176 = vpow.pop %v4175
    %v4177 = vadd.f32 %v4050, 1.0
    %v4178 = vadd.f32 %v4052, 1.0
    %v4179 = vadd.f32 %v4054, 1.0
    %v4180 = vadd.f32 %v4056, 1.0
    %v4181 = vadd.f32 %v4058, 1.0
    %v4182 = vadd.f32 %v4060, 1.0
    %v4183 = vadd.f32 %v4062, 1.0
    %v4184 = vadd.f32 %v4064, 1.0
    %v4185 = vadd.f32 %v4066, 1.0
    %v4186 = vadd.f32 %v4068, 1.0
    %v4187 = vadd.f32 %v4070, 1.0
    %v4188 = vadd.f32 %v4072, 1.0
    %v4189 = vadd.f32 %v4074, 1.0
    %v4190 = vadd.f32 %v4076, 1.0
    %v4191 = vadd.f32 %v4078, 1.0
    %v4192 = vadd.f32 %v4080, 1.0
    %v4193 = vadd.f32 %v4082, 1.0
    %v4194 = vadd.f32 %v4084, 1.0
    %v4195 = vadd.f32 %v4086, 1.0
    %v4196 = vadd.f32 %v4088, 1.0
    %v4197 = vadd.f32 %v4090, 1.0
    %v4198 = vadd.f32 %v4092, 1.0
    %v4199 = vadd.f32 %v4094, 1.0
    %v4200 = vadd.f32 %v4096, 1.0
    %v4201 = vadd.f32 %v4098, 1.0
    %v4202 = vadd.f32 %v4100, 1.0
    %v4203 = vadd.f32 %v4102, 1.0
    %v4204 = vadd.f32 %v4104, 1.0
    %v4205 = vadd.f32 %v4106, 1.0
    %v4206 = vadd.f32 %v4108, 1.0
    %v4207 = vadd.f32 %v4110, 1.0
    %v4208 = vadd.f32 %v4112, 1.0
    %v4209 = vadd.f32 %v4114, 1.0
    %v4210 = vadd.f32 %v4116, 1.0
    %v4211 = vadd.f32 %v4118, 1.0
    %v4212 = vadd.f32 %v4120, 1.0
    %v4213 = vadd.f32 %v4122, 1.0
    %v4214 = vadd.f32 %v4124, 1.0
    %v4215 = vadd.f32 %v4126, 1.0
    %v4216 = vadd.f32 %v4128, 1.0
    %v4217 = vadd.f32 %v4130, 1.0
    %v4218 = vadd.f32 %v4132, 1.0
    %v4219 = vadd.f32 %v4134, 1.0
    %v4220 = vadd.f32 %v4136, 1.0
    %v4221 = vadd.f32 %v4138, 1.0
    %v4222 = vadd.f32 %v4140, 1.0
    %v4223 = vadd.f32 %v4142, 1.0
    %v4224 = vadd.f32 %v4144, 1.0
    %v4225 = vadd.f32 %v4146, 1.0
    %v4226 = vadd.f32 %v4148, 1.0
    %v4227 = vadd.f32 %v4150, 1.0
    %v4228 = vadd.f32 %v4152, 1.0
    %v4229 = vadd.f32 %v4154, 1.0
    %v4230 = vadd.f32 %v4156, 1.0
    %v4231 = vadd.f32 %v4158, 1.0
    %v4232 = vadd.f32 %v4160, 1.0
    %v4233 = vadd.f32 %v4162, 1.0
    %v4234 = vadd.f32 %v4164, 1.0
    %v4235 = vadd.f32 %v4166, 1.0
    %v4236 = vadd.f32 %v4168, 1.0
    %v4237 = vadd.f32 %v4170, 1.0
    %v4238 = vadd.f32 %v4172, 1.0
    %v4239 = vadd.f32 %v4174, 1.0
    %v4240 = vadd.f32 %v4176, 1.0
    %v4241 = vrcp.pop %v4177
    %v4242 = vmul.f32 1.0, %v4241
    %v4243 = vrcp.pop %v4178
    %v4244 = vmul.f32 1.0, %v4243
    %v4245 = vrcp.pop %v4179
    %v4246 = vmul.f32 1.0, %v4245
    %v4247 = vrcp.pop %v4180
    %v4248 = vmul.f32 1.0, %v4247
    %v4249 = vrcp.pop %v4181
    %v4250 = vmul.f32 1.0, %v4249
    %v4251 = vrcp.pop %v4182
    %v4252 = vmul.f32 1.0, %v4251
    %v4253 = vrcp.pop %v4183
    %v4254 = vmul.f32 1.0, %v4253
    %v4255 = vrcp.pop %v4184
    %v4256 = vmul.f32 1.0, %v4255
    %v4257 = vrcp.pop %v4185
    %v4258 = vmul.f32 1.0, %v4257
    %v4259 = vrcp.pop %v4186
    %v4260 = vmul.f32 1.0, %v4259
    %v4261 = vrcp.pop %v4187
    %v4262 = vmul.f32 1.0, %v4261
    %v4263 = vrcp.pop %v4188
    %v4264 = vmul.f32 1.0, %v4263
    %v4265 = vrcp.pop %v4189
    %v4266 = vmul.f32 1.0, %v4265
    %v4267 = vrcp.pop %v4190
    %v4268 = vmul.f32 1.0, %v4267
    %v4269 = vrcp.pop %v4191
    %v4270 = vmul.f32 1.0, %v4269
    %v4271 = vrcp.pop %v4192
    %v4272 = vmul.f32 1.0, %v4271
    %v4273 = vrcp.pop %v4193
    %v4274 = vmul.f32 1.0, %v4273
    %v4275 = vrcp.pop %v4194
    %v4276 = vmul.f32 1.0, %v4275
    %v4277 = vrcp.pop %v4195
    %v4278 = vmul.f32 1.0, %v4277
    %v4279 = vrcp.pop %v4196
    %v4280 = vmul.f32 1.0, %v4279
    %v4281 = vrcp.pop %v4197
    %v4282 = vmul.f32 1.0, %v4281
    %v4283 = vrcp.pop %v4198
    %v4284 = vmul.f32 1.0, %v4283
    %v4285 = vrcp.pop %v4199
    %v4286 = vmul.f32 1.0, %v4285
    %v4287 = vrcp.pop %v4200
    %v4288 = vmul.f32 1.0, %v4287
    %v4289 = vrcp.pop %v4201
    %v4290 = vmul.f32 1.0, %v4289
    %v4291 = vrcp.pop %v4202
    %v4292 = vmul.f32 1.0, %v4291
    %v4293 = vrcp.pop %v4203
    %v4294 = vmul.f32 1.0, %v4293
    %v4295 = vrcp.pop %v4204
    %v4296 = vmul.f32 1.0, %v4295
    %v4297 = vrcp.pop %v4205
    %v4298 = vmul.f32 1.0, %v4297
    %v4299 = vrcp.pop %v4206
    %v4300 = vmul.f32 1.0, %v4299
    %v4301 = vrcp.pop %v4207
    %v4302 = vmul.f32 1.0, %v4301
    %v4303 = vrcp.pop %v4208
    %v4304 = vmul.f32 1.0, %v4303
    %v4305 = vrcp.pop %v4209
    %v4306 = vmul.f32 1.0, %v4305
    %v4307 = vrcp.pop %v4210
    %v4308 = vmul.f32 1.0, %v4307
    %v4309 = vrcp.pop %v4211
    %v4310 = vmul.f32 1.0, %v4309
    %v4311 = vrcp.pop %v4212
    %v4312 = vmul.f32 1.0, %v4311
    %v4313 = vrcp.pop %v4213
    %v4314 = vmul.f32 1.0, %v4313
    %v4315 = vrcp.pop %v4214
    %v4316 = vmul.f32 1.0, %v4315
    %v4317 = vrcp.pop %v4215
    %v4318 = vmul.f32 1.0, %v4317
    %v4319 = vrcp.pop %v4216
    %v4320 = vmul.f32 1.0, %v4319
    %v4321 = vrcp.pop %v4217
    %v4322 = vmul.f32 1.0, %v4321
    %v4323 = vrcp.pop %v4218
    %v4324 = vmul.f32 1.0, %v4323
    %v4325 = vrcp.pop %v4219
    %v4326 = vmul.f32 1.0, %v4325
    %v4327 = vrcp.pop %v4220
    %v4328 = vmul.f32 1.0, %v4327
    %v4329 = vrcp.pop %v4221
    %v4330 = vmul.f32 1.0, %v4329
    %v4331 = vrcp.pop %v4222
    %v4332 = vmul.f32 1.0, %v4331
    %v4333 = vrcp.pop %v4223
    %v4334 = vmul.f32 1.0, %v4333
    %v4335 = vrcp.pop %v4224
    %v4336 = vmul.f32 1.0, %v4335
    %v4337 = vrcp.pop %v4225
    %v4338 = vmul.f32 1.0, %v4337
    %v4339 = vrcp.pop %v4226
    %v4340 = vmul.f32 1.0, %v4339
    %v4341 = vrcp.pop %v4227
    %v4342 = vmul.f32 1.0, %v4341
    %v4343 = vrcp.pop %v4228
    %v4344 = vmul.f32 1.0, %v4343
    %v4345 = vrcp.pop %v4229
    %v4346 = vmul.f32 1.0, %v4345
    %v4347 = vrcp.pop %v4230
    %v4348 = vmul.f32 1.0, %v4347
    %v4349 = vrcp.pop %v4231
    %v4350 = vmul.f32 1.0, %v4349
    %v4351 = vrcp.pop %v4232
    %v4352 = vmul.f32 1.0, %v4351
    %v4353 = vrcp.pop %v4233
    %v4354 = vmul.f32 1.0, %v4353
    %v4355 = vrcp.pop %v4234
    %v4356 = vmul.f32 1.0, %v4355
    %v4357 = vrcp.pop %v4235
    %v4358 = vmul.f32 1.0, %v4357
    %v4359 = vrcp.pop %v4236
    %v4360 = vmul.f32 1.0, %v4359
    %v4361 = vrcp.pop %v4237
    %v4362 = vmul.f32 1.0, %v4361
    %v4363 = vrcp.pop %v4238
    %v4364 = vmul.f32 1.0, %v4363
    %v4365 = vrcp.pop %v4239
    %v4366 = vmul.f32 1.0, %v4365
    %v4367 = vrcp.pop %v4240
    %v4368 = vmul.f32 1.0, %v4367
    %v4369 = vmul.f32 %v3921, %v4242
    %v4370 = vmul.f32 %v3922, %v4244
    %v4371 = vmul.f32 %v3923, %v4246
    %v4372 = vmul.f32 %v3924, %v4248
    %v4373 = vmul.f32 %v3925, %v4250
    %v4374 = vmul.f32 %v3926, %v4252
    %v4375 = vmul.f32 %v3927, %v4254
    %v4376 = vmul.f32 %v3928, %v4256
    %v4377 = vmul.f32 %v3929, %v4258
    %v4378 = vmul.f32 %v3930, %v4260
    %v4379 = vmul.f32 %v3931, %v4262
    %v4380 = vmul.f32 %v3932, %v4264
    %v4381 = vmul.f32 %v3933, %v4266
    %v4382 = vmul.f32 %v3934, %v4268
    %v4383 = vmul.f32 %v3935, %v4270
    %v4384 = vmul.f32 %v3936, %v4272
    %v4385 = vmul.f32 %v3937, %v4274
    %v4386 = vmul.f32 %v3938, %v4276
    %v4387 = vmul.f32 %v3939, %v4278
    %v4388 = vmul.f32 %v3940, %v4280
    %v4389 = vmul.f32 %v3941, %v4282
    %v4390 = vmul.f32 %v3942, %v4284
    %v4391 = vmul.f32 %v3943, %v4286
    %v4392 = vmul.f32 %v3944, %v4288
    %v4393 = vmul.f32 %v3945, %v4290
    %v4394 = vmul.f32 %v3946, %v4292
    %v4395 = vmul.f32 %v3947, %v4294
    %v4396 = vmul.f32 %v3948, %v4296
    %v4397 = vmul.f32 %v3949, %v4298
    %v4398 = vmul.f32 %v3950, %v4300
    %v4399 = vmul.f32 %v3951, %v4302
    %v4400 = vmul.f32 %v3952, %v4304
    %v4401 = vmul.f32 %v3953, %v4306
    %v4402 = vmul.f32 %v3954, %v4308
    %v4403 = vmul.f32 %v3955, %v4310
    %v4404 = vmul.f32 %v3956, %v4312
    %v4405 = vmul.f32 %v3957, %v4314
    %v4406 = vmul.f32 %v3958, %v4316
    %v4407 = vmul.f32 %v3959, %v4318
    %v4408 = vmul.f32 %v3960, %v4320
    %v4409 = vmul.f32 %v3961, %v4322
    %v4410 = vmul.f32 %v3962, %v4324
    %v4411 = vmul.f32 %v3963, %v4326
    %v4412 = vmul.f32 %v3964, %v4328
    %v4413 = vmul.f32 %v3965, %v4330
    %v4414 = vmul.f32 %v3966, %v4332
    %v4415 = vmul.f32 %v3967, %v4334
    %v4416 = vmul.f32 %v3968, %v4336
    %v4417 = vmul.f32 %v3969, %v4338
    %v4418 = vmul.f32 %v3970, %v4340
    %v4419 = vmul.f32 %v3971, %v4342
    %v4420 = vmul.f32 %v3972, %v4344
    %v4421 = vmul.f32 %v3973, %v4346
    %v4422 = vmul.f32 %v3974, %v4348
    %v4423 = vmul.f32 %v3975, %v4350
    %v4424 = vmul.f32 %v3976, %v4352
    %v4425 = vmul.f32 %v3977, %v4354
    %v4426 = vmul.f32 %v3978, %v4356
    %v4427 = vmul.f32 %v3979, %v4358
    %v4428 = vmul.f32 %v3980, %v4360
    %v4429 = vmul.f32 %v3981, %v4362
    %v4430 = vmul.f32 %v3982, %v4364
    %v4431 = vmul.f32 %v3983, %v4366
    %v4432 = vmul.f32 %v3984, %v4368
    %v4433 = vld [vmem:[%s3] sm:$0x3]
    %v4435 = vlaneseq
    %v4436 = vshrl.u32 %v4435, 7
    %v4437 = vsub.s32 0, %v4436
    %v4438 = vrot.slane %v4433, %v4437
    %v4439 = vlaneseq
    %v4440 = vshrl.u32 %v4439, 7
    %v4441 = vsub.s32 1, %v4440
    %v4442 = vrot.slane %v4433, %v4441
    %v4445 = vmul.f32 %v4369, %v4438
    %v4446 = vmul.f32 %v4370, %v4442
    %v4447 = vmul.f32 %v4371, %v4438
    %v4448 = vmul.f32 %v4372, %v4442
    %v4449 = vmul.f32 %v4373, %v4438
    %v4450 = vmul.f32 %v4374, %v4442
    %v4451 = vmul.f32 %v4375, %v4438
    %v4452 = vmul.f32 %v4376, %v4442
    %v4453 = vmul.f32 %v4377, %v4438
    %v4454 = vmul.f32 %v4378, %v4442
    %v4455 = vmul.f32 %v4379, %v4438
    %v4456 = vmul.f32 %v4380, %v4442
    %v4457 = vmul.f32 %v4381, %v4438
    %v4458 = vmul.f32 %v4382, %v4442
    %v4459 = vmul.f32 %v4383, %v4438
    %v4460 = vmul.f32 %v4384, %v4442
    %v4461 = vmul.f32 %v4385, %v4438
    %v4462 = vmul.f32 %v4386, %v4442
    %v4463 = vmul.f32 %v4387, %v4438
    %v4464 = vmul.f32 %v4388, %v4442
    %v4465 = vmul.f32 %v4389, %v4438
    %v4466 = vmul.f32 %v4390, %v4442
    %v4467 = vmul.f32 %v4391, %v4438
    %v4468 = vmul.f32 %v4392, %v4442
    %v4469 = vmul.f32 %v4393, %v4438
    %v4470 = vmul.f32 %v4394, %v4442
    %v4471 = vmul.f32 %v4395, %v4438
    %v4472 = vmul.f32 %v4396, %v4442
    %v4473 = vmul.f32 %v4397, %v4438
    %v4474 = vmul.f32 %v4398, %v4442
    %v4475 = vmul.f32 %v4399, %v4438
    %v4476 = vmul.f32 %v4400, %v4442
    %v4477 = vmul.f32 %v4401, %v4438
    %v4478 = vmul.f32 %v4402, %v4442
    %v4479 = vmul.f32 %v4403, %v4438
    %v4480 = vmul.f32 %v4404, %v4442
    %v4481 = vmul.f32 %v4405, %v4438
    %v4482 = vmul.f32 %v4406, %v4442
    %v4483 = vmul.f32 %v4407, %v4438
    %v4484 = vmul.f32 %v4408, %v4442
    %v4485 = vmul.f32 %v4409, %v4438
    %v4486 = vmul.f32 %v4410, %v4442
    %v4487 = vmul.f32 %v4411, %v4438
    %v4488 = vmul.f32 %v4412, %v4442
    %v4489 = vmul.f32 %v4413, %v4438
    %v4490 = vmul.f32 %v4414, %v4442
    %v4491 = vmul.f32 %v4415, %v4438
    %v4492 = vmul.f32 %v4416, %v4442
    %v4493 = vmul.f32 %v4417, %v4438
    %v4494 = vmul.f32 %v4418, %v4442
    %v4495 = vmul.f32 %v4419, %v4438
    %v4496 = vmul.f32 %v4420, %v4442
    %v4497 = vmul.f32 %v4421, %v4438
    %v4498 = vmul.f32 %v4422, %v4442
    %v4499 = vmul.f32 %v4423, %v4438
    %v4500 = vmul.f32 %v4424, %v4442
    %v4501 = vmul.f32 %v4425, %v4438
    %v4502 = vmul.f32 %v4426, %v4442
    %v4503 = vmul.f32 %v4427, %v4438
    %v4504 = vmul.f32 %v4428, %v4442
    %v4505 = vmul.f32 %v4429, %v4438
    %v4506 = vmul.f32 %v4430, %v4442
    %v4507 = vmul.f32 %v4431, %v4438
    %v4508 = vmul.f32 %v4432, %v4442
    %v4509 = vadd.f32 %v4445, %v4446
    %4510 = vadd.xlane.f32.xlu0 %v4509
    %v4511 = vpop.xlane.xlu0 %4510
    %v4512 = vadd.f32 %v4447, %v4448
    %4513 = vadd.xlane.f32.xlu0 %v4512
    %v4514 = vpop.xlane.xlu0 %4513
    %v4515 = vadd.f32 %v4449, %v4450
    %4516 = vadd.xlane.f32.xlu0 %v4515
    %v4517 = vpop.xlane.xlu0 %4516
    %v4518 = vadd.f32 %v4451, %v4452
    %4519 = vadd.xlane.f32.xlu0 %v4518
    %v4520 = vpop.xlane.xlu0 %4519
    %v4521 = vadd.f32 %v4453, %v4454
    %4522 = vadd.xlane.f32.xlu0 %v4521
    %v4523 = vpop.xlane.xlu0 %4522
    %v4524 = vadd.f32 %v4455, %v4456
    %4525 = vadd.xlane.f32.xlu0 %v4524
    %v4526 = vpop.xlane.xlu0 %4525
    %v4527 = vadd.f32 %v4457, %v4458
    %4528 = vadd.xlane.f32.xlu0 %v4527
    %v4529 = vpop.xlane.xlu0 %4528
    %v4530 = vadd.f32 %v4459, %v4460
    %4531 = vadd.xlane.f32.xlu0 %v4530
    %v4532 = vpop.xlane.xlu0 %4531
    %v4533 = vadd.f32 %v4461, %v4462
    %4534 = vadd.xlane.f32.xlu0 %v4533
    %v4535 = vpop.xlane.xlu0 %4534
    %v4536 = vadd.f32 %v4463, %v4464
    %4537 = vadd.xlane.f32.xlu0 %v4536
    %v4538 = vpop.xlane.xlu0 %4537
    %v4539 = vadd.f32 %v4465, %v4466
    %4540 = vadd.xlane.f32.xlu0 %v4539
    %v4541 = vpop.xlane.xlu0 %4540
    %v4542 = vadd.f32 %v4467, %v4468
    %4543 = vadd.xlane.f32.xlu0 %v4542
    %v4544 = vpop.xlane.xlu0 %4543
    %v4545 = vadd.f32 %v4469, %v4470
    %4546 = vadd.xlane.f32.xlu0 %v4545
    %v4547 = vpop.xlane.xlu0 %4546
    %v4548 = vadd.f32 %v4471, %v4472
    %4549 = vadd.xlane.f32.xlu0 %v4548
    %v4550 = vpop.xlane.xlu0 %4549
    %v4551 = vadd.f32 %v4473, %v4474
    %4552 = vadd.xlane.f32.xlu0 %v4551
    %v4553 = vpop.xlane.xlu0 %4552
    %v4554 = vadd.f32 %v4475, %v4476
    %4555 = vadd.xlane.f32.xlu0 %v4554
    %v4556 = vpop.xlane.xlu0 %4555
    %v4557 = vadd.f32 %v4477, %v4478
    %4558 = vadd.xlane.f32.xlu0 %v4557
    %v4559 = vpop.xlane.xlu0 %4558
    %v4560 = vadd.f32 %v4479, %v4480
    %4561 = vadd.xlane.f32.xlu0 %v4560
    %v4562 = vpop.xlane.xlu0 %4561
    %v4563 = vadd.f32 %v4481, %v4482
    %4564 = vadd.xlane.f32.xlu0 %v4563
    %v4565 = vpop.xlane.xlu0 %4564
    %v4566 = vadd.f32 %v4483, %v4484
    %4567 = vadd.xlane.f32.xlu0 %v4566
    %v4568 = vpop.xlane.xlu0 %4567
    %v4569 = vadd.f32 %v4485, %v4486
    %4570 = vadd.xlane.f32.xlu0 %v4569
    %v4571 = vpop.xlane.xlu0 %4570
    %v4572 = vadd.f32 %v4487, %v4488
    %4573 = vadd.xlane.f32.xlu0 %v4572
    %v4574 = vpop.xlane.xlu0 %4573
    %v4575 = vadd.f32 %v4489, %v4490
    %4576 = vadd.xlane.f32.xlu0 %v4575
    %v4577 = vpop.xlane.xlu0 %4576
    %v4578 = vadd.f32 %v4491, %v4492
    %4579 = vadd.xlane.f32.xlu0 %v4578
    %v4580 = vpop.xlane.xlu0 %4579
    %v4581 = vadd.f32 %v4493, %v4494
    %4582 = vadd.xlane.f32.xlu0 %v4581
    %v4583 = vpop.xlane.xlu0 %4582
    %v4584 = vadd.f32 %v4495, %v4496
    %4585 = vadd.xlane.f32.xlu0 %v4584
    %v4586 = vpop.xlane.xlu0 %4585
    %v4587 = vadd.f32 %v4497, %v4498
    %4588 = vadd.xlane.f32.xlu0 %v4587
    %v4589 = vpop.xlane.xlu0 %4588
    %v4590 = vadd.f32 %v4499, %v4500
    %4591 = vadd.xlane.f32.xlu0 %v4590
    %v4592 = vpop.xlane.xlu0 %4591
    %v4593 = vadd.f32 %v4501, %v4502
    %4594 = vadd.xlane.f32.xlu0 %v4593
    %v4595 = vpop.xlane.xlu0 %4594
    %v4596 = vadd.f32 %v4503, %v4504
    %4597 = vadd.xlane.f32.xlu0 %v4596
    %v4598 = vpop.xlane.xlu0 %4597
    %v4599 = vadd.f32 %v4505, %v4506
    %4600 = vadd.xlane.f32.xlu0 %v4599
    %v4601 = vpop.xlane.xlu0 %4600
    %v4602 = vadd.f32 %v4507, %v4508
    %4603 = vadd.xlane.f32.xlu0 %v4602
    %v4604 = vpop.xlane.xlu0 %4603
    %v4605 = vld [vmem:[#allocation2] sm:$0x1]
    %4607 = vset.pattern.permute.xlu0 0
    %4608 = vperm.xlu0 %4607, %v4605
    %v4609 = vpop.permute.xlu0 %4608
    %v4611 = vlaneseq
    %v4612 = vshrl.u32 %v4611, 7
    %v4613 = vsub.s32 0, %v4612
    %v4614 = vrot.slane %v4609, %v4613
    %v4615 = vadd.f32 %v4511, %v4614
    %v4616 = vadd.f32 %v4514, %v4614
    %v4617 = vadd.f32 %v4517, %v4614
    %v4618 = vadd.f32 %v4520, %v4614
    %v4619 = vadd.f32 %v4523, %v4614
    %v4620 = vadd.f32 %v4526, %v4614
    %v4621 = vadd.f32 %v4529, %v4614
    %v4622 = vadd.f32 %v4532, %v4614
    %v4623 = vadd.f32 %v4535, %v4614
    %v4624 = vadd.f32 %v4538, %v4614
    %v4625 = vadd.f32 %v4541, %v4614
    %v4626 = vadd.f32 %v4544, %v4614
    %v4627 = vadd.f32 %v4547, %v4614
    %v4628 = vadd.f32 %v4550, %v4614
    %v4629 = vadd.f32 %v4553, %v4614
    %v4630 = vadd.f32 %v4556, %v4614
    %v4631 = vadd.f32 %v4559, %v4614
    %v4632 = vadd.f32 %v4562, %v4614
    %v4633 = vadd.f32 %v4565, %v4614
    %v4634 = vadd.f32 %v4568, %v4614
    %v4635 = vadd.f32 %v4571, %v4614
    %v4636 = vadd.f32 %v4574, %v4614
    %v4637 = vadd.f32 %v4577, %v4614
    %v4638 = vadd.f32 %v4580, %v4614
    %v4639 = vadd.f32 %v4583, %v4614
    %v4640 = vadd.f32 %v4586, %v4614
    %v4641 = vadd.f32 %v4589, %v4614
    %v4642 = vadd.f32 %v4592, %v4614
    %v4643 = vadd.f32 %v4595, %v4614
    %v4644 = vadd.f32 %v4598, %v4614
    %v4645 = vadd.f32 %v4601, %v4614
    %v4646 = vadd.f32 %v4604, %v4614
    %v4679 = vlaneseq
    %v4680 = vshrl.u32 %v4679, 7
    %v4681 = vsub.s32 0, %v4680
    %v4682 = vrot.slane %v4615, %v4681
    %v4683 = vlaneseq
    %v4684 = vshrl.u32 %v4683, 7
    %v4685 = vsub.s32 1, %v4684
    %v4686 = vrot.slane %v4615, %v4685
    %v4687 = vlaneseq
    %v4688 = vshrl.u32 %v4687, 7
    %v4689 = vsub.s32 2, %v4688
    %v4690 = vrot.slane %v4615, %v4689
    %v4691 = vlaneseq
    %v4692 = vshrl.u32 %v4691, 7
    %v4693 = vsub.s32 3, %v4692
    %v4694 = vrot.slane %v4615, %v4693
    %v4695 = vlaneseq
    %v4696 = vshrl.u32 %v4695, 7
    %v4697 = vsub.s32 4, %v4696
    %v4698 = vrot.slane %v4615, %v4697
    %v4699 = vlaneseq
    %v4700 = vshrl.u32 %v4699, 7
    %v4701 = vsub.s32 5, %v4700
    %v4702 = vrot.slane %v4615, %v4701
    %v4703 = vlaneseq
    %v4704 = vshrl.u32 %v4703, 7
    %v4705 = vsub.s32 6, %v4704
    %v4706 = vrot.slane %v4615, %v4705
    %v4707 = vlaneseq
    %v4708 = vshrl.u32 %v4707, 7
    %v4709 = vsub.s32 7, %v4708
    %v4710 = vrot.slane %v4615, %v4709
    %v4711 = vlaneseq
    %v4712 = vshrl.u32 %v4711, 7
    %v4713 = vsub.s32 0, %v4712
    %v4714 = vrot.slane %v4616, %v4713
    %v4715 = vlaneseq
    %v4716 = vshrl.u32 %v4715, 7
    %v4717 = vsub.s32 1, %v4716
    %v4718 = vrot.slane %v4616, %v4717
    %v4719 = vlaneseq
    %v4720 = vshrl.u32 %v4719, 7
    %v4721 = vsub.s32 2, %v4720
    %v4722 = vrot.slane %v4616, %v4721
    %v4723 = vlaneseq
    %v4724 = vshrl.u32 %v4723, 7
    %v4725 = vsub.s32 3, %v4724
    %v4726 = vrot.slane %v4616, %v4725
    %v4727 = vlaneseq
    %v4728 = vshrl.u32 %v4727, 7
    %v4729 = vsub.s32 4, %v4728
    %v4730 = vrot.slane %v4616, %v4729
    %v4731 = vlaneseq
    %v4732 = vshrl.u32 %v4731, 7
    %v4733 = vsub.s32 5, %v4732
    %v4734 = vrot.slane %v4616, %v4733
    %v4735 = vlaneseq
    %v4736 = vshrl.u32 %v4735, 7
    %v4737 = vsub.s32 6, %v4736
    %v4738 = vrot.slane %v4616, %v4737
    %v4739 = vlaneseq
    %v4740 = vshrl.u32 %v4739, 7
    %v4741 = vsub.s32 7, %v4740
    %v4742 = vrot.slane %v4616, %v4741
    %v4743 = vlaneseq
    %v4744 = vshrl.u32 %v4743, 7
    %v4745 = vsub.s32 0, %v4744
    %v4746 = vrot.slane %v4617, %v4745
    %v4747 = vlaneseq
    %v4748 = vshrl.u32 %v4747, 7
    %v4749 = vsub.s32 1, %v4748
    %v4750 = vrot.slane %v4617, %v4749
    %v4751 = vlaneseq
    %v4752 = vshrl.u32 %v4751, 7
    %v4753 = vsub.s32 2, %v4752
    %v4754 = vrot.slane %v4617, %v4753
    %v4755 = vlaneseq
    %v4756 = vshrl.u32 %v4755, 7
    %v4757 = vsub.s32 3, %v4756
    %v4758 = vrot.slane %v4617, %v4757
    %v4759 = vlaneseq
    %v4760 = vshrl.u32 %v4759, 7
    %v4761 = vsub.s32 4, %v4760
    %v4762 = vrot.slane %v4617, %v4761
    %v4763 = vlaneseq
    %v4764 = vshrl.u32 %v4763, 7
    %v4765 = vsub.s32 5, %v4764
    %v4766 = vrot.slane %v4617, %v4765
    %v4767 = vlaneseq
    %v4768 = vshrl.u32 %v4767, 7
    %v4769 = vsub.s32 6, %v4768
    %v4770 = vrot.slane %v4617, %v4769
    %v4771 = vlaneseq
    %v4772 = vshrl.u32 %v4771, 7
    %v4773 = vsub.s32 7, %v4772
    %v4774 = vrot.slane %v4617, %v4773
    %v4775 = vlaneseq
    %v4776 = vshrl.u32 %v4775, 7
    %v4777 = vsub.s32 0, %v4776
    %v4778 = vrot.slane %v4618, %v4777
    %v4779 = vlaneseq
    %v4780 = vshrl.u32 %v4779, 7
    %v4781 = vsub.s32 1, %v4780
    %v4782 = vrot.slane %v4618, %v4781
    %v4783 = vlaneseq
    %v4784 = vshrl.u32 %v4783, 7
    %v4785 = vsub.s32 2, %v4784
    %v4786 = vrot.slane %v4618, %v4785
    %v4787 = vlaneseq
    %v4788 = vshrl.u32 %v4787, 7
    %v4789 = vsub.s32 3, %v4788
    %v4790 = vrot.slane %v4618, %v4789
    %v4791 = vlaneseq
    %v4792 = vshrl.u32 %v4791, 7
    %v4793 = vsub.s32 4, %v4792
    %v4794 = vrot.slane %v4618, %v4793
    %v4795 = vlaneseq
    %v4796 = vshrl.u32 %v4795, 7
    %v4797 = vsub.s32 5, %v4796
    %v4798 = vrot.slane %v4618, %v4797
    %v4799 = vlaneseq
    %v4800 = vshrl.u32 %v4799, 7
    %v4801 = vsub.s32 6, %v4800
    %v4802 = vrot.slane %v4618, %v4801
    %v4803 = vlaneseq
    %v4804 = vshrl.u32 %v4803, 7
    %v4805 = vsub.s32 7, %v4804
    %v4806 = vrot.slane %v4618, %v4805
    %v4807 = vlaneseq
    %v4808 = vshrl.u32 %v4807, 7
    %v4809 = vsub.s32 0, %v4808
    %v4810 = vrot.slane %v4619, %v4809
    %v4811 = vlaneseq
    %v4812 = vshrl.u32 %v4811, 7
    %v4813 = vsub.s32 1, %v4812
    %v4814 = vrot.slane %v4619, %v4813
    %v4815 = vlaneseq
    %v4816 = vshrl.u32 %v4815, 7
    %v4817 = vsub.s32 2, %v4816
    %v4818 = vrot.slane %v4619, %v4817
    %v4819 = vlaneseq
    %v4820 = vshrl.u32 %v4819, 7
    %v4821 = vsub.s32 3, %v4820
    %v4822 = vrot.slane %v4619, %v4821
    %v4823 = vlaneseq
    %v4824 = vshrl.u32 %v4823, 7
    %v4825 = vsub.s32 4, %v4824
    %v4826 = vrot.slane %v4619, %v4825
    %v4827 = vlaneseq
    %v4828 = vshrl.u32 %v4827, 7
    %v4829 = vsub.s32 5, %v4828
    %v4830 = vrot.slane %v4619, %v4829
    %v4831 = vlaneseq
    %v4832 = vshrl.u32 %v4831, 7
    %v4833 = vsub.s32 6, %v4832
    %v4834 = vrot.slane %v4619, %v4833
    %v4835 = vlaneseq
    %v4836 = vshrl.u32 %v4835, 7
    %v4837 = vsub.s32 7, %v4836
    %v4838 = vrot.slane %v4619, %v4837
    %v4839 = vlaneseq
    %v4840 = vshrl.u32 %v4839, 7
    %v4841 = vsub.s32 0, %v4840
    %v4842 = vrot.slane %v4620, %v4841
    %v4843 = vlaneseq
    %v4844 = vshrl.u32 %v4843, 7
    %v4845 = vsub.s32 1, %v4844
    %v4846 = vrot.slane %v4620, %v4845
    %v4847 = vlaneseq
    %v4848 = vshrl.u32 %v4847, 7
    %v4849 = vsub.s32 2, %v4848
    %v4850 = vrot.slane %v4620, %v4849
    %v4851 = vlaneseq
    %v4852 = vshrl.u32 %v4851, 7
    %v4853 = vsub.s32 3, %v4852
    %v4854 = vrot.slane %v4620, %v4853
    %v4855 = vlaneseq
    %v4856 = vshrl.u32 %v4855, 7
    %v4857 = vsub.s32 4, %v4856
    %v4858 = vrot.slane %v4620, %v4857
    %v4859 = vlaneseq
    %v4860 = vshrl.u32 %v4859, 7
    %v4861 = vsub.s32 5, %v4860
    %v4862 = vrot.slane %v4620, %v4861
    %v4863 = vlaneseq
    %v4864 = vshrl.u32 %v4863, 7
    %v4865 = vsub.s32 6, %v4864
    %v4866 = vrot.slane %v4620, %v4865
    %v4867 = vlaneseq
    %v4868 = vshrl.u32 %v4867, 7
    %v4869 = vsub.s32 7, %v4868
    %v4870 = vrot.slane %v4620, %v4869
    %v4871 = vlaneseq
    %v4872 = vshrl.u32 %v4871, 7
    %v4873 = vsub.s32 0, %v4872
    %v4874 = vrot.slane %v4621, %v4873
    %v4875 = vlaneseq
    %v4876 = vshrl.u32 %v4875, 7
    %v4877 = vsub.s32 1, %v4876
    %v4878 = vrot.slane %v4621, %v4877
    %v4879 = vlaneseq
    %v4880 = vshrl.u32 %v4879, 7
    %v4881 = vsub.s32 2, %v4880
    %v4882 = vrot.slane %v4621, %v4881
    %v4883 = vlaneseq
    %v4884 = vshrl.u32 %v4883, 7
    %v4885 = vsub.s32 3, %v4884
    %v4886 = vrot.slane %v4621, %v4885
    %v4887 = vlaneseq
    %v4888 = vshrl.u32 %v4887, 7
    %v4889 = vsub.s32 4, %v4888
    %v4890 = vrot.slane %v4621, %v4889
    %v4891 = vlaneseq
    %v4892 = vshrl.u32 %v4891, 7
    %v4893 = vsub.s32 5, %v4892
    %v4894 = vrot.slane %v4621, %v4893
    %v4895 = vlaneseq
    %v4896 = vshrl.u32 %v4895, 7
    %v4897 = vsub.s32 6, %v4896
    %v4898 = vrot.slane %v4621, %v4897
    %v4899 = vlaneseq
    %v4900 = vshrl.u32 %v4899, 7
    %v4901 = vsub.s32 7, %v4900
    %v4902 = vrot.slane %v4621, %v4901
    %v4903 = vlaneseq
    %v4904 = vshrl.u32 %v4903, 7
    %v4905 = vsub.s32 0, %v4904
    %v4906 = vrot.slane %v4622, %v4905
    %v4907 = vlaneseq
    %v4908 = vshrl.u32 %v4907, 7
    %v4909 = vsub.s32 1, %v4908
    %v4910 = vrot.slane %v4622, %v4909
    %v4911 = vlaneseq
    %v4912 = vshrl.u32 %v4911, 7
    %v4913 = vsub.s32 2, %v4912
    %v4914 = vrot.slane %v4622, %v4913
    %v4915 = vlaneseq
    %v4916 = vshrl.u32 %v4915, 7
    %v4917 = vsub.s32 3, %v4916
    %v4918 = vrot.slane %v4622, %v4917
    %v4919 = vlaneseq
    %v4920 = vshrl.u32 %v4919, 7
    %v4921 = vsub.s32 4, %v4920
    %v4922 = vrot.slane %v4622, %v4921
    %v4923 = vlaneseq
    %v4924 = vshrl.u32 %v4923, 7
    %v4925 = vsub.s32 5, %v4924
    %v4926 = vrot.slane %v4622, %v4925
    %v4927 = vlaneseq
    %v4928 = vshrl.u32 %v4927, 7
    %v4929 = vsub.s32 6, %v4928
    %v4930 = vrot.slane %v4622, %v4929
    %v4931 = vlaneseq
    %v4932 = vshrl.u32 %v4931, 7
    %v4933 = vsub.s32 7, %v4932
    %v4934 = vrot.slane %v4622, %v4933
    %v4935 = vlaneseq
    %v4936 = vshrl.u32 %v4935, 7
    %v4937 = vsub.s32 0, %v4936
    %v4938 = vrot.slane %v4623, %v4937
    %v4939 = vlaneseq
    %v4940 = vshrl.u32 %v4939, 7
    %v4941 = vsub.s32 1, %v4940
    %v4942 = vrot.slane %v4623, %v4941
    %v4943 = vlaneseq
    %v4944 = vshrl.u32 %v4943, 7
    %v4945 = vsub.s32 2, %v4944
    %v4946 = vrot.slane %v4623, %v4945
    %v4947 = vlaneseq
    %v4948 = vshrl.u32 %v4947, 7
    %v4949 = vsub.s32 3, %v4948
    %v4950 = vrot.slane %v4623, %v4949
    %v4951 = vlaneseq
    %v4952 = vshrl.u32 %v4951, 7
    %v4953 = vsub.s32 4, %v4952
    %v4954 = vrot.slane %v4623, %v4953
    %v4955 = vlaneseq
    %v4956 = vshrl.u32 %v4955, 7
    %v4957 = vsub.s32 5, %v4956
    %v4958 = vrot.slane %v4623, %v4957
    %v4959 = vlaneseq
    %v4960 = vshrl.u32 %v4959, 7
    %v4961 = vsub.s32 6, %v4960
    %v4962 = vrot.slane %v4623, %v4961
    %v4963 = vlaneseq
    %v4964 = vshrl.u32 %v4963, 7
    %v4965 = vsub.s32 7, %v4964
    %v4966 = vrot.slane %v4623, %v4965
    %v4967 = vlaneseq
    %v4968 = vshrl.u32 %v4967, 7
    %v4969 = vsub.s32 0, %v4968
    %v4970 = vrot.slane %v4624, %v4969
    %v4971 = vlaneseq
    %v4972 = vshrl.u32 %v4971, 7
    %v4973 = vsub.s32 1, %v4972
    %v4974 = vrot.slane %v4624, %v4973
    %v4975 = vlaneseq
    %v4976 = vshrl.u32 %v4975, 7
    %v4977 = vsub.s32 2, %v4976
    %v4978 = vrot.slane %v4624, %v4977
    %v4979 = vlaneseq
    %v4980 = vshrl.u32 %v4979, 7
    %v4981 = vsub.s32 3, %v4980
    %v4982 = vrot.slane %v4624, %v4981
    %v4983 = vlaneseq
    %v4984 = vshrl.u32 %v4983, 7
    %v4985 = vsub.s32 4, %v4984
    %v4986 = vrot.slane %v4624, %v4985
    %v4987 = vlaneseq
    %v4988 = vshrl.u32 %v4987, 7
    %v4989 = vsub.s32 5, %v4988
    %v4990 = vrot.slane %v4624, %v4989
    %v4991 = vlaneseq
    %v4992 = vshrl.u32 %v4991, 7
    %v4993 = vsub.s32 6, %v4992
    %v4994 = vrot.slane %v4624, %v4993
    %v4995 = vlaneseq
    %v4996 = vshrl.u32 %v4995, 7
    %v4997 = vsub.s32 7, %v4996
    %v4998 = vrot.slane %v4624, %v4997
    %v4999 = vlaneseq
    %v5000 = vshrl.u32 %v4999, 7
    %v5001 = vsub.s32 0, %v5000
    %v5002 = vrot.slane %v4625, %v5001
    %v5003 = vlaneseq
    %v5004 = vshrl.u32 %v5003, 7
    %v5005 = vsub.s32 1, %v5004
    %v5006 = vrot.slane %v4625, %v5005
    %v5007 = vlaneseq
    %v5008 = vshrl.u32 %v5007, 7
    %v5009 = vsub.s32 2, %v5008
    %v5010 = vrot.slane %v4625, %v5009
    %v5011 = vlaneseq
    %v5012 = vshrl.u32 %v5011, 7
    %v5013 = vsub.s32 3, %v5012
    %v5014 = vrot.slane %v4625, %v5013
    %v5015 = vlaneseq
    %v5016 = vshrl.u32 %v5015, 7
    %v5017 = vsub.s32 4, %v5016
    %v5018 = vrot.slane %v4625, %v5017
    %v5019 = vlaneseq
    %v5020 = vshrl.u32 %v5019, 7
    %v5021 = vsub.s32 5, %v5020
    %v5022 = vrot.slane %v4625, %v5021
    %v5023 = vlaneseq
    %v5024 = vshrl.u32 %v5023, 7
    %v5025 = vsub.s32 6, %v5024
    %v5026 = vrot.slane %v4625, %v5025
    %v5027 = vlaneseq
    %v5028 = vshrl.u32 %v5027, 7
    %v5029 = vsub.s32 7, %v5028
    %v5030 = vrot.slane %v4625, %v5029
    %v5031 = vlaneseq
    %v5032 = vshrl.u32 %v5031, 7
    %v5033 = vsub.s32 0, %v5032
    %v5034 = vrot.slane %v4626, %v5033
    %v5035 = vlaneseq
    %v5036 = vshrl.u32 %v5035, 7
    %v5037 = vsub.s32 1, %v5036
    %v5038 = vrot.slane %v4626, %v5037
    %v5039 = vlaneseq
    %v5040 = vshrl.u32 %v5039, 7
    %v5041 = vsub.s32 2, %v5040
    %v5042 = vrot.slane %v4626, %v5041
    %v5043 = vlaneseq
    %v5044 = vshrl.u32 %v5043, 7
    %v5045 = vsub.s32 3, %v5044
    %v5046 = vrot.slane %v4626, %v5045
    %v5047 = vlaneseq
    %v5048 = vshrl.u32 %v5047, 7
    %v5049 = vsub.s32 4, %v5048
    %v5050 = vrot.slane %v4626, %v5049
    %v5051 = vlaneseq
    %v5052 = vshrl.u32 %v5051, 7
    %v5053 = vsub.s32 5, %v5052
    %v5054 = vrot.slane %v4626, %v5053
    %v5055 = vlaneseq
    %v5056 = vshrl.u32 %v5055, 7
    %v5057 = vsub.s32 6, %v5056
    %v5058 = vrot.slane %v4626, %v5057
    %v5059 = vlaneseq
    %v5060 = vshrl.u32 %v5059, 7
    %v5061 = vsub.s32 7, %v5060
    %v5062 = vrot.slane %v4626, %v5061
    %v5063 = vlaneseq
    %v5064 = vshrl.u32 %v5063, 7
    %v5065 = vsub.s32 0, %v5064
    %v5066 = vrot.slane %v4627, %v5065
    %v5067 = vlaneseq
    %v5068 = vshrl.u32 %v5067, 7
    %v5069 = vsub.s32 1, %v5068
    %v5070 = vrot.slane %v4627, %v5069
    %v5071 = vlaneseq
    %v5072 = vshrl.u32 %v5071, 7
    %v5073 = vsub.s32 2, %v5072
    %v5074 = vrot.slane %v4627, %v5073
    %v5075 = vlaneseq
    %v5076 = vshrl.u32 %v5075, 7
    %v5077 = vsub.s32 3, %v5076
    %v5078 = vrot.slane %v4627, %v5077
    %v5079 = vlaneseq
    %v5080 = vshrl.u32 %v5079, 7
    %v5081 = vsub.s32 4, %v5080
    %v5082 = vrot.slane %v4627, %v5081
    %v5083 = vlaneseq
    %v5084 = vshrl.u32 %v5083, 7
    %v5085 = vsub.s32 5, %v5084
    %v5086 = vrot.slane %v4627, %v5085
    %v5087 = vlaneseq
    %v5088 = vshrl.u32 %v5087, 7
    %v5089 = vsub.s32 6, %v5088
    %v5090 = vrot.slane %v4627, %v5089
    %v5091 = vlaneseq
    %v5092 = vshrl.u32 %v5091, 7
    %v5093 = vsub.s32 7, %v5092
    %v5094 = vrot.slane %v4627, %v5093
    %v5095 = vlaneseq
    %v5096 = vshrl.u32 %v5095, 7
    %v5097 = vsub.s32 0, %v5096
    %v5098 = vrot.slane %v4628, %v5097
    %v5099 = vlaneseq
    %v5100 = vshrl.u32 %v5099, 7
    %v5101 = vsub.s32 1, %v5100
    %v5102 = vrot.slane %v4628, %v5101
    %v5103 = vlaneseq
    %v5104 = vshrl.u32 %v5103, 7
    %v5105 = vsub.s32 2, %v5104
    %v5106 = vrot.slane %v4628, %v5105
    %v5107 = vlaneseq
    %v5108 = vshrl.u32 %v5107, 7
    %v5109 = vsub.s32 3, %v5108
    %v5110 = vrot.slane %v4628, %v5109
    %v5111 = vlaneseq
    %v5112 = vshrl.u32 %v5111, 7
    %v5113 = vsub.s32 4, %v5112
    %v5114 = vrot.slane %v4628, %v5113
    %v5115 = vlaneseq
    %v5116 = vshrl.u32 %v5115, 7
    %v5117 = vsub.s32 5, %v5116
    %v5118 = vrot.slane %v4628, %v5117
    %v5119 = vlaneseq
    %v5120 = vshrl.u32 %v5119, 7
    %v5121 = vsub.s32 6, %v5120
    %v5122 = vrot.slane %v4628, %v5121
    %v5123 = vlaneseq
    %v5124 = vshrl.u32 %v5123, 7
    %v5125 = vsub.s32 7, %v5124
    %v5126 = vrot.slane %v4628, %v5125
    %v5127 = vlaneseq
    %v5128 = vshrl.u32 %v5127, 7
    %v5129 = vsub.s32 0, %v5128
    %v5130 = vrot.slane %v4629, %v5129
    %v5131 = vlaneseq
    %v5132 = vshrl.u32 %v5131, 7
    %v5133 = vsub.s32 1, %v5132
    %v5134 = vrot.slane %v4629, %v5133
    %v5135 = vlaneseq
    %v5136 = vshrl.u32 %v5135, 7
    %v5137 = vsub.s32 2, %v5136
    %v5138 = vrot.slane %v4629, %v5137
    %v5139 = vlaneseq
    %v5140 = vshrl.u32 %v5139, 7
    %v5141 = vsub.s32 3, %v5140
    %v5142 = vrot.slane %v4629, %v5141
    %v5143 = vlaneseq
    %v5144 = vshrl.u32 %v5143, 7
    %v5145 = vsub.s32 4, %v5144
    %v5146 = vrot.slane %v4629, %v5145
    %v5147 = vlaneseq
    %v5148 = vshrl.u32 %v5147, 7
    %v5149 = vsub.s32 5, %v5148
    %v5150 = vrot.slane %v4629, %v5149
    %v5151 = vlaneseq
    %v5152 = vshrl.u32 %v5151, 7
    %v5153 = vsub.s32 6, %v5152
    %v5154 = vrot.slane %v4629, %v5153
    %v5155 = vlaneseq
    %v5156 = vshrl.u32 %v5155, 7
    %v5157 = vsub.s32 7, %v5156
    %v5158 = vrot.slane %v4629, %v5157
    %v5159 = vlaneseq
    %v5160 = vshrl.u32 %v5159, 7
    %v5161 = vsub.s32 0, %v5160
    %v5162 = vrot.slane %v4630, %v5161
    %v5163 = vlaneseq
    %v5164 = vshrl.u32 %v5163, 7
    %v5165 = vsub.s32 1, %v5164
    %v5166 = vrot.slane %v4630, %v5165
    %v5167 = vlaneseq
    %v5168 = vshrl.u32 %v5167, 7
    %v5169 = vsub.s32 2, %v5168
    %v5170 = vrot.slane %v4630, %v5169
    %v5171 = vlaneseq
    %v5172 = vshrl.u32 %v5171, 7
    %v5173 = vsub.s32 3, %v5172
    %v5174 = vrot.slane %v4630, %v5173
    %v5175 = vlaneseq
    %v5176 = vshrl.u32 %v5175, 7
    %v5177 = vsub.s32 4, %v5176
    %v5178 = vrot.slane %v4630, %v5177
    %v5179 = vlaneseq
    %v5180 = vshrl.u32 %v5179, 7
    %v5181 = vsub.s32 5, %v5180
    %v5182 = vrot.slane %v4630, %v5181
    %v5183 = vlaneseq
    %v5184 = vshrl.u32 %v5183, 7
    %v5185 = vsub.s32 6, %v5184
    %v5186 = vrot.slane %v4630, %v5185
    %v5187 = vlaneseq
    %v5188 = vshrl.u32 %v5187, 7
    %v5189 = vsub.s32 7, %v5188
    %v5190 = vrot.slane %v4630, %v5189
    %v5191 = vlaneseq
    %v5192 = vshrl.u32 %v5191, 7
    %v5193 = vsub.s32 0, %v5192
    %v5194 = vrot.slane %v4631, %v5193
    %v5195 = vlaneseq
    %v5196 = vshrl.u32 %v5195, 7
    %v5197 = vsub.s32 1, %v5196
    %v5198 = vrot.slane %v4631, %v5197
    %v5199 = vlaneseq
    %v5200 = vshrl.u32 %v5199, 7
    %v5201 = vsub.s32 2, %v5200
    %v5202 = vrot.slane %v4631, %v5201
    %v5203 = vlaneseq
    %v5204 = vshrl.u32 %v5203, 7
    %v5205 = vsub.s32 3, %v5204
    %v5206 = vrot.slane %v4631, %v5205
    %v5207 = vlaneseq
    %v5208 = vshrl.u32 %v5207, 7
    %v5209 = vsub.s32 4, %v5208
    %v5210 = vrot.slane %v4631, %v5209
    %v5211 = vlaneseq
    %v5212 = vshrl.u32 %v5211, 7
    %v5213 = vsub.s32 5, %v5212
    %v5214 = vrot.slane %v4631, %v5213
    %v5215 = vlaneseq
    %v5216 = vshrl.u32 %v5215, 7
    %v5217 = vsub.s32 6, %v5216
    %v5218 = vrot.slane %v4631, %v5217
    %v5219 = vlaneseq
    %v5220 = vshrl.u32 %v5219, 7
    %v5221 = vsub.s32 7, %v5220
    %v5222 = vrot.slane %v4631, %v5221
    %v5223 = vlaneseq
    %v5224 = vshrl.u32 %v5223, 7
    %v5225 = vsub.s32 0, %v5224
    %v5226 = vrot.slane %v4632, %v5225
    %v5227 = vlaneseq
    %v5228 = vshrl.u32 %v5227, 7
    %v5229 = vsub.s32 1, %v5228
    %v5230 = vrot.slane %v4632, %v5229
    %v5231 = vlaneseq
    %v5232 = vshrl.u32 %v5231, 7
    %v5233 = vsub.s32 2, %v5232
    %v5234 = vrot.slane %v4632, %v5233
    %v5235 = vlaneseq
    %v5236 = vshrl.u32 %v5235, 7
    %v5237 = vsub.s32 3, %v5236
    %v5238 = vrot.slane %v4632, %v5237
    %v5239 = vlaneseq
    %v5240 = vshrl.u32 %v5239, 7
    %v5241 = vsub.s32 4, %v5240
    %v5242 = vrot.slane %v4632, %v5241
    %v5243 = vlaneseq
    %v5244 = vshrl.u32 %v5243, 7
    %v5245 = vsub.s32 5, %v5244
    %v5246 = vrot.slane %v4632, %v5245
    %v5247 = vlaneseq
    %v5248 = vshrl.u32 %v5247, 7
    %v5249 = vsub.s32 6, %v5248
    %v5250 = vrot.slane %v4632, %v5249
    %v5251 = vlaneseq
    %v5252 = vshrl.u32 %v5251, 7
    %v5253 = vsub.s32 7, %v5252
    %v5254 = vrot.slane %v4632, %v5253
    %v5255 = vlaneseq
    %v5256 = vshrl.u32 %v5255, 7
    %v5257 = vsub.s32 0, %v5256
    %v5258 = vrot.slane %v4633, %v5257
    %v5259 = vlaneseq
    %v5260 = vshrl.u32 %v5259, 7
    %v5261 = vsub.s32 1, %v5260
    %v5262 = vrot.slane %v4633, %v5261
    %v5263 = vlaneseq
    %v5264 = vshrl.u32 %v5263, 7
    %v5265 = vsub.s32 2, %v5264
    %v5266 = vrot.slane %v4633, %v5265
    %v5267 = vlaneseq
    %v5268 = vshrl.u32 %v5267, 7
    %v5269 = vsub.s32 3, %v5268
    %v5270 = vrot.slane %v4633, %v5269
    %v5271 = vlaneseq
    %v5272 = vshrl.u32 %v5271, 7
    %v5273 = vsub.s32 4, %v5272
    %v5274 = vrot.slane %v4633, %v5273
    %v5275 = vlaneseq
    %v5276 = vshrl.u32 %v5275, 7
    %v5277 = vsub.s32 5, %v5276
    %v5278 = vrot.slane %v4633, %v5277
    %v5279 = vlaneseq
    %v5280 = vshrl.u32 %v5279, 7
    %v5281 = vsub.s32 6, %v5280
    %v5282 = vrot.slane %v4633, %v5281
    %v5283 = vlaneseq
    %v5284 = vshrl.u32 %v5283, 7
    %v5285 = vsub.s32 7, %v5284
    %v5286 = vrot.slane %v4633, %v5285
    %v5287 = vlaneseq
    %v5288 = vshrl.u32 %v5287, 7
    %v5289 = vsub.s32 0, %v5288
    %v5290 = vrot.slane %v4634, %v5289
    %v5291 = vlaneseq
    %v5292 = vshrl.u32 %v5291, 7
    %v5293 = vsub.s32 1, %v5292
    %v5294 = vrot.slane %v4634, %v5293
    %v5295 = vlaneseq
    %v5296 = vshrl.u32 %v5295, 7
    %v5297 = vsub.s32 2, %v5296
    %v5298 = vrot.slane %v4634, %v5297
    %v5299 = vlaneseq
    %v5300 = vshrl.u32 %v5299, 7
    %v5301 = vsub.s32 3, %v5300
    %v5302 = vrot.slane %v4634, %v5301
    %v5303 = vlaneseq
    %v5304 = vshrl.u32 %v5303, 7
    %v5305 = vsub.s32 4, %v5304
    %v5306 = vrot.slane %v4634, %v5305
    %v5307 = vlaneseq
    %v5308 = vshrl.u32 %v5307, 7
    %v5309 = vsub.s32 5, %v5308
    %v5310 = vrot.slane %v4634, %v5309
    %v5311 = vlaneseq
    %v5312 = vshrl.u32 %v5311, 7
    %v5313 = vsub.s32 6, %v5312
    %v5314 = vrot.slane %v4634, %v5313
    %v5315 = vlaneseq
    %v5316 = vshrl.u32 %v5315, 7
    %v5317 = vsub.s32 7, %v5316
    %v5318 = vrot.slane %v4634, %v5317
    %v5319 = vlaneseq
    %v5320 = vshrl.u32 %v5319, 7
    %v5321 = vsub.s32 0, %v5320
    %v5322 = vrot.slane %v4635, %v5321
    %v5323 = vlaneseq
    %v5324 = vshrl.u32 %v5323, 7
    %v5325 = vsub.s32 1, %v5324
    %v5326 = vrot.slane %v4635, %v5325
    %v5327 = vlaneseq
    %v5328 = vshrl.u32 %v5327, 7
    %v5329 = vsub.s32 2, %v5328
    %v5330 = vrot.slane %v4635, %v5329
    %v5331 = vlaneseq
    %v5332 = vshrl.u32 %v5331, 7
    %v5333 = vsub.s32 3, %v5332
    %v5334 = vrot.slane %v4635, %v5333
    %v5335 = vlaneseq
    %v5336 = vshrl.u32 %v5335, 7
    %v5337 = vsub.s32 4, %v5336
    %v5338 = vrot.slane %v4635, %v5337
    %v5339 = vlaneseq
    %v5340 = vshrl.u32 %v5339, 7
    %v5341 = vsub.s32 5, %v5340
    %v5342 = vrot.slane %v4635, %v5341
    %v5343 = vlaneseq
    %v5344 = vshrl.u32 %v5343, 7
    %v5345 = vsub.s32 6, %v5344
    %v5346 = vrot.slane %v4635, %v5345
    %v5347 = vlaneseq
    %v5348 = vshrl.u32 %v5347, 7
    %v5349 = vsub.s32 7, %v5348
    %v5350 = vrot.slane %v4635, %v5349
    %v5351 = vlaneseq
    %v5352 = vshrl.u32 %v5351, 7
    %v5353 = vsub.s32 0, %v5352
    %v5354 = vrot.slane %v4636, %v5353
    %v5355 = vlaneseq
    %v5356 = vshrl.u32 %v5355, 7
    %v5357 = vsub.s32 1, %v5356
    %v5358 = vrot.slane %v4636, %v5357
    %v5359 = vlaneseq
    %v5360 = vshrl.u32 %v5359, 7
    %v5361 = vsub.s32 2, %v5360
    %v5362 = vrot.slane %v4636, %v5361
    %v5363 = vlaneseq
    %v5364 = vshrl.u32 %v5363, 7
    %v5365 = vsub.s32 3, %v5364
    %v5366 = vrot.slane %v4636, %v5365
    %v5367 = vlaneseq
    %v5368 = vshrl.u32 %v5367, 7
    %v5369 = vsub.s32 4, %v5368
    %v5370 = vrot.slane %v4636, %v5369
    %v5371 = vlaneseq
    %v5372 = vshrl.u32 %v5371, 7
    %v5373 = vsub.s32 5, %v5372
    %v5374 = vrot.slane %v4636, %v5373
    %v5375 = vlaneseq
    %v5376 = vshrl.u32 %v5375, 7
    %v5377 = vsub.s32 6, %v5376
    %v5378 = vrot.slane %v4636, %v5377
    %v5379 = vlaneseq
    %v5380 = vshrl.u32 %v5379, 7
    %v5381 = vsub.s32 7, %v5380
    %v5382 = vrot.slane %v4636, %v5381
    %v5383 = vlaneseq
    %v5384 = vshrl.u32 %v5383, 7
    %v5385 = vsub.s32 0, %v5384
    %v5386 = vrot.slane %v4637, %v5385
    %v5387 = vlaneseq
    %v5388 = vshrl.u32 %v5387, 7
    %v5389 = vsub.s32 1, %v5388
    %v5390 = vrot.slane %v4637, %v5389
    %v5391 = vlaneseq
    %v5392 = vshrl.u32 %v5391, 7
    %v5393 = vsub.s32 2, %v5392
    %v5394 = vrot.slane %v4637, %v5393
    %v5395 = vlaneseq
    %v5396 = vshrl.u32 %v5395, 7
    %v5397 = vsub.s32 3, %v5396
    %v5398 = vrot.slane %v4637, %v5397
    %v5399 = vlaneseq
    %v5400 = vshrl.u32 %v5399, 7
    %v5401 = vsub.s32 4, %v5400
    %v5402 = vrot.slane %v4637, %v5401
    %v5403 = vlaneseq
    %v5404 = vshrl.u32 %v5403, 7
    %v5405 = vsub.s32 5, %v5404
    %v5406 = vrot.slane %v4637, %v5405
    %v5407 = vlaneseq
    %v5408 = vshrl.u32 %v5407, 7
    %v5409 = vsub.s32 6, %v5408
    %v5410 = vrot.slane %v4637, %v5409
    %v5411 = vlaneseq
    %v5412 = vshrl.u32 %v5411, 7
    %v5413 = vsub.s32 7, %v5412
    %v5414 = vrot.slane %v4637, %v5413
    %v5415 = vlaneseq
    %v5416 = vshrl.u32 %v5415, 7
    %v5417 = vsub.s32 0, %v5416
    %v5418 = vrot.slane %v4638, %v5417
    %v5419 = vlaneseq
    %v5420 = vshrl.u32 %v5419, 7
    %v5421 = vsub.s32 1, %v5420
    %v5422 = vrot.slane %v4638, %v5421
    %v5423 = vlaneseq
    %v5424 = vshrl.u32 %v5423, 7
    %v5425 = vsub.s32 2, %v5424
    %v5426 = vrot.slane %v4638, %v5425
    %v5427 = vlaneseq
    %v5428 = vshrl.u32 %v5427, 7
    %v5429 = vsub.s32 3, %v5428
    %v5430 = vrot.slane %v4638, %v5429
    %v5431 = vlaneseq
    %v5432 = vshrl.u32 %v5431, 7
    %v5433 = vsub.s32 4, %v5432
    %v5434 = vrot.slane %v4638, %v5433
    %v5435 = vlaneseq
    %v5436 = vshrl.u32 %v5435, 7
    %v5437 = vsub.s32 5, %v5436
    %v5438 = vrot.slane %v4638, %v5437
    %v5439 = vlaneseq
    %v5440 = vshrl.u32 %v5439, 7
    %v5441 = vsub.s32 6, %v5440
    %v5442 = vrot.slane %v4638, %v5441
    %v5443 = vlaneseq
    %v5444 = vshrl.u32 %v5443, 7
    %v5445 = vsub.s32 7, %v5444
    %v5446 = vrot.slane %v4638, %v5445
    %v5447 = vlaneseq
    %v5448 = vshrl.u32 %v5447, 7
    %v5449 = vsub.s32 0, %v5448
    %v5450 = vrot.slane %v4639, %v5449
    %v5451 = vlaneseq
    %v5452 = vshrl.u32 %v5451, 7
    %v5453 = vsub.s32 1, %v5452
    %v5454 = vrot.slane %v4639, %v5453
    %v5455 = vlaneseq
    %v5456 = vshrl.u32 %v5455, 7
    %v5457 = vsub.s32 2, %v5456
    %v5458 = vrot.slane %v4639, %v5457
    %v5459 = vlaneseq
    %v5460 = vshrl.u32 %v5459, 7
    %v5461 = vsub.s32 3, %v5460
    %v5462 = vrot.slane %v4639, %v5461
    %v5463 = vlaneseq
    %v5464 = vshrl.u32 %v5463, 7
    %v5465 = vsub.s32 4, %v5464
    %v5466 = vrot.slane %v4639, %v5465
    %v5467 = vlaneseq
    %v5468 = vshrl.u32 %v5467, 7
    %v5469 = vsub.s32 5, %v5468
    %v5470 = vrot.slane %v4639, %v5469
    %v5471 = vlaneseq
    %v5472 = vshrl.u32 %v5471, 7
    %v5473 = vsub.s32 6, %v5472
    %v5474 = vrot.slane %v4639, %v5473
    %v5475 = vlaneseq
    %v5476 = vshrl.u32 %v5475, 7
    %v5477 = vsub.s32 7, %v5476
    %v5478 = vrot.slane %v4639, %v5477
    %v5479 = vlaneseq
    %v5480 = vshrl.u32 %v5479, 7
    %v5481 = vsub.s32 0, %v5480
    %v5482 = vrot.slane %v4640, %v5481
    %v5483 = vlaneseq
    %v5484 = vshrl.u32 %v5483, 7
    %v5485 = vsub.s32 1, %v5484
    %v5486 = vrot.slane %v4640, %v5485
    %v5487 = vlaneseq
    %v5488 = vshrl.u32 %v5487, 7
    %v5489 = vsub.s32 2, %v5488
    %v5490 = vrot.slane %v4640, %v5489
    %v5491 = vlaneseq
    %v5492 = vshrl.u32 %v5491, 7
    %v5493 = vsub.s32 3, %v5492
    %v5494 = vrot.slane %v4640, %v5493
    %v5495 = vlaneseq
    %v5496 = vshrl.u32 %v5495, 7
    %v5497 = vsub.s32 4, %v5496
    %v5498 = vrot.slane %v4640, %v5497
    %v5499 = vlaneseq
    %v5500 = vshrl.u32 %v5499, 7
    %v5501 = vsub.s32 5, %v5500
    %v5502 = vrot.slane %v4640, %v5501
    %v5503 = vlaneseq
    %v5504 = vshrl.u32 %v5503, 7
    %v5505 = vsub.s32 6, %v5504
    %v5506 = vrot.slane %v4640, %v5505
    %v5507 = vlaneseq
    %v5508 = vshrl.u32 %v5507, 7
    %v5509 = vsub.s32 7, %v5508
    %v5510 = vrot.slane %v4640, %v5509
    %v5511 = vlaneseq
    %v5512 = vshrl.u32 %v5511, 7
    %v5513 = vsub.s32 0, %v5512
    %v5514 = vrot.slane %v4641, %v5513
    %v5515 = vlaneseq
    %v5516 = vshrl.u32 %v5515, 7
    %v5517 = vsub.s32 1, %v5516
    %v5518 = vrot.slane %v4641, %v5517
    %v5519 = vlaneseq
    %v5520 = vshrl.u32 %v5519, 7
    %v5521 = vsub.s32 2, %v5520
    %v5522 = vrot.slane %v4641, %v5521
    %v5523 = vlaneseq
    %v5524 = vshrl.u32 %v5523, 7
    %v5525 = vsub.s32 3, %v5524
    %v5526 = vrot.slane %v4641, %v5525
    %v5527 = vlaneseq
    %v5528 = vshrl.u32 %v5527, 7
    %v5529 = vsub.s32 4, %v5528
    %v5530 = vrot.slane %v4641, %v5529
    %v5531 = vlaneseq
    %v5532 = vshrl.u32 %v5531, 7
    %v5533 = vsub.s32 5, %v5532
    %v5534 = vrot.slane %v4641, %v5533
    %v5535 = vlaneseq
    %v5536 = vshrl.u32 %v5535, 7
    %v5537 = vsub.s32 6, %v5536
    %v5538 = vrot.slane %v4641, %v5537
    %v5539 = vlaneseq
    %v5540 = vshrl.u32 %v5539, 7
    %v5541 = vsub.s32 7, %v5540
    %v5542 = vrot.slane %v4641, %v5541
    %v5543 = vlaneseq
    %v5544 = vshrl.u32 %v5543, 7
    %v5545 = vsub.s32 0, %v5544
    %v5546 = vrot.slane %v4642, %v5545
    %v5547 = vlaneseq
    %v5548 = vshrl.u32 %v5547, 7
    %v5549 = vsub.s32 1, %v5548
    %v5550 = vrot.slane %v4642, %v5549
    %v5551 = vlaneseq
    %v5552 = vshrl.u32 %v5551, 7
    %v5553 = vsub.s32 2, %v5552
    %v5554 = vrot.slane %v4642, %v5553
    %v5555 = vlaneseq
    %v5556 = vshrl.u32 %v5555, 7
    %v5557 = vsub.s32 3, %v5556
    %v5558 = vrot.slane %v4642, %v5557
    %v5559 = vlaneseq
    %v5560 = vshrl.u32 %v5559, 7
    %v5561 = vsub.s32 4, %v5560
    %v5562 = vrot.slane %v4642, %v5561
    %v5563 = vlaneseq
    %v5564 = vshrl.u32 %v5563, 7
    %v5565 = vsub.s32 5, %v5564
    %v5566 = vrot.slane %v4642, %v5565
    %v5567 = vlaneseq
    %v5568 = vshrl.u32 %v5567, 7
    %v5569 = vsub.s32 6, %v5568
    %v5570 = vrot.slane %v4642, %v5569
    %v5571 = vlaneseq
    %v5572 = vshrl.u32 %v5571, 7
    %v5573 = vsub.s32 7, %v5572
    %v5574 = vrot.slane %v4642, %v5573
    %v5575 = vlaneseq
    %v5576 = vshrl.u32 %v5575, 7
    %v5577 = vsub.s32 0, %v5576
    %v5578 = vrot.slane %v4643, %v5577
    %v5579 = vlaneseq
    %v5580 = vshrl.u32 %v5579, 7
    %v5581 = vsub.s32 1, %v5580
    %v5582 = vrot.slane %v4643, %v5581
    %v5583 = vlaneseq
    %v5584 = vshrl.u32 %v5583, 7
    %v5585 = vsub.s32 2, %v5584
    %v5586 = vrot.slane %v4643, %v5585
    %v5587 = vlaneseq
    %v5588 = vshrl.u32 %v5587, 7
    %v5589 = vsub.s32 3, %v5588
    %v5590 = vrot.slane %v4643, %v5589
    %v5591 = vlaneseq
    %v5592 = vshrl.u32 %v5591, 7
    %v5593 = vsub.s32 4, %v5592
    %v5594 = vrot.slane %v4643, %v5593
    %v5595 = vlaneseq
    %v5596 = vshrl.u32 %v5595, 7
    %v5597 = vsub.s32 5, %v5596
    %v5598 = vrot.slane %v4643, %v5597
    %v5599 = vlaneseq
    %v5600 = vshrl.u32 %v5599, 7
    %v5601 = vsub.s32 6, %v5600
    %v5602 = vrot.slane %v4643, %v5601
    %v5603 = vlaneseq
    %v5604 = vshrl.u32 %v5603, 7
    %v5605 = vsub.s32 7, %v5604
    %v5606 = vrot.slane %v4643, %v5605
    %v5607 = vlaneseq
    %v5608 = vshrl.u32 %v5607, 7
    %v5609 = vsub.s32 0, %v5608
    %v5610 = vrot.slane %v4644, %v5609
    %v5611 = vlaneseq
    %v5612 = vshrl.u32 %v5611, 7
    %v5613 = vsub.s32 1, %v5612
    %v5614 = vrot.slane %v4644, %v5613
    %v5615 = vlaneseq
    %v5616 = vshrl.u32 %v5615, 7
    %v5617 = vsub.s32 2, %v5616
    %v5618 = vrot.slane %v4644, %v5617
    %v5619 = vlaneseq
    %v5620 = vshrl.u32 %v5619, 7
    %v5621 = vsub.s32 3, %v5620
    %v5622 = vrot.slane %v4644, %v5621
    %v5623 = vlaneseq
    %v5624 = vshrl.u32 %v5623, 7
    %v5625 = vsub.s32 4, %v5624
    %v5626 = vrot.slane %v4644, %v5625
    %v5627 = vlaneseq
    %v5628 = vshrl.u32 %v5627, 7
    %v5629 = vsub.s32 5, %v5628
    %v5630 = vrot.slane %v4644, %v5629
    %v5631 = vlaneseq
    %v5632 = vshrl.u32 %v5631, 7
    %v5633 = vsub.s32 6, %v5632
    %v5634 = vrot.slane %v4644, %v5633
    %v5635 = vlaneseq
    %v5636 = vshrl.u32 %v5635, 7
    %v5637 = vsub.s32 7, %v5636
    %v5638 = vrot.slane %v4644, %v5637
    %v5639 = vlaneseq
    %v5640 = vshrl.u32 %v5639, 7
    %v5641 = vsub.s32 0, %v5640
    %v5642 = vrot.slane %v4645, %v5641
    %v5643 = vlaneseq
    %v5644 = vshrl.u32 %v5643, 7
    %v5645 = vsub.s32 1, %v5644
    %v5646 = vrot.slane %v4645, %v5645
    %v5647 = vlaneseq
    %v5648 = vshrl.u32 %v5647, 7
    %v5649 = vsub.s32 2, %v5648
    %v5650 = vrot.slane %v4645, %v5649
    %v5651 = vlaneseq
    %v5652 = vshrl.u32 %v5651, 7
    %v5653 = vsub.s32 3, %v5652
    %v5654 = vrot.slane %v4645, %v5653
    %v5655 = vlaneseq
    %v5656 = vshrl.u32 %v5655, 7
    %v5657 = vsub.s32 4, %v5656
    %v5658 = vrot.slane %v4645, %v5657
    %v5659 = vlaneseq
    %v5660 = vshrl.u32 %v5659, 7
    %v5661 = vsub.s32 5, %v5660
    %v5662 = vrot.slane %v4645, %v5661
    %v5663 = vlaneseq
    %v5664 = vshrl.u32 %v5663, 7
    %v5665 = vsub.s32 6, %v5664
    %v5666 = vrot.slane %v4645, %v5665
    %v5667 = vlaneseq
    %v5668 = vshrl.u32 %v5667, 7
    %v5669 = vsub.s32 7, %v5668
    %v5670 = vrot.slane %v4645, %v5669
    %v5671 = vlaneseq
    %v5672 = vshrl.u32 %v5671, 7
    %v5673 = vsub.s32 0, %v5672
    %v5674 = vrot.slane %v4646, %v5673
    %v5675 = vlaneseq
    %v5676 = vshrl.u32 %v5675, 7
    %v5677 = vsub.s32 1, %v5676
    %v5678 = vrot.slane %v4646, %v5677
    %v5679 = vlaneseq
    %v5680 = vshrl.u32 %v5679, 7
    %v5681 = vsub.s32 2, %v5680
    %v5682 = vrot.slane %v4646, %v5681
    %v5683 = vlaneseq
    %v5684 = vshrl.u32 %v5683, 7
    %v5685 = vsub.s32 3, %v5684
    %v5686 = vrot.slane %v4646, %v5685
    %v5687 = vlaneseq
    %v5688 = vshrl.u32 %v5687, 7
    %v5689 = vsub.s32 4, %v5688
    %v5690 = vrot.slane %v4646, %v5689
    %v5691 = vlaneseq
    %v5692 = vshrl.u32 %v5691, 7
    %v5693 = vsub.s32 5, %v5692
    %v5694 = vrot.slane %v4646, %v5693
    %v5695 = vlaneseq
    %v5696 = vshrl.u32 %v5695, 7
    %v5697 = vsub.s32 6, %v5696
    %v5698 = vrot.slane %v4646, %v5697
    %v5699 = vlaneseq
    %v5700 = vshrl.u32 %v5699, 7
    %v5701 = vsub.s32 7, %v5700
    %v5702 = vrot.slane %v4646, %v5701
    %v5703 = vcombine.low %v4682, %v4686
    %v5704 = vcombine.low %v4690, %v4694
    %v5705 = vcombine.low %v4698, %v4702
    %v5706 = vcombine.low %v4706, %v4710
    %v5708 = vunpack.c.l.s4 1966171168
    %v5709 = vunpack.c.0.s8 %v5708
    %v5710 = vlaneseq
    %v5711 = vshrl.u32 %v5710, 7
    %v5712 = vsub.s32 %v5709, %v5711
    %v5713 = vrot.slane %v5703, %v5712
    %v5715 = vunpack.c.l.s4 1966171168
    %v5716 = vunpack.c.0.s8 %v5715
    %v5717 = vlaneseq
    %v5718 = vshrl.u32 %v5717, 7
    %v5719 = vsub.s32 %v5716, %v5718
    %v5720 = vrot.slane %v5704, %v5719
    %v5722 = vunpack.c.l.s4 1966171168
    %v5723 = vunpack.c.0.s8 %v5722
    %v5724 = vlaneseq
    %v5725 = vshrl.u32 %v5724, 7
    %v5726 = vsub.s32 %v5723, %v5725
    %v5727 = vrot.slane %v5705, %v5726
    %v5729 = vunpack.c.l.s4 1966171168
    %v5730 = vunpack.c.0.s8 %v5729
    %v5731 = vlaneseq
    %v5732 = vshrl.u32 %v5731, 7
    %v5733 = vsub.s32 %v5730, %v5732
    %v5734 = vrot.slane %v5706, %v5733
    %v5735 = vcombine.low %v5713, %v5720
    %v5736 = vcombine.low %v5727, %v5734
    %v5738 = vunpack.c.l.s4 1966171168
    %v5739 = vunpack.c.0.s8 %v5738
    %v5740 = vlaneseq
    %v5741 = vshrl.u32 %v5740, 7
    %v5742 = vsub.s32 %v5739, %v5741
    %v5743 = vrot.slane %v5735, %v5742
    %v5745 = vunpack.c.l.s4 1966171168
    %v5746 = vunpack.c.0.s8 %v5745
    %v5747 = vlaneseq
    %v5748 = vshrl.u32 %v5747, 7
    %v5749 = vsub.s32 %v5746, %v5748
    %v5750 = vrot.slane %v5736, %v5749
    %v5751 = vcombine.low %v5743, %v5750
    %v5752 = vcombine.low %v4714, %v4718
    %v5753 = vcombine.low %v4722, %v4726
    %v5754 = vcombine.low %v4730, %v4734
    %v5755 = vcombine.low %v4738, %v4742
    %v5757 = vunpack.c.l.s4 1966171168
    %v5758 = vunpack.c.0.s8 %v5757
    %v5759 = vlaneseq
    %v5760 = vshrl.u32 %v5759, 7
    %v5761 = vsub.s32 %v5758, %v5760
    %v5762 = vrot.slane %v5752, %v5761
    %v5764 = vunpack.c.l.s4 1966171168
    %v5765 = vunpack.c.0.s8 %v5764
    %v5766 = vlaneseq
    %v5767 = vshrl.u32 %v5766, 7
    %v5768 = vsub.s32 %v5765, %v5767
    %v5769 = vrot.slane %v5753, %v5768
    %v5771 = vunpack.c.l.s4 1966171168
    %v5772 = vunpack.c.0.s8 %v5771
    %v5773 = vlaneseq
    %v5774 = vshrl.u32 %v5773, 7
    %v5775 = vsub.s32 %v5772, %v5774
    %v5776 = vrot.slane %v5754, %v5775
    %v5778 = vunpack.c.l.s4 1966171168
    %v5779 = vunpack.c.0.s8 %v5778
    %v5780 = vlaneseq
    %v5781 = vshrl.u32 %v5780, 7
    %v5782 = vsub.s32 %v5779, %v5781
    %v5783 = vrot.slane %v5755, %v5782
    %v5784 = vcombine.low %v5762, %v5769
    %v5785 = vcombine.low %v5776, %v5783
    %v5787 = vunpack.c.l.s4 1966171168
    %v5788 = vunpack.c.0.s8 %v5787
    %v5789 = vlaneseq
    %v5790 = vshrl.u32 %v5789, 7
    %v5791 = vsub.s32 %v5788, %v5790
    %v5792 = vrot.slane %v5784, %v5791
    %v5794 = vunpack.c.l.s4 1966171168
    %v5795 = vunpack.c.0.s8 %v5794
    %v5796 = vlaneseq
    %v5797 = vshrl.u32 %v5796, 7
    %v5798 = vsub.s32 %v5795, %v5797
    %v5799 = vrot.slane %v5785, %v5798
    %v5800 = vcombine.low %v5792, %v5799
    %v5801 = vcombine.low %v4746, %v4750
    %v5802 = vcombine.low %v4754, %v4758
    %v5803 = vcombine.low %v4762, %v4766
    %v5804 = vcombine.low %v4770, %v4774
    %v5806 = vunpack.c.l.s4 1966171168
    %v5807 = vunpack.c.0.s8 %v5806
    %v5808 = vlaneseq
    %v5809 = vshrl.u32 %v5808, 7
    %v5810 = vsub.s32 %v5807, %v5809
    %v5811 = vrot.slane %v5801, %v5810
    %v5813 = vunpack.c.l.s4 1966171168
    %v5814 = vunpack.c.0.s8 %v5813
    %v5815 = vlaneseq
    %v5816 = vshrl.u32 %v5815, 7
    %v5817 = vsub.s32 %v5814, %v5816
    %v5818 = vrot.slane %v5802, %v5817
    %v5820 = vunpack.c.l.s4 1966171168
    %v5821 = vunpack.c.0.s8 %v5820
    %v5822 = vlaneseq
    %v5823 = vshrl.u32 %v5822, 7
    %v5824 = vsub.s32 %v5821, %v5823
    %v5825 = vrot.slane %v5803, %v5824
    %v5827 = vunpack.c.l.s4 1966171168
    %v5828 = vunpack.c.0.s8 %v5827
    %v5829 = vlaneseq
    %v5830 = vshrl.u32 %v5829, 7
    %v5831 = vsub.s32 %v5828, %v5830
    %v5832 = vrot.slane %v5804, %v5831
    %v5833 = vcombine.low %v5811, %v5818
    %v5834 = vcombine.low %v5825, %v5832
    %v5836 = vunpack.c.l.s4 1966171168
    %v5837 = vunpack.c.0.s8 %v5836
    %v5838 = vlaneseq
    %v5839 = vshrl.u32 %v5838, 7
    %v5840 = vsub.s32 %v5837, %v5839
    %v5841 = vrot.slane %v5833, %v5840
    %v5843 = vunpack.c.l.s4 1966171168
    %v5844 = vunpack.c.0.s8 %v5843
    %v5845 = vlaneseq
    %v5846 = vshrl.u32 %v5845, 7
    %v5847 = vsub.s32 %v5844, %v5846
    %v5848 = vrot.slane %v5834, %v5847
    %v5849 = vcombine.low %v5841, %v5848
    %v5850 = vcombine.low %v4778, %v4782
    %v5851 = vcombine.low %v4786, %v4790
    %v5852 = vcombine.low %v4794, %v4798
    %v5853 = vcombine.low %v4802, %v4806
    %v5855 = vunpack.c.l.s4 1966171168
    %v5856 = vunpack.c.0.s8 %v5855
    %v5857 = vlaneseq
    %v5858 = vshrl.u32 %v5857, 7
    %v5859 = vsub.s32 %v5856, %v5858
    %v5860 = vrot.slane %v5850, %v5859
    %v5862 = vunpack.c.l.s4 1966171168
    %v5863 = vunpack.c.0.s8 %v5862
    %v5864 = vlaneseq
    %v5865 = vshrl.u32 %v5864, 7
    %v5866 = vsub.s32 %v5863, %v5865
    %v5867 = vrot.slane %v5851, %v5866
    %v5869 = vunpack.c.l.s4 1966171168
    %v5870 = vunpack.c.0.s8 %v5869
    %v5871 = vlaneseq
    %v5872 = vshrl.u32 %v5871, 7
    %v5873 = vsub.s32 %v5870, %v5872
    %v5874 = vrot.slane %v5852, %v5873
    %v5876 = vunpack.c.l.s4 1966171168
    %v5877 = vunpack.c.0.s8 %v5876
    %v5878 = vlaneseq
    %v5879 = vshrl.u32 %v5878, 7
    %v5880 = vsub.s32 %v5877, %v5879
    %v5881 = vrot.slane %v5853, %v5880
    %v5882 = vcombine.low %v5860, %v5867
    %v5883 = vcombine.low %v5874, %v5881
    %v5885 = vunpack.c.l.s4 1966171168
    %v5886 = vunpack.c.0.s8 %v5885
    %v5887 = vlaneseq
    %v5888 = vshrl.u32 %v5887, 7
    %v5889 = vsub.s32 %v5886, %v5888
    %v5890 = vrot.slane %v5882, %v5889
    %v5892 = vunpack.c.l.s4 1966171168
    %v5893 = vunpack.c.0.s8 %v5892
    %v5894 = vlaneseq
    %v5895 = vshrl.u32 %v5894, 7
    %v5896 = vsub.s32 %v5893, %v5895
    %v5897 = vrot.slane %v5883, %v5896
    %v5898 = vcombine.low %v5890, %v5897
    %v5899 = vcombine.low %v4810, %v4814
    %v5900 = vcombine.low %v4818, %v4822
    %v5901 = vcombine.low %v4826, %v4830
    %v5902 = vcombine.low %v4834, %v4838
    %v5904 = vunpack.c.l.s4 1966171168
    %v5905 = vunpack.c.0.s8 %v5904
    %v5906 = vlaneseq
    %v5907 = vshrl.u32 %v5906, 7
    %v5908 = vsub.s32 %v5905, %v5907
    %v5909 = vrot.slane %v5899, %v5908
    %v5911 = vunpack.c.l.s4 1966171168
    %v5912 = vunpack.c.0.s8 %v5911
    %v5913 = vlaneseq
    %v5914 = vshrl.u32 %v5913, 7
    %v5915 = vsub.s32 %v5912, %v5914
    %v5916 = vrot.slane %v5900, %v5915
    %v5918 = vunpack.c.l.s4 1966171168
    %v5919 = vunpack.c.0.s8 %v5918
    %v5920 = vlaneseq
    %v5921 = vshrl.u32 %v5920, 7
    %v5922 = vsub.s32 %v5919, %v5921
    %v5923 = vrot.slane %v5901, %v5922
    %v5925 = vunpack.c.l.s4 1966171168
    %v5926 = vunpack.c.0.s8 %v5925
    %v5927 = vlaneseq
    %v5928 = vshrl.u32 %v5927, 7
    %v5929 = vsub.s32 %v5926, %v5928
    %v5930 = vrot.slane %v5902, %v5929
    %v5931 = vcombine.low %v5909, %v5916
    %v5932 = vcombine.low %v5923, %v5930
    %v5934 = vunpack.c.l.s4 1966171168
    %v5935 = vunpack.c.0.s8 %v5934
    %v5936 = vlaneseq
    %v5937 = vshrl.u32 %v5936, 7
    %v5938 = vsub.s32 %v5935, %v5937
    %v5939 = vrot.slane %v5931, %v5938
    %v5941 = vunpack.c.l.s4 1966171168
    %v5942 = vunpack.c.0.s8 %v5941
    %v5943 = vlaneseq
    %v5944 = vshrl.u32 %v5943, 7
    %v5945 = vsub.s32 %v5942, %v5944
    %v5946 = vrot.slane %v5932, %v5945
    %v5947 = vcombine.low %v5939, %v5946
    %v5948 = vcombine.low %v4842, %v4846
    %v5949 = vcombine.low %v4850, %v4854
    %v5950 = vcombine.low %v4858, %v4862
    %v5951 = vcombine.low %v4866, %v4870
    %v5953 = vunpack.c.l.s4 1966171168
    %v5954 = vunpack.c.0.s8 %v5953
    %v5955 = vlaneseq
    %v5956 = vshrl.u32 %v5955, 7
    %v5957 = vsub.s32 %v5954, %v5956
    %v5958 = vrot.slane %v5948, %v5957
    %v5960 = vunpack.c.l.s4 1966171168
    %v5961 = vunpack.c.0.s8 %v5960
    %v5962 = vlaneseq
    %v5963 = vshrl.u32 %v5962, 7
    %v5964 = vsub.s32 %v5961, %v5963
    %v5965 = vrot.slane %v5949, %v5964
    %v5967 = vunpack.c.l.s4 1966171168
    %v5968 = vunpack.c.0.s8 %v5967
    %v5969 = vlaneseq
    %v5970 = vshrl.u32 %v5969, 7
    %v5971 = vsub.s32 %v5968, %v5970
    %v5972 = vrot.slane %v5950, %v5971
    %v5974 = vunpack.c.l.s4 1966171168
    %v5975 = vunpack.c.0.s8 %v5974
    %v5976 = vlaneseq
    %v5977 = vshrl.u32 %v5976, 7
    %v5978 = vsub.s32 %v5975, %v5977
    %v5979 = vrot.slane %v5951, %v5978
    %v5980 = vcombine.low %v5958, %v5965
    %v5981 = vcombine.low %v5972, %v5979
    %v5983 = vunpack.c.l.s4 1966171168
    %v5984 = vunpack.c.0.s8 %v5983
    %v5985 = vlaneseq
    %v5986 = vshrl.u32 %v5985, 7
    %v5987 = vsub.s32 %v5984, %v5986
    %v5988 = vrot.slane %v5980, %v5987
    %v5990 = vunpack.c.l.s4 1966171168
    %v5991 = vunpack.c.0.s8 %v5990
    %v5992 = vlaneseq
    %v5993 = vshrl.u32 %v5992, 7
    %v5994 = vsub.s32 %v5991, %v5993
    %v5995 = vrot.slane %v5981, %v5994
    %v5996 = vcombine.low %v5988, %v5995
    %v5997 = vcombine.low %v4874, %v4878
    %v5998 = vcombine.low %v4882, %v4886
    %v5999 = vcombine.low %v4890, %v4894
    %v6000 = vcombine.low %v4898, %v4902
    %v6002 = vunpack.c.l.s4 1966171168
    %v6003 = vunpack.c.0.s8 %v6002
    %v6004 = vlaneseq
    %v6005 = vshrl.u32 %v6004, 7
    %v6006 = vsub.s32 %v6003, %v6005
    %v6007 = vrot.slane %v5997, %v6006
    %v6009 = vunpack.c.l.s4 1966171168
    %v6010 = vunpack.c.0.s8 %v6009
    %v6011 = vlaneseq
    %v6012 = vshrl.u32 %v6011, 7
    %v6013 = vsub.s32 %v6010, %v6012
    %v6014 = vrot.slane %v5998, %v6013
    %v6016 = vunpack.c.l.s4 1966171168
    %v6017 = vunpack.c.0.s8 %v6016
    %v6018 = vlaneseq
    %v6019 = vshrl.u32 %v6018, 7
    %v6020 = vsub.s32 %v6017, %v6019
    %v6021 = vrot.slane %v5999, %v6020
    %v6023 = vunpack.c.l.s4 1966171168
    %v6024 = vunpack.c.0.s8 %v6023
    %v6025 = vlaneseq
    %v6026 = vshrl.u32 %v6025, 7
    %v6027 = vsub.s32 %v6024, %v6026
    %v6028 = vrot.slane %v6000, %v6027
    %v6029 = vcombine.low %v6007, %v6014
    %v6030 = vcombine.low %v6021, %v6028
    %v6032 = vunpack.c.l.s4 1966171168
    %v6033 = vunpack.c.0.s8 %v6032
    %v6034 = vlaneseq
    %v6035 = vshrl.u32 %v6034, 7
    %v6036 = vsub.s32 %v6033, %v6035
    %v6037 = vrot.slane %v6029, %v6036
    %v6039 = vunpack.c.l.s4 1966171168
    %v6040 = vunpack.c.0.s8 %v6039
    %v6041 = vlaneseq
    %v6042 = vshrl.u32 %v6041, 7
    %v6043 = vsub.s32 %v6040, %v6042
    %v6044 = vrot.slane %v6030, %v6043
    %v6045 = vcombine.low %v6037, %v6044
    %v6046 = vcombine.low %v4906, %v4910
    %v6047 = vcombine.low %v4914, %v4918
    %v6048 = vcombine.low %v4922, %v4926
    %v6049 = vcombine.low %v4930, %v4934
    %v6051 = vunpack.c.l.s4 1966171168
    %v6052 = vunpack.c.0.s8 %v6051
    %v6053 = vlaneseq
    %v6054 = vshrl.u32 %v6053, 7
    %v6055 = vsub.s32 %v6052, %v6054
    %v6056 = vrot.slane %v6046, %v6055
    %v6058 = vunpack.c.l.s4 1966171168
    %v6059 = vunpack.c.0.s8 %v6058
    %v6060 = vlaneseq
    %v6061 = vshrl.u32 %v6060, 7
    %v6062 = vsub.s32 %v6059, %v6061
    %v6063 = vrot.slane %v6047, %v6062
    %v6065 = vunpack.c.l.s4 1966171168
    %v6066 = vunpack.c.0.s8 %v6065
    %v6067 = vlaneseq
    %v6068 = vshrl.u32 %v6067, 7
    %v6069 = vsub.s32 %v6066, %v6068
    %v6070 = vrot.slane %v6048, %v6069
    %v6072 = vunpack.c.l.s4 1966171168
    %v6073 = vunpack.c.0.s8 %v6072
    %v6074 = vlaneseq
    %v6075 = vshrl.u32 %v6074, 7
    %v6076 = vsub.s32 %v6073, %v6075
    %v6077 = vrot.slane %v6049, %v6076
    %v6078 = vcombine.low %v6056, %v6063
    %v6079 = vcombine.low %v6070, %v6077
    %v6081 = vunpack.c.l.s4 1966171168
    %v6082 = vunpack.c.0.s8 %v6081
    %v6083 = vlaneseq
    %v6084 = vshrl.u32 %v6083, 7
    %v6085 = vsub.s32 %v6082, %v6084
    %v6086 = vrot.slane %v6078, %v6085
    %v6088 = vunpack.c.l.s4 1966171168
    %v6089 = vunpack.c.0.s8 %v6088
    %v6090 = vlaneseq
    %v6091 = vshrl.u32 %v6090, 7
    %v6092 = vsub.s32 %v6089, %v6091
    %v6093 = vrot.slane %v6079, %v6092
    %v6094 = vcombine.low %v6086, %v6093
    %v6095 = vcombine.low %v4938, %v4942
    %v6096 = vcombine.low %v4946, %v4950
    %v6097 = vcombine.low %v4954, %v4958
    %v6098 = vcombine.low %v4962, %v4966
    %v6100 = vunpack.c.l.s4 1966171168
    %v6101 = vunpack.c.0.s8 %v6100
    %v6102 = vlaneseq
    %v6103 = vshrl.u32 %v6102, 7
    %v6104 = vsub.s32 %v6101, %v6103
    %v6105 = vrot.slane %v6095, %v6104
    %v6107 = vunpack.c.l.s4 1966171168
    %v6108 = vunpack.c.0.s8 %v6107
    %v6109 = vlaneseq
    %v6110 = vshrl.u32 %v6109, 7
    %v6111 = vsub.s32 %v6108, %v6110
    %v6112 = vrot.slane %v6096, %v6111
    %v6114 = vunpack.c.l.s4 1966171168
    %v6115 = vunpack.c.0.s8 %v6114
    %v6116 = vlaneseq
    %v6117 = vshrl.u32 %v6116, 7
    %v6118 = vsub.s32 %v6115, %v6117
    %v6119 = vrot.slane %v6097, %v6118
    %v6121 = vunpack.c.l.s4 1966171168
    %v6122 = vunpack.c.0.s8 %v6121
    %v6123 = vlaneseq
    %v6124 = vshrl.u32 %v6123, 7
    %v6125 = vsub.s32 %v6122, %v6124
    %v6126 = vrot.slane %v6098, %v6125
    %v6127 = vcombine.low %v6105, %v6112
    %v6128 = vcombine.low %v6119, %v6126
    %v6130 = vunpack.c.l.s4 1966171168
    %v6131 = vunpack.c.0.s8 %v6130
    %v6132 = vlaneseq
    %v6133 = vshrl.u32 %v6132, 7
    %v6134 = vsub.s32 %v6131, %v6133
    %v6135 = vrot.slane %v6127, %v6134
    %v6137 = vunpack.c.l.s4 1966171168
    %v6138 = vunpack.c.0.s8 %v6137
    %v6139 = vlaneseq
    %v6140 = vshrl.u32 %v6139, 7
    %v6141 = vsub.s32 %v6138, %v6140
    %v6142 = vrot.slane %v6128, %v6141
    %v6143 = vcombine.low %v6135, %v6142
    %v6144 = vcombine.low %v4970, %v4974
    %v6145 = vcombine.low %v4978, %v4982
    %v6146 = vcombine.low %v4986, %v4990
    %v6147 = vcombine.low %v4994, %v4998
    %v6149 = vunpack.c.l.s4 1966171168
    %v6150 = vunpack.c.0.s8 %v6149
    %v6151 = vlaneseq
    %v6152 = vshrl.u32 %v6151, 7
    %v6153 = vsub.s32 %v6150, %v6152
    %v6154 = vrot.slane %v6144, %v6153
    %v6156 = vunpack.c.l.s4 1966171168
    %v6157 = vunpack.c.0.s8 %v6156
    %v6158 = vlaneseq
    %v6159 = vshrl.u32 %v6158, 7
    %v6160 = vsub.s32 %v6157, %v6159
    %v6161 = vrot.slane %v6145, %v6160
    %v6163 = vunpack.c.l.s4 1966171168
    %v6164 = vunpack.c.0.s8 %v6163
    %v6165 = vlaneseq
    %v6166 = vshrl.u32 %v6165, 7
    %v6167 = vsub.s32 %v6164, %v6166
    %v6168 = vrot.slane %v6146, %v6167
    %v6170 = vunpack.c.l.s4 1966171168
    %v6171 = vunpack.c.0.s8 %v6170
    %v6172 = vlaneseq
    %v6173 = vshrl.u32 %v6172, 7
    %v6174 = vsub.s32 %v6171, %v6173
    %v6175 = vrot.slane %v6147, %v6174
    %v6176 = vcombine.low %v6154, %v6161
    %v6177 = vcombine.low %v6168, %v6175
    %v6179 = vunpack.c.l.s4 1966171168
    %v6180 = vunpack.c.0.s8 %v6179
    %v6181 = vlaneseq
    %v6182 = vshrl.u32 %v6181, 7
    %v6183 = vsub.s32 %v6180, %v6182
    %v6184 = vrot.slane %v6176, %v6183
    %v6186 = vunpack.c.l.s4 1966171168
    %v6187 = vunpack.c.0.s8 %v6186
    %v6188 = vlaneseq
    %v6189 = vshrl.u32 %v6188, 7
    %v6190 = vsub.s32 %v6187, %v6189
    %v6191 = vrot.slane %v6177, %v6190
    %v6192 = vcombine.low %v6184, %v6191
    %v6193 = vcombine.low %v5002, %v5006
    %v6194 = vcombine.low %v5010, %v5014
    %v6195 = vcombine.low %v5018, %v5022
    %v6196 = vcombine.low %v5026, %v5030
    %v6198 = vunpack.c.l.s4 1966171168
    %v6199 = vunpack.c.0.s8 %v6198
    %v6200 = vlaneseq
    %v6201 = vshrl.u32 %v6200, 7
    %v6202 = vsub.s32 %v6199, %v6201
    %v6203 = vrot.slane %v6193, %v6202
    %v6205 = vunpack.c.l.s4 1966171168
    %v6206 = vunpack.c.0.s8 %v6205
    %v6207 = vlaneseq
    %v6208 = vshrl.u32 %v6207, 7
    %v6209 = vsub.s32 %v6206, %v6208
    %v6210 = vrot.slane %v6194, %v6209
    %v6212 = vunpack.c.l.s4 1966171168
    %v6213 = vunpack.c.0.s8 %v6212
    %v6214 = vlaneseq
    %v6215 = vshrl.u32 %v6214, 7
    %v6216 = vsub.s32 %v6213, %v6215
    %v6217 = vrot.slane %v6195, %v6216
    %v6219 = vunpack.c.l.s4 1966171168
    %v6220 = vunpack.c.0.s8 %v6219
    %v6221 = vlaneseq
    %v6222 = vshrl.u32 %v6221, 7
    %v6223 = vsub.s32 %v6220, %v6222
    %v6224 = vrot.slane %v6196, %v6223
    %v6225 = vcombine.low %v6203, %v6210
    %v6226 = vcombine.low %v6217, %v6224
    %v6228 = vunpack.c.l.s4 1966171168
    %v6229 = vunpack.c.0.s8 %v6228
    %v6230 = vlaneseq
    %v6231 = vshrl.u32 %v6230, 7
    %v6232 = vsub.s32 %v6229, %v6231
    %v6233 = vrot.slane %v6225, %v6232
    %v6235 = vunpack.c.l.s4 1966171168
    %v6236 = vunpack.c.0.s8 %v6235
    %v6237 = vlaneseq
    %v6238 = vshrl.u32 %v6237, 7
    %v6239 = vsub.s32 %v6236, %v6238
    %v6240 = vrot.slane %v6226, %v6239
    %v6241 = vcombine.low %v6233, %v6240
    %v6242 = vcombine.low %v5034, %v5038
    %v6243 = vcombine.low %v5042, %v5046
    %v6244 = vcombine.low %v5050, %v5054
    %v6245 = vcombine.low %v5058, %v5062
    %v6247 = vunpack.c.l.s4 1966171168
    %v6248 = vunpack.c.0.s8 %v6247
    %v6249 = vlaneseq
    %v6250 = vshrl.u32 %v6249, 7
    %v6251 = vsub.s32 %v6248, %v6250
    %v6252 = vrot.slane %v6242, %v6251
    %v6254 = vunpack.c.l.s4 1966171168
    %v6255 = vunpack.c.0.s8 %v6254
    %v6256 = vlaneseq
    %v6257 = vshrl.u32 %v6256, 7
    %v6258 = vsub.s32 %v6255, %v6257
    %v6259 = vrot.slane %v6243, %v6258
    %v6261 = vunpack.c.l.s4 1966171168
    %v6262 = vunpack.c.0.s8 %v6261
    %v6263 = vlaneseq
    %v6264 = vshrl.u32 %v6263, 7
    %v6265 = vsub.s32 %v6262, %v6264
    %v6266 = vrot.slane %v6244, %v6265
    %v6268 = vunpack.c.l.s4 1966171168
    %v6269 = vunpack.c.0.s8 %v6268
    %v6270 = vlaneseq
    %v6271 = vshrl.u32 %v6270, 7
    %v6272 = vsub.s32 %v6269, %v6271
    %v6273 = vrot.slane %v6245, %v6272
    %v6274 = vcombine.low %v6252, %v6259
    %v6275 = vcombine.low %v6266, %v6273
    %v6277 = vunpack.c.l.s4 1966171168
    %v6278 = vunpack.c.0.s8 %v6277
    %v6279 = vlaneseq
    %v6280 = vshrl.u32 %v6279, 7
    %v6281 = vsub.s32 %v6278, %v6280
    %v6282 = vrot.slane %v6274, %v6281
    %v6284 = vunpack.c.l.s4 1966171168
    %v6285 = vunpack.c.0.s8 %v6284
    %v6286 = vlaneseq
    %v6287 = vshrl.u32 %v6286, 7
    %v6288 = vsub.s32 %v6285, %v6287
    %v6289 = vrot.slane %v6275, %v6288
    %v6290 = vcombine.low %v6282, %v6289
    %v6291 = vcombine.low %v5066, %v5070
    %v6292 = vcombine.low %v5074, %v5078
    %v6293 = vcombine.low %v5082, %v5086
    %v6294 = vcombine.low %v5090, %v5094
    %v6296 = vunpack.c.l.s4 1966171168
    %v6297 = vunpack.c.0.s8 %v6296
    %v6298 = vlaneseq
    %v6299 = vshrl.u32 %v6298, 7
    %v6300 = vsub.s32 %v6297, %v6299
    %v6301 = vrot.slane %v6291, %v6300
    %v6303 = vunpack.c.l.s4 1966171168
    %v6304 = vunpack.c.0.s8 %v6303
    %v6305 = vlaneseq
    %v6306 = vshrl.u32 %v6305, 7
    %v6307 = vsub.s32 %v6304, %v6306
    %v6308 = vrot.slane %v6292, %v6307
    %v6310 = vunpack.c.l.s4 1966171168
    %v6311 = vunpack.c.0.s8 %v6310
    %v6312 = vlaneseq
    %v6313 = vshrl.u32 %v6312, 7
    %v6314 = vsub.s32 %v6311, %v6313
    %v6315 = vrot.slane %v6293, %v6314
    %v6317 = vunpack.c.l.s4 1966171168
    %v6318 = vunpack.c.0.s8 %v6317
    %v6319 = vlaneseq
    %v6320 = vshrl.u32 %v6319, 7
    %v6321 = vsub.s32 %v6318, %v6320
    %v6322 = vrot.slane %v6294, %v6321
    %v6323 = vcombine.low %v6301, %v6308
    %v6324 = vcombine.low %v6315, %v6322
    %v6326 = vunpack.c.l.s4 1966171168
    %v6327 = vunpack.c.0.s8 %v6326
    %v6328 = vlaneseq
    %v6329 = vshrl.u32 %v6328, 7
    %v6330 = vsub.s32 %v6327, %v6329
    %v6331 = vrot.slane %v6323, %v6330
    %v6333 = vunpack.c.l.s4 1966171168
    %v6334 = vunpack.c.0.s8 %v6333
    %v6335 = vlaneseq
    %v6336 = vshrl.u32 %v6335, 7
    %v6337 = vsub.s32 %v6334, %v6336
    %v6338 = vrot.slane %v6324, %v6337
    %v6339 = vcombine.low %v6331, %v6338
    %v6340 = vcombine.low %v5098, %v5102
    %v6341 = vcombine.low %v5106, %v5110
    %v6342 = vcombine.low %v5114, %v5118
    %v6343 = vcombine.low %v5122, %v5126
    %v6345 = vunpack.c.l.s4 1966171168
    %v6346 = vunpack.c.0.s8 %v6345
    %v6347 = vlaneseq
    %v6348 = vshrl.u32 %v6347, 7
    %v6349 = vsub.s32 %v6346, %v6348
    %v6350 = vrot.slane %v6340, %v6349
    %v6352 = vunpack.c.l.s4 1966171168
    %v6353 = vunpack.c.0.s8 %v6352
    %v6354 = vlaneseq
    %v6355 = vshrl.u32 %v6354, 7
    %v6356 = vsub.s32 %v6353, %v6355
    %v6357 = vrot.slane %v6341, %v6356
    %v6359 = vunpack.c.l.s4 1966171168
    %v6360 = vunpack.c.0.s8 %v6359
    %v6361 = vlaneseq
    %v6362 = vshrl.u32 %v6361, 7
    %v6363 = vsub.s32 %v6360, %v6362
    %v6364 = vrot.slane %v6342, %v6363
    %v6366 = vunpack.c.l.s4 1966171168
    %v6367 = vunpack.c.0.s8 %v6366
    %v6368 = vlaneseq
    %v6369 = vshrl.u32 %v6368, 7
    %v6370 = vsub.s32 %v6367, %v6369
    %v6371 = vrot.slane %v6343, %v6370
    %v6372 = vcombine.low %v6350, %v6357
    %v6373 = vcombine.low %v6364, %v6371
    %v6375 = vunpack.c.l.s4 1966171168
    %v6376 = vunpack.c.0.s8 %v6375
    %v6377 = vlaneseq
    %v6378 = vshrl.u32 %v6377, 7
    %v6379 = vsub.s32 %v6376, %v6378
    %v6380 = vrot.slane %v6372, %v6379
    %v6382 = vunpack.c.l.s4 1966171168
    %v6383 = vunpack.c.0.s8 %v6382
    %v6384 = vlaneseq
    %v6385 = vshrl.u32 %v6384, 7
    %v6386 = vsub.s32 %v6383, %v6385
    %v6387 = vrot.slane %v6373, %v6386
    %v6388 = vcombine.low %v6380, %v6387
    %v6389 = vcombine.low %v5130, %v5134
    %v6390 = vcombine.low %v5138, %v5142
    %v6391 = vcombine.low %v5146, %v5150
    %v6392 = vcombine.low %v5154, %v5158
    %v6394 = vunpack.c.l.s4 1966171168
    %v6395 = vunpack.c.0.s8 %v6394
    %v6396 = vlaneseq
    %v6397 = vshrl.u32 %v6396, 7
    %v6398 = vsub.s32 %v6395, %v6397
    %v6399 = vrot.slane %v6389, %v6398
    %v6401 = vunpack.c.l.s4 1966171168
    %v6402 = vunpack.c.0.s8 %v6401
    %v6403 = vlaneseq
    %v6404 = vshrl.u32 %v6403, 7
    %v6405 = vsub.s32 %v6402, %v6404
    %v6406 = vrot.slane %v6390, %v6405
    %v6408 = vunpack.c.l.s4 1966171168
    %v6409 = vunpack.c.0.s8 %v6408
    %v6410 = vlaneseq
    %v6411 = vshrl.u32 %v6410, 7
    %v6412 = vsub.s32 %v6409, %v6411
    %v6413 = vrot.slane %v6391, %v6412
    %v6415 = vunpack.c.l.s4 1966171168
    %v6416 = vunpack.c.0.s8 %v6415
    %v6417 = vlaneseq
    %v6418 = vshrl.u32 %v6417, 7
    %v6419 = vsub.s32 %v6416, %v6418
    %v6420 = vrot.slane %v6392, %v6419
    %v6421 = vcombine.low %v6399, %v6406
    %v6422 = vcombine.low %v6413, %v6420
    %v6424 = vunpack.c.l.s4 1966171168
    %v6425 = vunpack.c.0.s8 %v6424
    %v6426 = vlaneseq
    %v6427 = vshrl.u32 %v6426, 7
    %v6428 = vsub.s32 %v6425, %v6427
    %v6429 = vrot.slane %v6421, %v6428
    %v6431 = vunpack.c.l.s4 1966171168
    %v6432 = vunpack.c.0.s8 %v6431
    %v6433 = vlaneseq
    %v6434 = vshrl.u32 %v6433, 7
    %v6435 = vsub.s32 %v6432, %v6434
    %v6436 = vrot.slane %v6422, %v6435
    %v6437 = vcombine.low %v6429, %v6436
    %v6438 = vcombine.low %v5162, %v5166
    %v6439 = vcombine.low %v5170, %v5174
    %v6440 = vcombine.low %v5178, %v5182
    %v6441 = vcombine.low %v5186, %v5190
    %v6443 = vunpack.c.l.s4 1966171168
    %v6444 = vunpack.c.0.s8 %v6443
    %v6445 = vlaneseq
    %v6446 = vshrl.u32 %v6445, 7
    %v6447 = vsub.s32 %v6444, %v6446
    %v6448 = vrot.slane %v6438, %v6447
    %v6450 = vunpack.c.l.s4 1966171168
    %v6451 = vunpack.c.0.s8 %v6450
    %v6452 = vlaneseq
    %v6453 = vshrl.u32 %v6452, 7
    %v6454 = vsub.s32 %v6451, %v6453
    %v6455 = vrot.slane %v6439, %v6454
    %v6457 = vunpack.c.l.s4 1966171168
    %v6458 = vunpack.c.0.s8 %v6457
    %v6459 = vlaneseq
    %v6460 = vshrl.u32 %v6459, 7
    %v6461 = vsub.s32 %v6458, %v6460
    %v6462 = vrot.slane %v6440, %v6461
    %v6464 = vunpack.c.l.s4 1966171168
    %v6465 = vunpack.c.0.s8 %v6464
    %v6466 = vlaneseq
    %v6467 = vshrl.u32 %v6466, 7
    %v6468 = vsub.s32 %v6465, %v6467
    %v6469 = vrot.slane %v6441, %v6468
    %v6470 = vcombine.low %v6448, %v6455
    %v6471 = vcombine.low %v6462, %v6469
    %v6473 = vunpack.c.l.s4 1966171168
    %v6474 = vunpack.c.0.s8 %v6473
    %v6475 = vlaneseq
    %v6476 = vshrl.u32 %v6475, 7
    %v6477 = vsub.s32 %v6474, %v6476
    %v6478 = vrot.slane %v6470, %v6477
    %v6480 = vunpack.c.l.s4 1966171168
    %v6481 = vunpack.c.0.s8 %v6480
    %v6482 = vlaneseq
    %v6483 = vshrl.u32 %v6482, 7
    %v6484 = vsub.s32 %v6481, %v6483
    %v6485 = vrot.slane %v6471, %v6484
    %v6486 = vcombine.low %v6478, %v6485
    %v6487 = vcombine.low %v5194, %v5198
    %v6488 = vcombine.low %v5202, %v5206
    %v6489 = vcombine.low %v5210, %v5214
    %v6490 = vcombine.low %v5218, %v5222
    %v6492 = vunpack.c.l.s4 1966171168
    %v6493 = vunpack.c.0.s8 %v6492
    %v6494 = vlaneseq
    %v6495 = vshrl.u32 %v6494, 7
    %v6496 = vsub.s32 %v6493, %v6495
    %v6497 = vrot.slane %v6487, %v6496
    %v6499 = vunpack.c.l.s4 1966171168
    %v6500 = vunpack.c.0.s8 %v6499
    %v6501 = vlaneseq
    %v6502 = vshrl.u32 %v6501, 7
    %v6503 = vsub.s32 %v6500, %v6502
    %v6504 = vrot.slane %v6488, %v6503
    %v6506 = vunpack.c.l.s4 1966171168
    %v6507 = vunpack.c.0.s8 %v6506
    %v6508 = vlaneseq
    %v6509 = vshrl.u32 %v6508, 7
    %v6510 = vsub.s32 %v6507, %v6509
    %v6511 = vrot.slane %v6489, %v6510
    %v6513 = vunpack.c.l.s4 1966171168
    %v6514 = vunpack.c.0.s8 %v6513
    %v6515 = vlaneseq
    %v6516 = vshrl.u32 %v6515, 7
    %v6517 = vsub.s32 %v6514, %v6516
    %v6518 = vrot.slane %v6490, %v6517
    %v6519 = vcombine.low %v6497, %v6504
    %v6520 = vcombine.low %v6511, %v6518
    %v6522 = vunpack.c.l.s4 1966171168
    %v6523 = vunpack.c.0.s8 %v6522
    %v6524 = vlaneseq
    %v6525 = vshrl.u32 %v6524, 7
    %v6526 = vsub.s32 %v6523, %v6525
    %v6527 = vrot.slane %v6519, %v6526
    %v6529 = vunpack.c.l.s4 1966171168
    %v6530 = vunpack.c.0.s8 %v6529
    %v6531 = vlaneseq
    %v6532 = vshrl.u32 %v6531, 7
    %v6533 = vsub.s32 %v6530, %v6532
    %v6534 = vrot.slane %v6520, %v6533
    %v6535 = vcombine.low %v6527, %v6534
    %v6536 = vcombine.low %v5226, %v5230
    %v6537 = vcombine.low %v5234, %v5238
    %v6538 = vcombine.low %v5242, %v5246
    %v6539 = vcombine.low %v5250, %v5254
    %v6541 = vunpack.c.l.s4 1966171168
    %v6542 = vunpack.c.0.s8 %v6541
    %v6543 = vlaneseq
    %v6544 = vshrl.u32 %v6543, 7
    %v6545 = vsub.s32 %v6542, %v6544
    %v6546 = vrot.slane %v6536, %v6545
    %v6548 = vunpack.c.l.s4 1966171168
    %v6549 = vunpack.c.0.s8 %v6548
    %v6550 = vlaneseq
    %v6551 = vshrl.u32 %v6550, 7
    %v6552 = vsub.s32 %v6549, %v6551
    %v6553 = vrot.slane %v6537, %v6552
    %v6555 = vunpack.c.l.s4 1966171168
    %v6556 = vunpack.c.0.s8 %v6555
    %v6557 = vlaneseq
    %v6558 = vshrl.u32 %v6557, 7
    %v6559 = vsub.s32 %v6556, %v6558
    %v6560 = vrot.slane %v6538, %v6559
    %v6562 = vunpack.c.l.s4 1966171168
    %v6563 = vunpack.c.0.s8 %v6562
    %v6564 = vlaneseq
    %v6565 = vshrl.u32 %v6564, 7
    %v6566 = vsub.s32 %v6563, %v6565
    %v6567 = vrot.slane %v6539, %v6566
    %v6568 = vcombine.low %v6546, %v6553
    %v6569 = vcombine.low %v6560, %v6567
    %v6571 = vunpack.c.l.s4 1966171168
    %v6572 = vunpack.c.0.s8 %v6571
    %v6573 = vlaneseq
    %v6574 = vshrl.u32 %v6573, 7
    %v6575 = vsub.s32 %v6572, %v6574
    %v6576 = vrot.slane %v6568, %v6575
    %v6578 = vunpack.c.l.s4 1966171168
    %v6579 = vunpack.c.0.s8 %v6578
    %v6580 = vlaneseq
    %v6581 = vshrl.u32 %v6580, 7
    %v6582 = vsub.s32 %v6579, %v6581
    %v6583 = vrot.slane %v6569, %v6582
    %v6584 = vcombine.low %v6576, %v6583
    %v6585 = vcombine.low %v5258, %v5262
    %v6586 = vcombine.low %v5266, %v5270
    %v6587 = vcombine.low %v5274, %v5278
    %v6588 = vcombine.low %v5282, %v5286
    %v6590 = vunpack.c.l.s4 1966171168
    %v6591 = vunpack.c.0.s8 %v6590
    %v6592 = vlaneseq
    %v6593 = vshrl.u32 %v6592, 7
    %v6594 = vsub.s32 %v6591, %v6593
    %v6595 = vrot.slane %v6585, %v6594
    %v6597 = vunpack.c.l.s4 1966171168
    %v6598 = vunpack.c.0.s8 %v6597
    %v6599 = vlaneseq
    %v6600 = vshrl.u32 %v6599, 7
    %v6601 = vsub.s32 %v6598, %v6600
    %v6602 = vrot.slane %v6586, %v6601
    %v6604 = vunpack.c.l.s4 1966171168
    %v6605 = vunpack.c.0.s8 %v6604
    %v6606 = vlaneseq
    %v6607 = vshrl.u32 %v6606, 7
    %v6608 = vsub.s32 %v6605, %v6607
    %v6609 = vrot.slane %v6587, %v6608
    %v6611 = vunpack.c.l.s4 1966171168
    %v6612 = vunpack.c.0.s8 %v6611
    %v6613 = vlaneseq
    %v6614 = vshrl.u32 %v6613, 7
    %v6615 = vsub.s32 %v6612, %v6614
    %v6616 = vrot.slane %v6588, %v6615
    %v6617 = vcombine.low %v6595, %v6602
    %v6618 = vcombine.low %v6609, %v6616
    %v6620 = vunpack.c.l.s4 1966171168
    %v6621 = vunpack.c.0.s8 %v6620
    %v6622 = vlaneseq
    %v6623 = vshrl.u32 %v6622, 7
    %v6624 = vsub.s32 %v6621, %v6623
    %v6625 = vrot.slane %v6617, %v6624
    %v6627 = vunpack.c.l.s4 1966171168
    %v6628 = vunpack.c.0.s8 %v6627
    %v6629 = vlaneseq
    %v6630 = vshrl.u32 %v6629, 7
    %v6631 = vsub.s32 %v6628, %v6630
    %v6632 = vrot.slane %v6618, %v6631
    %v6633 = vcombine.low %v6625, %v6632
    %v6634 = vcombine.low %v5290, %v5294
    %v6635 = vcombine.low %v5298, %v5302
    %v6636 = vcombine.low %v5306, %v5310
    %v6637 = vcombine.low %v5314, %v5318
    %v6639 = vunpack.c.l.s4 1966171168
    %v6640 = vunpack.c.0.s8 %v6639
    %v6641 = vlaneseq
    %v6642 = vshrl.u32 %v6641, 7
    %v6643 = vsub.s32 %v6640, %v6642
    %v6644 = vrot.slane %v6634, %v6643
    %v6646 = vunpack.c.l.s4 1966171168
    %v6647 = vunpack.c.0.s8 %v6646
    %v6648 = vlaneseq
    %v6649 = vshrl.u32 %v6648, 7
    %v6650 = vsub.s32 %v6647, %v6649
    %v6651 = vrot.slane %v6635, %v6650
    %v6653 = vunpack.c.l.s4 1966171168
    %v6654 = vunpack.c.0.s8 %v6653
    %v6655 = vlaneseq
    %v6656 = vshrl.u32 %v6655, 7
    %v6657 = vsub.s32 %v6654, %v6656
    %v6658 = vrot.slane %v6636, %v6657
    %v6660 = vunpack.c.l.s4 1966171168
    %v6661 = vunpack.c.0.s8 %v6660
    %v6662 = vlaneseq
    %v6663 = vshrl.u32 %v6662, 7
    %v6664 = vsub.s32 %v6661, %v6663
    %v6665 = vrot.slane %v6637, %v6664
    %v6666 = vcombine.low %v6644, %v6651
    %v6667 = vcombine.low %v6658, %v6665
    %v6669 = vunpack.c.l.s4 1966171168
    %v6670 = vunpack.c.0.s8 %v6669
    %v6671 = vlaneseq
    %v6672 = vshrl.u32 %v6671, 7
    %v6673 = vsub.s32 %v6670, %v6672
    %v6674 = vrot.slane %v6666, %v6673
    %v6676 = vunpack.c.l.s4 1966171168
    %v6677 = vunpack.c.0.s8 %v6676
    %v6678 = vlaneseq
    %v6679 = vshrl.u32 %v6678, 7
    %v6680 = vsub.s32 %v6677, %v6679
    %v6681 = vrot.slane %v6667, %v6680
    %v6682 = vcombine.low %v6674, %v6681
    %v6683 = vcombine.low %v5322, %v5326
    %v6684 = vcombine.low %v5330, %v5334
    %v6685 = vcombine.low %v5338, %v5342
    %v6686 = vcombine.low %v5346, %v5350
    %v6688 = vunpack.c.l.s4 1966171168
    %v6689 = vunpack.c.0.s8 %v6688
    %v6690 = vlaneseq
    %v6691 = vshrl.u32 %v6690, 7
    %v6692 = vsub.s32 %v6689, %v6691
    %v6693 = vrot.slane %v6683, %v6692
    %v6695 = vunpack.c.l.s4 1966171168
    %v6696 = vunpack.c.0.s8 %v6695
    %v6697 = vlaneseq
    %v6698 = vshrl.u32 %v6697, 7
    %v6699 = vsub.s32 %v6696, %v6698
    %v6700 = vrot.slane %v6684, %v6699
    %v6702 = vunpack.c.l.s4 1966171168
    %v6703 = vunpack.c.0.s8 %v6702
    %v6704 = vlaneseq
    %v6705 = vshrl.u32 %v6704, 7
    %v6706 = vsub.s32 %v6703, %v6705
    %v6707 = vrot.slane %v6685, %v6706
    %v6709 = vunpack.c.l.s4 1966171168
    %v6710 = vunpack.c.0.s8 %v6709
    %v6711 = vlaneseq
    %v6712 = vshrl.u32 %v6711, 7
    %v6713 = vsub.s32 %v6710, %v6712
    %v6714 = vrot.slane %v6686, %v6713
    %v6715 = vcombine.low %v6693, %v6700
    %v6716 = vcombine.low %v6707, %v6714
    %v6718 = vunpack.c.l.s4 1966171168
    %v6719 = vunpack.c.0.s8 %v6718
    %v6720 = vlaneseq
    %v6721 = vshrl.u32 %v6720, 7
    %v6722 = vsub.s32 %v6719, %v6721
    %v6723 = vrot.slane %v6715, %v6722
    %v6725 = vunpack.c.l.s4 1966171168
    %v6726 = vunpack.c.0.s8 %v6725
    %v6727 = vlaneseq
    %v6728 = vshrl.u32 %v6727, 7
    %v6729 = vsub.s32 %v6726, %v6728
    %v6730 = vrot.slane %v6716, %v6729
    %v6731 = vcombine.low %v6723, %v6730
    %v6732 = vcombine.low %v5354, %v5358
    %v6733 = vcombine.low %v5362, %v5366
    %v6734 = vcombine.low %v5370, %v5374
    %v6735 = vcombine.low %v5378, %v5382
    %v6737 = vunpack.c.l.s4 1966171168
    %v6738 = vunpack.c.0.s8 %v6737
    %v6739 = vlaneseq
    %v6740 = vshrl.u32 %v6739, 7
    %v6741 = vsub.s32 %v6738, %v6740
    %v6742 = vrot.slane %v6732, %v6741
    %v6744 = vunpack.c.l.s4 1966171168
    %v6745 = vunpack.c.0.s8 %v6744
    %v6746 = vlaneseq
    %v6747 = vshrl.u32 %v6746, 7
    %v6748 = vsub.s32 %v6745, %v6747
    %v6749 = vrot.slane %v6733, %v6748
    %v6751 = vunpack.c.l.s4 1966171168
    %v6752 = vunpack.c.0.s8 %v6751
    %v6753 = vlaneseq
    %v6754 = vshrl.u32 %v6753, 7
    %v6755 = vsub.s32 %v6752, %v6754
    %v6756 = vrot.slane %v6734, %v6755
    %v6758 = vunpack.c.l.s4 1966171168
    %v6759 = vunpack.c.0.s8 %v6758
    %v6760 = vlaneseq
    %v6761 = vshrl.u32 %v6760, 7
    %v6762 = vsub.s32 %v6759, %v6761
    %v6763 = vrot.slane %v6735, %v6762
    %v6764 = vcombine.low %v6742, %v6749
    %v6765 = vcombine.low %v6756, %v6763
    %v6767 = vunpack.c.l.s4 1966171168
    %v6768 = vunpack.c.0.s8 %v6767
    %v6769 = vlaneseq
    %v6770 = vshrl.u32 %v6769, 7
    %v6771 = vsub.s32 %v6768, %v6770
    %v6772 = vrot.slane %v6764, %v6771
    %v6774 = vunpack.c.l.s4 1966171168
    %v6775 = vunpack.c.0.s8 %v6774
    %v6776 = vlaneseq
    %v6777 = vshrl.u32 %v6776, 7
    %v6778 = vsub.s32 %v6775, %v6777
    %v6779 = vrot.slane %v6765, %v6778
    %v6780 = vcombine.low %v6772, %v6779
    %v6781 = vcombine.low %v5386, %v5390
    %v6782 = vcombine.low %v5394, %v5398
    %v6783 = vcombine.low %v5402, %v5406
    %v6784 = vcombine.low %v5410, %v5414
    %v6786 = vunpack.c.l.s4 1966171168
    %v6787 = vunpack.c.0.s8 %v6786
    %v6788 = vlaneseq
    %v6789 = vshrl.u32 %v6788, 7
    %v6790 = vsub.s32 %v6787, %v6789
    %v6791 = vrot.slane %v6781, %v6790
    %v6793 = vunpack.c.l.s4 1966171168
    %v6794 = vunpack.c.0.s8 %v6793
    %v6795 = vlaneseq
    %v6796 = vshrl.u32 %v6795, 7
    %v6797 = vsub.s32 %v6794, %v6796
    %v6798 = vrot.slane %v6782, %v6797
    %v6800 = vunpack.c.l.s4 1966171168
    %v6801 = vunpack.c.0.s8 %v6800
    %v6802 = vlaneseq
    %v6803 = vshrl.u32 %v6802, 7
    %v6804 = vsub.s32 %v6801, %v6803
    %v6805 = vrot.slane %v6783, %v6804
    %v6807 = vunpack.c.l.s4 1966171168
    %v6808 = vunpack.c.0.s8 %v6807
    %v6809 = vlaneseq
    %v6810 = vshrl.u32 %v6809, 7
    %v6811 = vsub.s32 %v6808, %v6810
    %v6812 = vrot.slane %v6784, %v6811
    %v6813 = vcombine.low %v6791, %v6798
    %v6814 = vcombine.low %v6805, %v6812
    %v6816 = vunpack.c.l.s4 1966171168
    %v6817 = vunpack.c.0.s8 %v6816
    %v6818 = vlaneseq
    %v6819 = vshrl.u32 %v6818, 7
    %v6820 = vsub.s32 %v6817, %v6819
    %v6821 = vrot.slane %v6813, %v6820
    %v6823 = vunpack.c.l.s4 1966171168
    %v6824 = vunpack.c.0.s8 %v6823
    %v6825 = vlaneseq
    %v6826 = vshrl.u32 %v6825, 7
    %v6827 = vsub.s32 %v6824, %v6826
    %v6828 = vrot.slane %v6814, %v6827
    %v6829 = vcombine.low %v6821, %v6828
    %v6830 = vcombine.low %v5418, %v5422
    %v6831 = vcombine.low %v5426, %v5430
    %v6832 = vcombine.low %v5434, %v5438
    %v6833 = vcombine.low %v5442, %v5446
    %v6835 = vunpack.c.l.s4 1966171168
    %v6836 = vunpack.c.0.s8 %v6835
    %v6837 = vlaneseq
    %v6838 = vshrl.u32 %v6837, 7
    %v6839 = vsub.s32 %v6836, %v6838
    %v6840 = vrot.slane %v6830, %v6839
    %v6842 = vunpack.c.l.s4 1966171168
    %v6843 = vunpack.c.0.s8 %v6842
    %v6844 = vlaneseq
    %v6845 = vshrl.u32 %v6844, 7
    %v6846 = vsub.s32 %v6843, %v6845
    %v6847 = vrot.slane %v6831, %v6846
    %v6849 = vunpack.c.l.s4 1966171168
    %v6850 = vunpack.c.0.s8 %v6849
    %v6851 = vlaneseq
    %v6852 = vshrl.u32 %v6851, 7
    %v6853 = vsub.s32 %v6850, %v6852
    %v6854 = vrot.slane %v6832, %v6853
    %v6856 = vunpack.c.l.s4 1966171168
    %v6857 = vunpack.c.0.s8 %v6856
    %v6858 = vlaneseq
    %v6859 = vshrl.u32 %v6858, 7
    %v6860 = vsub.s32 %v6857, %v6859
    %v6861 = vrot.slane %v6833, %v6860
    %v6862 = vcombine.low %v6840, %v6847
    %v6863 = vcombine.low %v6854, %v6861
    %v6865 = vunpack.c.l.s4 1966171168
    %v6866 = vunpack.c.0.s8 %v6865
    %v6867 = vlaneseq
    %v6868 = vshrl.u32 %v6867, 7
    %v6869 = vsub.s32 %v6866, %v6868
    %v6870 = vrot.slane %v6862, %v6869
    %v6872 = vunpack.c.l.s4 1966171168
    %v6873 = vunpack.c.0.s8 %v6872
    %v6874 = vlaneseq
    %v6875 = vshrl.u32 %v6874, 7
    %v6876 = vsub.s32 %v6873, %v6875
    %v6877 = vrot.slane %v6863, %v6876
    %v6878 = vcombine.low %v6870, %v6877
    %v6879 = vcombine.low %v5450, %v5454
    %v6880 = vcombine.low %v5458, %v5462
    %v6881 = vcombine.low %v5466, %v5470
    %v6882 = vcombine.low %v5474, %v5478
    %v6884 = vunpack.c.l.s4 1966171168
    %v6885 = vunpack.c.0.s8 %v6884
    %v6886 = vlaneseq
    %v6887 = vshrl.u32 %v6886, 7
    %v6888 = vsub.s32 %v6885, %v6887
    %v6889 = vrot.slane %v6879, %v6888
    %v6891 = vunpack.c.l.s4 1966171168
    %v6892 = vunpack.c.0.s8 %v6891
    %v6893 = vlaneseq
    %v6894 = vshrl.u32 %v6893, 7
    %v6895 = vsub.s32 %v6892, %v6894
    %v6896 = vrot.slane %v6880, %v6895
    %v6898 = vunpack.c.l.s4 1966171168
    %v6899 = vunpack.c.0.s8 %v6898
    %v6900 = vlaneseq
    %v6901 = vshrl.u32 %v6900, 7
    %v6902 = vsub.s32 %v6899, %v6901
    %v6903 = vrot.slane %v6881, %v6902
    %v6905 = vunpack.c.l.s4 1966171168
    %v6906 = vunpack.c.0.s8 %v6905
    %v6907 = vlaneseq
    %v6908 = vshrl.u32 %v6907, 7
    %v6909 = vsub.s32 %v6906, %v6908
    %v6910 = vrot.slane %v6882, %v6909
    %v6911 = vcombine.low %v6889, %v6896
    %v6912 = vcombine.low %v6903, %v6910
    %v6914 = vunpack.c.l.s4 1966171168
    %v6915 = vunpack.c.0.s8 %v6914
    %v6916 = vlaneseq
    %v6917 = vshrl.u32 %v6916, 7
    %v6918 = vsub.s32 %v6915, %v6917
    %v6919 = vrot.slane %v6911, %v6918
    %v6921 = vunpack.c.l.s4 1966171168
    %v6922 = vunpack.c.0.s8 %v6921
    %v6923 = vlaneseq
    %v6924 = vshrl.u32 %v6923, 7
    %v6925 = vsub.s32 %v6922, %v6924
    %v6926 = vrot.slane %v6912, %v6925
    %v6927 = vcombine.low %v6919, %v6926
    %v6928 = vcombine.low %v5482, %v5486
    %v6929 = vcombine.low %v5490, %v5494
    %v6930 = vcombine.low %v5498, %v5502
    %v6931 = vcombine.low %v5506, %v5510
    %v6933 = vunpack.c.l.s4 1966171168
    %v6934 = vunpack.c.0.s8 %v6933
    %v6935 = vlaneseq
    %v6936 = vshrl.u32 %v6935, 7
    %v6937 = vsub.s32 %v6934, %v6936
    %v6938 = vrot.slane %v6928, %v6937
    %v6940 = vunpack.c.l.s4 1966171168
    %v6941 = vunpack.c.0.s8 %v6940
    %v6942 = vlaneseq
    %v6943 = vshrl.u32 %v6942, 7
    %v6944 = vsub.s32 %v6941, %v6943
    %v6945 = vrot.slane %v6929, %v6944
    %v6947 = vunpack.c.l.s4 1966171168
    %v6948 = vunpack.c.0.s8 %v6947
    %v6949 = vlaneseq
    %v6950 = vshrl.u32 %v6949, 7
    %v6951 = vsub.s32 %v6948, %v6950
    %v6952 = vrot.slane %v6930, %v6951
    %v6954 = vunpack.c.l.s4 1966171168
    %v6955 = vunpack.c.0.s8 %v6954
    %v6956 = vlaneseq
    %v6957 = vshrl.u32 %v6956, 7
    %v6958 = vsub.s32 %v6955, %v6957
    %v6959 = vrot.slane %v6931, %v6958
    %v6960 = vcombine.low %v6938, %v6945
    %v6961 = vcombine.low %v6952, %v6959
    %v6963 = vunpack.c.l.s4 1966171168
    %v6964 = vunpack.c.0.s8 %v6963
    %v6965 = vlaneseq
    %v6966 = vshrl.u32 %v6965, 7
    %v6967 = vsub.s32 %v6964, %v6966
    %v6968 = vrot.slane %v6960, %v6967
    %v6970 = vunpack.c.l.s4 1966171168
    %v6971 = vunpack.c.0.s8 %v6970
    %v6972 = vlaneseq
    %v6973 = vshrl.u32 %v6972, 7
    %v6974 = vsub.s32 %v6971, %v6973
    %v6975 = vrot.slane %v6961, %v6974
    %v6976 = vcombine.low %v6968, %v6975
    %v6977 = vcombine.low %v5514, %v5518
    %v6978 = vcombine.low %v5522, %v5526
    %v6979 = vcombine.low %v5530, %v5534
    %v6980 = vcombine.low %v5538, %v5542
    %v6982 = vunpack.c.l.s4 1966171168
    %v6983 = vunpack.c.0.s8 %v6982
    %v6984 = vlaneseq
    %v6985 = vshrl.u32 %v6984, 7
    %v6986 = vsub.s32 %v6983, %v6985
    %v6987 = vrot.slane %v6977, %v6986
    %v6989 = vunpack.c.l.s4 1966171168
    %v6990 = vunpack.c.0.s8 %v6989
    %v6991 = vlaneseq
    %v6992 = vshrl.u32 %v6991, 7
    %v6993 = vsub.s32 %v6990, %v6992
    %v6994 = vrot.slane %v6978, %v6993
    %v6996 = vunpack.c.l.s4 1966171168
    %v6997 = vunpack.c.0.s8 %v6996
    %v6998 = vlaneseq
    %v6999 = vshrl.u32 %v6998, 7
    %v7000 = vsub.s32 %v6997, %v6999
    %v7001 = vrot.slane %v6979, %v7000
    %v7003 = vunpack.c.l.s4 1966171168
    %v7004 = vunpack.c.0.s8 %v7003
    %v7005 = vlaneseq
    %v7006 = vshrl.u32 %v7005, 7
    %v7007 = vsub.s32 %v7004, %v7006
    %v7008 = vrot.slane %v6980, %v7007
    %v7009 = vcombine.low %v6987, %v6994
    %v7010 = vcombine.low %v7001, %v7008
    %v7012 = vunpack.c.l.s4 1966171168
    %v7013 = vunpack.c.0.s8 %v7012
    %v7014 = vlaneseq
    %v7015 = vshrl.u32 %v7014, 7
    %v7016 = vsub.s32 %v7013, %v7015
    %v7017 = vrot.slane %v7009, %v7016
    %v7019 = vunpack.c.l.s4 1966171168
    %v7020 = vunpack.c.0.s8 %v7019
    %v7021 = vlaneseq
    %v7022 = vshrl.u32 %v7021, 7
    %v7023 = vsub.s32 %v7020, %v7022
    %v7024 = vrot.slane %v7010, %v7023
    %v7025 = vcombine.low %v7017, %v7024
    %v7026 = vcombine.low %v5546, %v5550
    %v7027 = vcombine.low %v5554, %v5558
    %v7028 = vcombine.low %v5562, %v5566
    %v7029 = vcombine.low %v5570, %v5574
    %v7031 = vunpack.c.l.s4 1966171168
    %v7032 = vunpack.c.0.s8 %v7031
    %v7033 = vlaneseq
    %v7034 = vshrl.u32 %v7033, 7
    %v7035 = vsub.s32 %v7032, %v7034
    %v7036 = vrot.slane %v7026, %v7035
    %v7038 = vunpack.c.l.s4 1966171168
    %v7039 = vunpack.c.0.s8 %v7038
    %v7040 = vlaneseq
    %v7041 = vshrl.u32 %v7040, 7
    %v7042 = vsub.s32 %v7039, %v7041
    %v7043 = vrot.slane %v7027, %v7042
    %v7045 = vunpack.c.l.s4 1966171168
    %v7046 = vunpack.c.0.s8 %v7045
    %v7047 = vlaneseq
    %v7048 = vshrl.u32 %v7047, 7
    %v7049 = vsub.s32 %v7046, %v7048
    %v7050 = vrot.slane %v7028, %v7049
    %v7052 = vunpack.c.l.s4 1966171168
    %v7053 = vunpack.c.0.s8 %v7052
    %v7054 = vlaneseq
    %v7055 = vshrl.u32 %v7054, 7
    %v7056 = vsub.s32 %v7053, %v7055
    %v7057 = vrot.slane %v7029, %v7056
    %v7058 = vcombine.low %v7036, %v7043
    %v7059 = vcombine.low %v7050, %v7057
    %v7061 = vunpack.c.l.s4 1966171168
    %v7062 = vunpack.c.0.s8 %v7061
    %v7063 = vlaneseq
    %v7064 = vshrl.u32 %v7063, 7
    %v7065 = vsub.s32 %v7062, %v7064
    %v7066 = vrot.slane %v7058, %v7065
    %v7068 = vunpack.c.l.s4 1966171168
    %v7069 = vunpack.c.0.s8 %v7068
    %v7070 = vlaneseq
    %v7071 = vshrl.u32 %v7070, 7
    %v7072 = vsub.s32 %v7069, %v7071
    %v7073 = vrot.slane %v7059, %v7072
    %v7074 = vcombine.low %v7066, %v7073
    %v7075 = vcombine.low %v5578, %v5582
    %v7076 = vcombine.low %v5586, %v5590
    %v7077 = vcombine.low %v5594, %v5598
    %v7078 = vcombine.low %v5602, %v5606
    %v7080 = vunpack.c.l.s4 1966171168
    %v7081 = vunpack.c.0.s8 %v7080
    %v7082 = vlaneseq
    %v7083 = vshrl.u32 %v7082, 7
    %v7084 = vsub.s32 %v7081, %v7083
    %v7085 = vrot.slane %v7075, %v7084
    %v7087 = vunpack.c.l.s4 1966171168
    %v7088 = vunpack.c.0.s8 %v7087
    %v7089 = vlaneseq
    %v7090 = vshrl.u32 %v7089, 7
    %v7091 = vsub.s32 %v7088, %v7090
    %v7092 = vrot.slane %v7076, %v7091
    %v7094 = vunpack.c.l.s4 1966171168
    %v7095 = vunpack.c.0.s8 %v7094
    %v7096 = vlaneseq
    %v7097 = vshrl.u32 %v7096, 7
    %v7098 = vsub.s32 %v7095, %v7097
    %v7099 = vrot.slane %v7077, %v7098
    %v7101 = vunpack.c.l.s4 1966171168
    %v7102 = vunpack.c.0.s8 %v7101
    %v7103 = vlaneseq
    %v7104 = vshrl.u32 %v7103, 7
    %v7105 = vsub.s32 %v7102, %v7104
    %v7106 = vrot.slane %v7078, %v7105
    %v7107 = vcombine.low %v7085, %v7092
    %v7108 = vcombine.low %v7099, %v7106
    %v7110 = vunpack.c.l.s4 1966171168
    %v7111 = vunpack.c.0.s8 %v7110
    %v7112 = vlaneseq
    %v7113 = vshrl.u32 %v7112, 7
    %v7114 = vsub.s32 %v7111, %v7113
    %v7115 = vrot.slane %v7107, %v7114
    %v7117 = vunpack.c.l.s4 1966171168
    %v7118 = vunpack.c.0.s8 %v7117
    %v7119 = vlaneseq
    %v7120 = vshrl.u32 %v7119, 7
    %v7121 = vsub.s32 %v7118, %v7120
    %v7122 = vrot.slane %v7108, %v7121
    %v7123 = vcombine.low %v7115, %v7122
    %v7124 = vcombine.low %v5610, %v5614
    %v7125 = vcombine.low %v5618, %v5622
    %v7126 = vcombine.low %v5626, %v5630
    %v7127 = vcombine.low %v5634, %v5638
    %v7129 = vunpack.c.l.s4 1966171168
    %v7130 = vunpack.c.0.s8 %v7129
    %v7131 = vlaneseq
    %v7132 = vshrl.u32 %v7131, 7
    %v7133 = vsub.s32 %v7130, %v7132
    %v7134 = vrot.slane %v7124, %v7133
    %v7136 = vunpack.c.l.s4 1966171168
    %v7137 = vunpack.c.0.s8 %v7136
    %v7138 = vlaneseq
    %v7139 = vshrl.u32 %v7138, 7
    %v7140 = vsub.s32 %v7137, %v7139
    %v7141 = vrot.slane %v7125, %v7140
    %v7143 = vunpack.c.l.s4 1966171168
    %v7144 = vunpack.c.0.s8 %v7143
    %v7145 = vlaneseq
    %v7146 = vshrl.u32 %v7145, 7
    %v7147 = vsub.s32 %v7144, %v7146
    %v7148 = vrot.slane %v7126, %v7147
    %v7150 = vunpack.c.l.s4 1966171168
    %v7151 = vunpack.c.0.s8 %v7150
    %v7152 = vlaneseq
    %v7153 = vshrl.u32 %v7152, 7
    %v7154 = vsub.s32 %v7151, %v7153
    %v7155 = vrot.slane %v7127, %v7154
    %v7156 = vcombine.low %v7134, %v7141
    %v7157 = vcombine.low %v7148, %v7155
    %v7159 = vunpack.c.l.s4 1966171168
    %v7160 = vunpack.c.0.s8 %v7159
    %v7161 = vlaneseq
    %v7162 = vshrl.u32 %v7161, 7
    %v7163 = vsub.s32 %v7160, %v7162
    %v7164 = vrot.slane %v7156, %v7163
    %v7166 = vunpack.c.l.s4 1966171168
    %v7167 = vunpack.c.0.s8 %v7166
    %v7168 = vlaneseq
    %v7169 = vshrl.u32 %v7168, 7
    %v7170 = vsub.s32 %v7167, %v7169
    %v7171 = vrot.slane %v7157, %v7170
    %v7172 = vcombine.low %v7164, %v7171
    %v7173 = vcombine.low %v5642, %v5646
    %v7174 = vcombine.low %v5650, %v5654
    %v7175 = vcombine.low %v5658, %v5662
    %v7176 = vcombine.low %v5666, %v5670
    %v7178 = vunpack.c.l.s4 1966171168
    %v7179 = vunpack.c.0.s8 %v7178
    %v7180 = vlaneseq
    %v7181 = vshrl.u32 %v7180, 7
    %v7182 = vsub.s32 %v7179, %v7181
    %v7183 = vrot.slane %v7173, %v7182
    %v7185 = vunpack.c.l.s4 1966171168
    %v7186 = vunpack.c.0.s8 %v7185
    %v7187 = vlaneseq
    %v7188 = vshrl.u32 %v7187, 7
    %v7189 = vsub.s32 %v7186, %v7188
    %v7190 = vrot.slane %v7174, %v7189
    %v7192 = vunpack.c.l.s4 1966171168
    %v7193 = vunpack.c.0.s8 %v7192
    %v7194 = vlaneseq
    %v7195 = vshrl.u32 %v7194, 7
    %v7196 = vsub.s32 %v7193, %v7195
    %v7197 = vrot.slane %v7175, %v7196
    %v7199 = vunpack.c.l.s4 1966171168
    %v7200 = vunpack.c.0.s8 %v7199
    %v7201 = vlaneseq
    %v7202 = vshrl.u32 %v7201, 7
    %v7203 = vsub.s32 %v7200, %v7202
    %v7204 = vrot.slane %v7176, %v7203
    %v7205 = vcombine.low %v7183, %v7190
    %v7206 = vcombine.low %v7197, %v7204
    %v7208 = vunpack.c.l.s4 1966171168
    %v7209 = vunpack.c.0.s8 %v7208
    %v7210 = vlaneseq
    %v7211 = vshrl.u32 %v7210, 7
    %v7212 = vsub.s32 %v7209, %v7211
    %v7213 = vrot.slane %v7205, %v7212
    %v7215 = vunpack.c.l.s4 1966171168
    %v7216 = vunpack.c.0.s8 %v7215
    %v7217 = vlaneseq
    %v7218 = vshrl.u32 %v7217, 7
    %v7219 = vsub.s32 %v7216, %v7218
    %v7220 = vrot.slane %v7206, %v7219
    %v7221 = vcombine.low %v7213, %v7220
    %v7222 = vcombine.low %v5674, %v5678
    %v7223 = vcombine.low %v5682, %v5686
    %v7224 = vcombine.low %v5690, %v5694
    %v7225 = vcombine.low %v5698, %v5702
    %v7227 = vunpack.c.l.s4 1966171168
    %v7228 = vunpack.c.0.s8 %v7227
    %v7229 = vlaneseq
    %v7230 = vshrl.u32 %v7229, 7
    %v7231 = vsub.s32 %v7228, %v7230
    %v7232 = vrot.slane %v7222, %v7231
    %v7234 = vunpack.c.l.s4 1966171168
    %v7235 = vunpack.c.0.s8 %v7234
    %v7236 = vlaneseq
    %v7237 = vshrl.u32 %v7236, 7
    %v7238 = vsub.s32 %v7235, %v7237
    %v7239 = vrot.slane %v7223, %v7238
    %v7241 = vunpack.c.l.s4 1966171168
    %v7242 = vunpack.c.0.s8 %v7241
    %v7243 = vlaneseq
    %v7244 = vshrl.u32 %v7243, 7
    %v7245 = vsub.s32 %v7242, %v7244
    %v7246 = vrot.slane %v7224, %v7245
    %v7248 = vunpack.c.l.s4 1966171168
    %v7249 = vunpack.c.0.s8 %v7248
    %v7250 = vlaneseq
    %v7251 = vshrl.u32 %v7250, 7
    %v7252 = vsub.s32 %v7249, %v7251
    %v7253 = vrot.slane %v7225, %v7252
    %v7254 = vcombine.low %v7232, %v7239
    %v7255 = vcombine.low %v7246, %v7253
    %v7257 = vunpack.c.l.s4 1966171168
    %v7258 = vunpack.c.0.s8 %v7257
    %v7259 = vlaneseq
    %v7260 = vshrl.u32 %v7259, 7
    %v7261 = vsub.s32 %v7258, %v7260
    %v7262 = vrot.slane %v7254, %v7261
    %v7264 = vunpack.c.l.s4 1966171168
    %v7265 = vunpack.c.0.s8 %v7264
    %v7266 = vlaneseq
    %v7267 = vshrl.u32 %v7266, 7
    %v7268 = vsub.s32 %v7265, %v7267
    %v7269 = vrot.slane %v7255, %v7268
    %v7270 = vcombine.low %v7262, %v7269
    %7271 = vset.pattern.permute.xlu0 0
    %7272 = vperm.xlu0 %7271, %v5751
    %v7273 = vpop.permute.xlu0 %7272
    %7274 = vset.pattern.permute.xlu0 0
    %7275 = vperm.xlu0 %7274, %v5800
    %v7276 = vpop.permute.xlu0 %7275
    %7277 = vset.pattern.permute.xlu0 0
    %7278 = vperm.xlu0 %7277, %v5849
    %v7279 = vpop.permute.xlu0 %7278
    %7280 = vset.pattern.permute.xlu0 0
    %7281 = vperm.xlu0 %7280, %v5898
    %v7282 = vpop.permute.xlu0 %7281
    %7283 = vset.pattern.permute.xlu0 0
    %7284 = vperm.xlu0 %7283, %v5947
    %v7285 = vpop.permute.xlu0 %7284
    %7286 = vset.pattern.permute.xlu0 0
    %7287 = vperm.xlu0 %7286, %v5996
    %v7288 = vpop.permute.xlu0 %7287
    %7289 = vset.pattern.permute.xlu0 0
    %7290 = vperm.xlu0 %7289, %v6045
    %v7291 = vpop.permute.xlu0 %7290
    %7292 = vset.pattern.permute.xlu0 0
    %7293 = vperm.xlu0 %7292, %v6094
    %v7294 = vpop.permute.xlu0 %7293
    %7295 = vset.pattern.permute.xlu0 0
    %7296 = vperm.xlu0 %7295, %v6143
    %v7297 = vpop.permute.xlu0 %7296
    %7298 = vset.pattern.permute.xlu0 0
    %7299 = vperm.xlu0 %7298, %v6192
    %v7300 = vpop.permute.xlu0 %7299
    %7301 = vset.pattern.permute.xlu0 0
    %7302 = vperm.xlu0 %7301, %v6241
    %v7303 = vpop.permute.xlu0 %7302
    %7304 = vset.pattern.permute.xlu0 0
    %7305 = vperm.xlu0 %7304, %v6290
    %v7306 = vpop.permute.xlu0 %7305
    %7307 = vset.pattern.permute.xlu0 0
    %7308 = vperm.xlu0 %7307, %v6339
    %v7309 = vpop.permute.xlu0 %7308
    %7310 = vset.pattern.permute.xlu0 0
    %7311 = vperm.xlu0 %7310, %v6388
    %v7312 = vpop.permute.xlu0 %7311
    %7313 = vset.pattern.permute.xlu0 0
    %7314 = vperm.xlu0 %7313, %v6437
    %v7315 = vpop.permute.xlu0 %7314
    %7316 = vset.pattern.permute.xlu0 0
    %7317 = vperm.xlu0 %7316, %v6486
    %v7318 = vpop.permute.xlu0 %7317
    %7319 = vset.pattern.permute.xlu0 0
    %7320 = vperm.xlu0 %7319, %v6535
    %v7321 = vpop.permute.xlu0 %7320
    %7322 = vset.pattern.permute.xlu0 0
    %7323 = vperm.xlu0 %7322, %v6584
    %v7324 = vpop.permute.xlu0 %7323
    %7325 = vset.pattern.permute.xlu0 0
    %7326 = vperm.xlu0 %7325, %v6633
    %v7327 = vpop.permute.xlu0 %7326
    %7328 = vset.pattern.permute.xlu0 0
    %7329 = vperm.xlu0 %7328, %v6682
    %v7330 = vpop.permute.xlu0 %7329
    %7331 = vset.pattern.permute.xlu0 0
    %7332 = vperm.xlu0 %7331, %v6731
    %v7333 = vpop.permute.xlu0 %7332
    %7334 = vset.pattern.permute.xlu0 0
    %7335 = vperm.xlu0 %7334, %v6780
    %v7336 = vpop.permute.xlu0 %7335
    %7337 = vset.pattern.permute.xlu0 0
    %7338 = vperm.xlu0 %7337, %v6829
    %v7339 = vpop.permute.xlu0 %7338
    %7340 = vset.pattern.permute.xlu0 0
    %7341 = vperm.xlu0 %7340, %v6878
    %v7342 = vpop.permute.xlu0 %7341
    %7343 = vset.pattern.permute.xlu0 0
    %7344 = vperm.xlu0 %7343, %v6927
    %v7345 = vpop.permute.xlu0 %7344
    %7346 = vset.pattern.permute.xlu0 0
    %7347 = vperm.xlu0 %7346, %v6976
    %v7348 = vpop.permute.xlu0 %7347
    %7349 = vset.pattern.permute.xlu0 0
    %7350 = vperm.xlu0 %7349, %v7025
    %v7351 = vpop.permute.xlu0 %7350
    %7352 = vset.pattern.permute.xlu0 0
    %7353 = vperm.xlu0 %7352, %v7074
    %v7354 = vpop.permute.xlu0 %7353
    %7355 = vset.pattern.permute.xlu0 0
    %7356 = vperm.xlu0 %7355, %v7123
    %v7357 = vpop.permute.xlu0 %7356
    %7358 = vset.pattern.permute.xlu0 0
    %7359 = vperm.xlu0 %7358, %v7172
    %v7360 = vpop.permute.xlu0 %7359
    %7361 = vset.pattern.permute.xlu0 0
    %7362 = vperm.xlu0 %7361, %v7221
    %v7363 = vpop.permute.xlu0 %7362
    %7364 = vset.pattern.permute.xlu0 0
    %7365 = vperm.xlu0 %7364, %v7270
    %v7366 = vpop.permute.xlu0 %7365
    %v7367 = vlaneseq
    %v7368 = vand.u32 %v7367, 127
    %v7369 = vlaneseq
    %v7370 = vshrl.u32 %v7369, 7
    %v7371 = vsub.s32 %v7368, %v7370
    %v7372 = vrot.slane %v7273, %v7371
    %v7373 = vadd.s32 %v7368, 4294967288
    %v7374 = vlaneseq
    %v7375 = vshrl.u32 %v7374, 7
    %v7376 = vsub.s32 %v7373, %v7375
    %v7377 = vrot.slane %v7276, %v7376
    %vm7378 = vcmask 130112
    %v7379 = vsel %vm7378, %v7377, %v7372
    %v7380 = vadd.s32 %v7368, 4294967280
    %v7381 = vlaneseq
    %v7382 = vshrl.u32 %v7381, 7
    %v7383 = vsub.s32 %v7380, %v7382
    %v7384 = vrot.slane %v7279, %v7383
    %vm7385 = vcmask 195712
    %v7386 = vsel %vm7385, %v7384, %v7379
    %v7387 = vadd.s32 %v7368, 4294967272
    %v7388 = vlaneseq
    %v7389 = vshrl.u32 %v7388, 7
    %v7390 = vsub.s32 %v7387, %v7389
    %v7391 = vrot.slane %v7282, %v7390
    %vm7392 = vcmask 261312
    %v7393 = vsel %vm7392, %v7391, %v7386
    %v7394 = vadd.s32 %v7368, 4294967264
    %v7395 = vlaneseq
    %v7396 = vshrl.u32 %v7395, 7
    %v7397 = vsub.s32 %v7394, %v7396
    %v7398 = vrot.slane %v7285, %v7397
    %vm7399 = vcmask 326912
    %v7400 = vsel %vm7399, %v7398, %v7393
    %v7401 = vadd.s32 %v7368, 4294967256
    %v7402 = vlaneseq
    %v7403 = vshrl.u32 %v7402, 7
    %v7404 = vsub.s32 %v7401, %v7403
    %v7405 = vrot.slane %v7288, %v7404
    %vm7406 = vcmask 392512
    %v7407 = vsel %vm7406, %v7405, %v7400
    %v7408 = vadd.s32 %v7368, 4294967248
    %v7409 = vlaneseq
    %v7410 = vshrl.u32 %v7409, 7
    %v7411 = vsub.s32 %v7408, %v7410
    %v7412 = vrot.slane %v7291, %v7411
    %vm7413 = vcmask 458112
    %v7414 = vsel %vm7413, %v7412, %v7407
    %v7415 = vadd.s32 %v7368, 4294967240
    %v7416 = vlaneseq
    %v7417 = vshrl.u32 %v7416, 7
    %v7418 = vsub.s32 %v7415, %v7417
    %v7419 = vrot.slane %v7294, %v7418
    %vm7420 = vcmask 523712
    %v7421 = vsel %vm7420, %v7419, %v7414
    %v7422 = vadd.s32 %v7368, 4294967232
    %v7423 = vlaneseq
    %v7424 = vshrl.u32 %v7423, 7
    %v7425 = vsub.s32 %v7422, %v7424
    %v7426 = vrot.slane %v7297, %v7425
    %vm7427 = vcmask 589312
    %v7428 = vsel %vm7427, %v7426, %v7421
    %v7429 = vadd.s32 %v7368, 4294967224
    %v7430 = vlaneseq
    %v7431 = vshrl.u32 %v7430, 7
    %v7432 = vsub.s32 %v7429, %v7431
    %v7433 = vrot.slane %v7300, %v7432
    %vm7434 = vcmask 654912
    %v7435 = vsel %vm7434, %v7433, %v7428
    %v7436 = vadd.s32 %v7368, 4294967216
    %v7437 = vlaneseq
    %v7438 = vshrl.u32 %v7437, 7
    %v7439 = vsub.s32 %v7436, %v7438
    %v7440 = vrot.slane %v7303, %v7439
    %vm7441 = vcmask 720512
    %v7442 = vsel %vm7441, %v7440, %v7435
    %v7443 = vadd.s32 %v7368, 4294967208
    %v7444 = vlaneseq
    %v7445 = vshrl.u32 %v7444, 7
    %v7446 = vsub.s32 %v7443, %v7445
    %v7447 = vrot.slane %v7306, %v7446
    %vm7448 = vcmask 786112
    %v7449 = vsel %vm7448, %v7447, %v7442
    %v7450 = vadd.s32 %v7368, 4294967200
    %v7451 = vlaneseq
    %v7452 = vshrl.u32 %v7451, 7
    %v7453 = vsub.s32 %v7450, %v7452
    %v7454 = vrot.slane %v7309, %v7453
    %vm7455 = vcmask 851712
    %v7456 = vsel %vm7455, %v7454, %v7449
    %v7457 = vadd.s32 %v7368, 4294967192
    %v7458 = vlaneseq
    %v7459 = vshrl.u32 %v7458, 7
    %v7460 = vsub.s32 %v7457, %v7459
    %v7461 = vrot.slane %v7312, %v7460
    %vm7462 = vcmask 917312
    %v7463 = vsel %vm7462, %v7461, %v7456
    %v7464 = vadd.s32 %v7368, 4294967184
    %v7465 = vlaneseq
    %v7466 = vshrl.u32 %v7465, 7
    %v7467 = vsub.s32 %v7464, %v7466
    %v7468 = vrot.slane %v7315, %v7467
    %vm7469 = vcmask 982912
    %v7470 = vsel %vm7469, %v7468, %v7463
    %v7471 = vadd.s32 %v7368, 4294967176
    %v7472 = vlaneseq
    %v7473 = vshrl.u32 %v7472, 7
    %v7474 = vsub.s32 %v7471, %v7473
    %v7475 = vrot.slane %v7318, %v7474
    %vm7476 = vcmask 1048512
    %v7477 = vsel %vm7476, %v7475, %v7470
    %v7478 = vlaneseq
    %v7479 = vshrl.u32 %v7478, 7
    %v7480 = vsub.s32 %v7368, %v7479
    %v7481 = vrot.slane %v7321, %v7480
    %v7482 = vlaneseq
    %v7483 = vshrl.u32 %v7482, 7
    %v7484 = vsub.s32 %v7373, %v7483
    %v7485 = vrot.slane %v7324, %v7484
    %v7486 = vsel %vm7378, %v7485, %v7481
    %v7487 = vlaneseq
    %v7488 = vshrl.u32 %v7487, 7
    %v7489 = vsub.s32 %v7380, %v7488
    %v7490 = vrot.slane %v7327, %v7489
    %v7491 = vsel %vm7385, %v7490, %v7486
    %v7492 = vlaneseq
    %v7493 = vshrl.u32 %v7492, 7
    %v7494 = vsub.s32 %v7387, %v7493
    %v7495 = vrot.slane %v7330, %v7494
    %v7496 = vsel %vm7392, %v7495, %v7491
    %v7497 = vlaneseq
    %v7498 = vshrl.u32 %v7497, 7
    %v7499 = vsub.s32 %v7394, %v7498
    %v7500 = vrot.slane %v7333, %v7499
    %v7501 = vsel %vm7399, %v7500, %v7496
    %v7502 = vlaneseq
    %v7503 = vshrl.u32 %v7502, 7
    %v7504 = vsub.s32 %v7401, %v7503
    %v7505 = vrot.slane %v7336, %v7504
    %v7506 = vsel %vm7406, %v7505, %v7501
    %v7507 = vlaneseq
    %v7508 = vshrl.u32 %v7507, 7
    %v7509 = vsub.s32 %v7408, %v7508
    %v7510 = vrot.slane %v7339, %v7509
    %v7511 = vsel %vm7413, %v7510, %v7506
    %v7512 = vlaneseq
    %v7513 = vshrl.u32 %v7512, 7
    %v7514 = vsub.s32 %v7415, %v7513
    %v7515 = vrot.slane %v7342, %v7514
    %v7516 = vsel %vm7420, %v7515, %v7511
    %v7517 = vlaneseq
    %v7518 = vshrl.u32 %v7517, 7
    %v7519 = vsub.s32 %v7422, %v7518
    %v7520 = vrot.slane %v7345, %v7519
    %v7521 = vsel %vm7427, %v7520, %v7516
    %v7522 = vlaneseq
    %v7523 = vshrl.u32 %v7522, 7
    %v7524 = vsub.s32 %v7429, %v7523
    %v7525 = vrot.slane %v7348, %v7524
    %v7526 = vsel %vm7434, %v7525, %v7521
    %v7527 = vlaneseq
    %v7528 = vshrl.u32 %v7527, 7
    %v7529 = vsub.s32 %v7436, %v7528
    %v7530 = vrot.slane %v7351, %v7529
    %v7531 = vsel %vm7441, %v7530, %v7526
    %v7532 = vlaneseq
    %v7533 = vshrl.u32 %v7532, 7
    %v7534 = vsub.s32 %v7443, %v7533
    %v7535 = vrot.slane %v7354, %v7534
    %v7536 = vsel %vm7448, %v7535, %v7531
    %v7537 = vlaneseq
    %v7538 = vshrl.u32 %v7537, 7
    %v7539 = vsub.s32 %v7450, %v7538
    %v7540 = vrot.slane %v7357, %v7539
    %v7541 = vsel %vm7455, %v7540, %v7536
    %v7542 = vlaneseq
    %v7543 = vshrl.u32 %v7542, 7
    %v7544 = vsub.s32 %v7457, %v7543
    %v7545 = vrot.slane %v7360, %v7544
    %v7546 = vsel %vm7462, %v7545, %v7541
    %v7547 = vlaneseq
    %v7548 = vshrl.u32 %v7547, 7
    %v7549 = vsub.s32 %v7464, %v7548
    %v7550 = vrot.slane %v7363, %v7549
    %v7551 = vsel %vm7469, %v7550, %v7546
    %v7552 = vlaneseq
    %v7553 = vshrl.u32 %v7552, 7
    %v7554 = vsub.s32 %v7471, %v7553
    %v7555 = vrot.slane %v7366, %v7554
    %v7556 = vsel %vm7476, %v7555, %v7551
    %v7557 = vcombine.low %v7477, %v7556
    %v7559 = vunpack.c.l.s4 1966171168
    %v7560 = vunpack.c.0.s8 %v7559
    %v7561 = vlaneseq
    %v7562 = vshrl.u32 %v7561, 7
    %v7563 = vsub.s32 %v7560, %v7562
    %v7564 = vrot.slane %v7557, %v7563
    %v7566 = vunpack.c.l.s4 1966171168
    %v7567 = vunpack.c.0.s8 %v7566
    %v7568 = vlaneseq
    %v7569 = vshrl.u32 %v7568, 7
    %v7570 = vsub.s32 %v7567, %v7569
    %v7571 = vrot.slane %v7564, %v7570
    %v7573 = vlaneseq
    %vm7574 = vcmp.ge.s32.totalorder %v7573, 0
    %vm7575 = vcmp.lt.s32.totalorder %v7573, 256
    %vm7576 = vmand %vm7574, %vm7575
    %7577 = vst.msk [vmem:[#allocation8] sm:$0x3] %vm7576, %v7571
    // Predicated region
    $region30: #{tpu_custom_call.1} parent=1 // pred_check
      _
    $region31: #{tpu_custom_call.1} parent=1 // pred_check_branch
      %7579 = sbr.rel (0) target = $region33
    $region32: #{tpu_custom_call.1} parent=1 // pred_region
      %s7581 = ssub.s32 32, 32
      %7582 = vsyncadd [#allocation5], %s7581
      %s7584 = sshll.u32 [#allocation8], 4
      %s7585 = int_to_ptr.vmem [resolvable:$true] %s7584
      %7587 = dma.vmem_to_hbm [thread:$0]  %s7585, 32, %s5, [#allocation5]
    $region33: #{tpu_custom_call.1} parent=1 // pred_fallthru
      _
    // Predicated region
    $region34: #{tpu_custom_call.1} parent=1 // pred_check
      _
    $region35: #{tpu_custom_call.1} parent=1 // pred_check_branch
      %7589 = sbr.rel (0) target = $region37
    $region36: #{tpu_custom_call.1} parent=1 // pred_region
      %7590 = dma.done [#allocation5], 32
    $region37: #{tpu_custom_call.1} parent=1 // pred_fallthru
      _
    %7591 = vsyncpa [#allocation4], 1
    %7592 = vsyncpa [#allocation7], 1
    %7593 = vsyncpa [#allocation5], 1

</llo_original>
